<compile_context>
chip_gen: v5e
topology: v5e:2x2
jax: 0.10.0
libtpu: 0.0.40
codegen_flags: <defaults>
</compile_context>

<pallas_src>
import functools

import jax
import jax.numpy as jnp
from jax.experimental import pallas as pl
from jax.experimental.pallas import tpu as pltpu

CHANNEL = 3  # output image channels (matches `channel = 3` in the PyTorch spec)


def _round_up(x, m):
    return (x + m - 1) // m * m


# ---------------------------------------------------------------------------
# GEMM kernel (MXU): bf16 operands, f32 accumulate, K collapsed to one block.
#   activation="tanh" : tanh fused into the store (conv4)
#   with_stats=True   : per-column sum / sum-of-squares outputs accumulated
#                       across the M grid axis (BatchNorm batch statistics)
# Grid = (N tiles, M tiles) with M innermost so the (0, j) stats block is only
# revisited by consecutive grid steps.  Do NOT mark the M axis "parallel" when
# with_stats=True (partial sums would be lost on a multi-core split).
# ---------------------------------------------------------------------------

def _gemm_kernel(a_ref, b_ref, *out_refs, activation, with_stats):
    y = jnp.dot(a_ref[...], b_ref[...], preferred_element_type=jnp.float32)
    if activation == "tanh":
        y = jnp.tanh(y)
    if with_stats:
        o_ref, sum_ref, sq_ref = out_refs
        i = pl.program_id(1)  # top level of the kernel body (not inside pl.when)

        @pl.when(i == 0)
        def _():
            sum_ref[...] = jnp.zeros_like(sum_ref)
            sq_ref[...] = jnp.zeros_like(sq_ref)

        sum_ref[...] += jnp.sum(y, axis=0, keepdims=True)
        sq_ref[...] += jnp.sum(y * y, axis=0, keepdims=True)
    else:
        (o_ref,) = out_refs
    o_ref[...] = y.astype(o_ref.dtype)


def pallas_gemm(a, b, *, activation="none", with_stats=False,
                out_dtype=jnp.float32):
    """a: [M, K] float; b: [Kp, Np] bf16, pre-padded to multiples of 128.

    Returns o[:M] and, if with_stats, per-column (sum, sumsq) over all M rows.
    Any A padding is zeros, so the fused statistics stay exact.
    """
    M, K = a.shape
    Kp, Np = b.shape
    if K != Kp:
        a = jnp.pad(a, ((0, 0), (0, Kp - K)))
    a = a.astype(jnp.bfloat16)

    # M: single tile when small (no padded-A copy); else 512-row tiles, zero-padded.
    if M <= 1024:
        tm, Mp = M, M
    else:
        tm = 512
        Mp = _round_up(M, tm)
        if Mp != M:
            a = jnp.pad(a, ((0, Mp - M), (0, 0)))

    # N: single tile when the whole B fits a ~4 MiB block; soft cap 8192 so very
    # wide GEMMs still expose >=2 parallel tiles (v7x megacore).
    b_cap = max(128, ((4 << 20) // (2 * Kp)) // 128 * 128)
    o_cap = max(128, ((4 << 20) // (4 * tm)) // 128 * 128)
    tn = min(Np, b_cap, o_cap, 8192)
    while Np % tn:
        tn -= 128

    out_shape = [jax.ShapeDtypeStruct((Mp, Np), out_dtype)]
    out_specs = [pl.BlockSpec((tm, tn), lambda j, i: (i, j))]
    if with_stats:
        out_shape += [jax.ShapeDtypeStruct((1, Np), jnp.float32)] * 2
        out_specs += [pl.BlockSpec((1, tn), lambda j, i: (0, j))] * 2

    outs = pl.pallas_call(
        functools.partial(_gemm_kernel, activation=activation,
                          with_stats=with_stats),
        out_shape=tuple(out_shape),
        grid=(Np // tn, Mp // tm),
        in_specs=[pl.BlockSpec((tm, Kp), lambda j, i: (i, 0)),
                  pl.BlockSpec((Kp, tn), lambda j, i: (0, j))],
        out_specs=tuple(out_specs),
        compiler_params=pltpu.CompilerParams(
            dimension_semantics=("parallel",
                                 "arbitrary" if with_stats else "parallel"),
            vmem_limit_bytes=32 * 1024 * 1024),
    )(a, b)

    if with_stats:
        o, s, q = outs
        return (o if Mp == M else o[:M]), s, q
    o = outs[0]
    return o if Mp == M else o[:M]


# ---------------------------------------------------------------------------
# Fused BN(train-mode batch stats) apply + ReLU: y = max(x*scale + shift, 0).
# Operates on the GEMM-output layout, so the lane dim is always >= 128.
# ---------------------------------------------------------------------------

def _bn_relu_kernel(x_ref, scale_ref, shift_ref, o_ref):
    x = x_ref[...].astype(jnp.float32)
    y = x * scale_ref[...] + shift_ref[...]
    o_ref[...] = jnp.maximum(y, 0.0).astype(o_ref.dtype)


def pallas_bn_relu(x2d, scale, shift, out_dtype=jnp.bfloat16):
    m, c = x2d.shape
    scale = scale.reshape(1, c).astype(jnp.float32)
    shift = shift.reshape(1, c).astype(jnp.float32)
    t = m if m <= 1024 else 512          # elementwise: uneven tail block is safe
    return pl.pallas_call(
        _bn_relu_kernel,
        out_shape=jax.ShapeDtypeStruct((m, c), out_dtype),
        grid=(pl.cdiv(m, t),),
        in_specs=[pl.BlockSpec((t, c), lambda i: (i, 0)),
                  pl.BlockSpec((1, c), lambda i: (0, 0)),
                  pl.BlockSpec((1, c), lambda i: (0, 0))],
        out_specs=pl.BlockSpec((t, c), lambda i: (i, 0)),
        compiler_params=pltpu.CompilerParams(
            dimension_semantics=("parallel",)),
    )(x2d, scale, shift)


def _bn_scale_shift(sums, sqs, count, gamma, beta, eps=1e-5):
    # Training-mode BatchNorm2d (biased variance), PyTorch default for a fresh module.
    mean = sums / count
    var = jnp.maximum(sqs / count - mean * mean, 0.0)
    scale = gamma * jax.lax.rsqrt(var + eps)
    shift = beta - mean * scale
    return scale, shift


# ---------------------------------------------------------------------------
# Stride-2 ConvTranspose2d(k=4, p=1) via sub-pixel decomposition.
#   im2col A: [n*(h+1)*(w+1), 4*ci]  (one 2x2 tap block per input-padding shift)
#   GEMM weight: [4*ci, 4*co]        (one 2x2 sub-kernel per output parity)
#   depth-to-space + parity crop turn the GEMM output into the [n, 2h, 2w, co] image.
# ---------------------------------------------------------------------------

def _subpixel_im2col(x_nhwc):
    n, h, w, ci = x_nhwc.shape
    xp = jnp.pad(x_nhwc, ((0, 0), (1, 1), (1, 1), (0, 0)))
    taps = [xp[:, dy:dy + h + 1, dx:dx + w + 1, :]
            for dy in (0, 1) for dx in (0, 1)]
    return jnp.concatenate(taps, axis=-1).reshape(n * (h + 1) * (w + 1), 4 * ci)


def _depth_to_space(y4, n, h, w, co):
    """y4: [n*(h+1)*(w+1), 4*co] (parity-major columns) -> NHWC [n, 2h, 2w, co]."""
    a5 = y4.reshape(n, h + 1, w + 1, 4, co)
    rows = []
    for ry in (0, 1):
        cols = [a5[:, ry:ry + h, rx:rx + w, 2 * ry + rx, :] for rx in (0, 1)]
        rows.append(jnp.stack(cols, axis=3))       # [n, h, w, 2, co]
    out = jnp.stack(rows, axis=2)                  # [n, h, 2, w, 2, co]
    return out.reshape(n, 2 * h, 2 * w, co)


def _bn_stats_from_subpixel(y, col_sum, col_sq, n, h, w, co):
    """Exact per-channel BN batch stats of the cropped/interleaved layer output.

    col_sum/col_sq are per-column totals over all n*(h+1)*(w+1) GEMM rows (fused
    epilogue).  For parity (ry, rx) the depth-to-space crop keeps rows [ry, ry+h)
    and cols [rx, rx+w); the excluded L-shaped border (one row + one column of the
    (h+1)x(w+1) grid) is subtracted from thin slices of y.
    """
    c4 = 4 * co
    tot_s = col_sum[0, :c4].reshape(4, co)
    tot_q = col_sq[0, :c4].reshape(4, co)

    y5 = y[:, :c4].reshape(n, h + 1, w + 1, 4, co)
    row0 = y5[:, 0].astype(jnp.float32)            # [n, w+1, 4, co]
    rowh = y5[:, h].astype(jnp.float32)
    col0 = y5[:, :, 0].astype(jnp.float32)         # [n, h+1, 4, co]
    colw = y5[:, :, w].astype(jnp.float32)

    exc_s, exc_q = [], []
    for ry in (0, 1):
        for rx in (0, 1):
            p = 2 * ry + rx
            rb = (rowh if ry == 0 else row0)[:, :, p]      # [n, w+1, co]
            cb = (colw if rx == 0 else col0)[:, :, p]      # [n, h+1, co]
            corner = rb[:, w if rx == 0 else 0]            # [n, co]
            exc_s.append(rb.sum((0, 1)) + cb.sum((0, 1)) - corner.sum(0))
            exc_q.append((rb * rb).sum((0, 1)) + (cb * cb).sum((0, 1))
                         - (corner * corner).sum(0))
    exc_s = jnp.stack(exc_s)
    exc_q = jnp.stack(exc_q)

    count = n * 4 * h * w                                  # = n * (2h) * (2w)
    return (tot_s - exc_s).sum(0), (tot_q - exc_q).sum(0), count


# ---------------------------------------------------------------------------
# Parameters: raw PyTorch layout + one-time GEMM-layout transform (flip/regroup,
# lane padding, bf16 cast) done once in prepare_params, not per forward call.
# ---------------------------------------------------------------------------

def init_params(key, dim, latent=100, channel=CHANNEL, img_height=32):
    """Raw parameters in PyTorch layout (ConvTranspose2d weight = [Ci, Co, kh, kw])."""
    k1 = img_height // 8
    keys = jax.random.split(key, 4)

    def w(kk, ci, c_out, ks):
        return 0.02 * jax.random.normal(kk, (ci, c_out, ks, ks), jnp.float32)

    return {
        "w1": w(keys[0], latent, dim * 4, k1),
        "g1": jnp.ones((dim * 4,), jnp.float32), "b1": jnp.zeros((dim * 4,), jnp.float32),
        "w2": w(keys[1], dim * 4, dim * 2, 4),
        "g2": jnp.ones((dim * 2,), jnp.float32), "b2": jnp.zeros((dim * 2,), jnp.float32),
        "w3": w(keys[2], dim * 2, dim, 4),
        "g3": jnp.ones((dim,), jnp.float32), "b3": jnp.zeros((dim,), jnp.float32),
        "w4": w(keys[3], dim, channel, 4),
    }


def _subpixel_weight_matrix(w_pt):
    """[Ci, Co, 4, 4] ConvTranspose2d weight -> [4*Ci, 4*Co] sub-pixel GEMM weight.

    Row block t = dy*2+dx matches im2col tap (dy, dx); column block p = ry*2+rx
    holds the 2x2 kernel of output-pixel parity (ry, rx)."""
    ci, co, kh, kw = w_pt.shape
    assert kh == 4 and kw == 4
    cols = []
    for ry in (0, 1):
        for rx in (0, 1):
            rows = []
            for dy in (0, 1):
                for dx in (0, 1):
                    ky = 3 - 2 * dy if ry == 0 else 2 - 2 * dy
                    kx = 3 - 2 * dx if rx == 0 else 2 - 2 * dx
                    rows.append(w_pt[:, :, ky, kx])            # [Ci, Co]
            cols.append(jnp.concatenate(rows, axis=0))         # [4*Ci, Co]
    return jnp.concatenate(cols, axis=1)                       # [4*Ci, 4*Co]


def prepare_params(raw):
    def pad_cast(m):
        kk, nn = m.shape
        m = jnp.pad(m, ((0, _round_up(kk, 128) - kk), (0, _round_up(nn, 128) - nn)))
        return m.astype(jnp.bfloat16)

    # conv1 has a 1x1 spatial input -> plain dense weight [latent, kh*kw*Co].
    w1 = jnp.transpose(raw["w1"], (0, 2, 3, 1))
    w1 = w1.reshape(w1.shape[0], -1)
    return {
        "w1_mat": pad_cast(w1),
        "w2_mat": pad_cast(_subpixel_weight_matrix(raw["w2"])),
        "w3_mat": pad_cast(_subpixel_weight_matrix(raw["w3"])),
        "w4_mat": pad_cast(_subpixel_weight_matrix(raw["w4"])),
        "g1": raw["g1"], "b1": raw["b1"],
        "g2": raw["g2"], "b2": raw["b2"],
        "g3": raw["g3"], "b3": raw["b3"],
    }


# ---------------------------------------------------------------------------
# Generator forward (NCHW in / NCHW out; NHWC + lane-major channels internally)
# ---------------------------------------------------------------------------

def generator_forward(x_nchw, params, img_height=32):
    n = x_nchw.shape[0]
    c1 = params["g1"].shape[0]
    c2 = params["g2"].shape[0]
    c3 = params["g3"].shape[0]
    k1 = img_height // 8

    # conv1: 1x1-spatial transposed conv == dense GEMM; BN stats fused in epilogue.
    x = x_nchw.reshape(n, -1)                                   # [N, latent]
    y1, s1, q1 = pallas_gemm(x, params["w1_mat"], with_stats=True,
                             out_dtype=jnp.bfloat16)
    n1 = k1 * k1 * c1
    sums = s1[0, :n1].reshape(k1 * k1, c1).sum(0)               # fold spatial groups
    sqs = q1[0, :n1].reshape(k1 * k1, c1).sum(0)
    scale, shift = _bn_scale_shift(sums, sqs, n * k1 * k1,
                                   params["g1"], params["b1"])
    act = pallas_bn_relu(y1[:, :n1], jnp.tile(scale, k1 * k1),
                         jnp.tile(shift, k1 * k1))
    act = act.reshape(n, k1, k1, c1)                            # NHWC bf16
    hh = ww = k1

    # conv2 / conv3: sub-pixel GEMM (stats fused) -> lane-dense BN+ReLU -> d2s.
    for w_key, g_key, b_key, co in (("w2_mat", "g2", "b2", c2),
                                    ("w3_mat", "g3", "b3", c3)):
        a = _subpixel_im2col(act)                               # [M, 4*ci] bf16
        y, cs, cq = pallas_gemm(a, params[w_key], with_stats=True,
                                out_dtype=jnp.bfloat16)
        sums, sqs, cnt = _bn_stats_from_subpixel(y, cs, cq, n, hh, ww, co)
        scale, shift = _bn_scale_shift(sums, sqs, cnt,
                                       params[g_key], params[b_key])
        y_act = pallas_bn_relu(y[:, :4 * co], jnp.tile(scale, 4),
                               jnp.tile(shift, 4))
        # TODO(synk): fuse depth-to-space (+ next layer's zero pad) into a Pallas
        # pass writing the padded NHWC buffer; currently bf16 XLA data movement.
        act = _depth_to_space(y_act, n, hh, ww, co)             # NHWC bf16
        hh, ww = 2 * hh, 2 * ww

    # conv4: sub-pixel GEMM with tanh fused in the epilogue (no BN).
    a = _subpixel_im2col(act)
    y = pallas_gemm(a, params["w4_mat"], activation="tanh")     # f32
    out = _depth_to_space(y[:, :4 * CHANNEL], n, hh, ww, CHANNEL)
    return jnp.transpose(out, (0, 3, 1, 2))                     # NCHW f32


# ---------------------------------------------------------------------------
# Pure-JAX f32 reference (for correctness check only)
# ---------------------------------------------------------------------------

def _ref_conv_transpose(x, w, stride, padding):
    n, ci, h, ww = x.shape
    _, co, kh, kw = w.shape
    ho = (h - 1) * stride - 2 * padding + kh
    wo = (ww - 1) * stride - 2 * padding + kw
    full = jnp.zeros((n, co, ho + 2 * padding, wo + 2 * padding), jnp.float32)
    for ky in range(kh):
        for kx in range(kw):
            contrib = jnp.einsum("nchw,cd->ndhw", x, w[:, :, ky, kx])
            full = full.at[:, :, ky:ky + (h - 1) * stride + 1:stride,
                                 kx:kx + (ww - 1) * stride + 1:stride].add(contrib)
    return full[:, :, padding:padding + ho, padding:padding + wo]


def _ref_bn_relu(x, g, b, eps=1e-5):
    mean = x.mean(axis=(0, 2, 3), keepdims=True)
    var = x.var(axis=(0, 2, 3), keepdims=True)
    y = (x - mean) * jax.lax.rsqrt(var + eps) * g[None, :, None, None] \
        + b[None, :, None, None]
    return jnp.maximum(y, 0.0)


def reference_forward(x, raw):
    y = _ref_conv_transpose(x, raw["w1"], 1, 0)
    y = _ref_bn_relu(y, raw["g1"], raw["b1"])
    y = _ref_conv_transpose(y, raw["w2"], 2, 1)
    y = _ref_bn_relu(y, raw["g2"], raw["b2"])
    y = _ref_conv_transpose(y, raw["w3"], 2, 1)
    y = _ref_bn_relu(y, raw["g3"], raw["b3"])
    y = _ref_conv_transpose(y, raw["w4"], 2, 1)
    return jnp.tanh(y)


if __name__ == "__main__":
    key = jax.random.PRNGKey(0)
    batch = 2
    img_height = 32
    dim = 32              # scaled-down width for the demo (module default dim=256)
    latent = 100

    raw = init_params(key, dim=dim, latent=latent, img_height=img_height)
    params = prepare_params(raw)
    x = jax.random.normal(jax.random.fold_in(key, 123),
                          (batch, latent, 1, 1), jnp.float32)

    fwd = jax.jit(generator_forward)
    y = jax.block_until_ready(fwd(x, params))

    assert y.shape == (batch, CHANNEL, img_height, img_height), y.shape
    assert bool(jnp.all(jnp.isfinite(y)))
    assert bool(jnp.all(jnp.abs(y) <= 1.0 + 1e-6))   # tanh output range

    # Numerical check against the f32 reference (bf16 operands/activations -> loose tol).
    y_ref = reference_forward(x, raw)
    err = jnp.abs(y - y_ref)
    max_err = float(jnp.max(err))
    mean_err = float(jnp.mean(err))
    assert max_err < 1e-1 and mean_err < 1.5e-2, (max_err, mean_err)

    print("KERNEL_OK")
</pallas_src>

<mosaic_0001>
module attributes {stable_mosaic.version = 11 : i64} {
  func.func @_gemm_kernel(%arg0: i32, %arg1: i32, %arg2: memref<2x128xbf16, #tpu.memory_space<vmem>>, %arg3: memref<128x2048xbf16, #tpu.memory_space<vmem>>, %arg4: memref<2x2048xbf16, #tpu.memory_space<vmem>>, %arg5: memref<1x2048xf32, #tpu.memory_space<vmem>>, %arg6: memref<1x2048xf32, #tpu.memory_space<vmem>>) attributes {dimension_semantics = [#tpu.dimension_semantics<parallel>, #tpu.dimension_semantics<arbitrary>], iteration_bounds = array<i64: 1, 1>, scalar_prefetch = 0 : i64, scratch_operands = 0 : i64, tpu.core_type = #tpu.core_type<tc>, window_params = [{transform_indices = @transform_0, window_bounds = array<i64: 2, 128>}, {transform_indices = @transform_1, window_bounds = array<i64: 128, 2048>}, {transform_indices = @transform_2, window_bounds = array<i64: 2, 2048>}, {transform_indices = @transform_3, window_bounds = array<i64: 1, 2048>}, {transform_indices = @transform_4, window_bounds = array<i64: 1, 2048>}]} {
    %c0 = arith.constant 0 : index
    %c0_0 = arith.constant 0 : index
    %0 = vector.load %arg2[%c0, %c0_0] : memref<2x128xbf16, #tpu.memory_space<vmem>>, vector<2x128xbf16>
    %c0_1 = arith.constant 0 : index
    %c0_2 = arith.constant 0 : index
    %1 = vector.load %arg3[%c0_1, %c0_2] : memref<128x2048xbf16, #tpu.memory_space<vmem>>, vector<128x2048xbf16>
    %cst = arith.constant dense<0.000000e+00> : vector<2x2048xf32>
    %2 = tpu.matmul %0, %1, %cst {dimension_numbers = #tpu.dot_dimension_numbers<[1], [0], [0], [1], [0, 0, 1, 1], [], []>} : vector<2x128xbf16>, vector<128x2048xbf16>, vector<2x2048xf32> -> vector<2x2048xf32>
    %c0_i32 = arith.constant 0 : i32
    %3 = arith.cmpi eq, %arg1, %c0_i32 : i32
    %4 = arith.extui %3 : i1 to i32
    %c0_i32_3 = arith.constant 0 : i32
    %5 = arith.cmpi ne, %4, %c0_i32_3 : i32
    scf.if %5 {
      %cst_16 = arith.constant 0.000000e+00 : f32
      %19 = vector.broadcast %cst_16 : f32 to vector<1x2048xf32>
      %c0_17 = arith.constant 0 : index
      %c0_18 = arith.constant 0 : index
      %20 = vector.load %arg5[%c0_17, %c0_18] : memref<1x2048xf32, #tpu.memory_space<vmem>>, vector<1x2048xf32>
      tpu.vector_store %arg5[%c0_17, %c0_18], %19 {strides = array<i32>} : memref<1x2048xf32, #tpu.memory_space<vmem>>, vector<1x2048xf32>,
      %cst_19 = arith.constant 0.000000e+00 : f32
      %21 = vector.broadcast %cst_19 : f32 to vector<1x2048xf32>
      %c0_20 = arith.constant 0 : index
      %c0_21 = arith.constant 0 : index
      %22 = vector.load %arg6[%c0_20, %c0_21] : memref<1x2048xf32, #tpu.memory_space<vmem>>, vector<1x2048xf32>
      tpu.vector_store %arg6[%c0_20, %c0_21], %21 {strides = array<i32>} : memref<1x2048xf32, #tpu.memory_space<vmem>>, vector<1x2048xf32>,
    } else {
    }
    %c0_4 = arith.constant 0 : index
    %c0_5 = arith.constant 0 : index
    %6 = vector.load %arg5[%c0_4, %c0_5] : memref<1x2048xf32, #tpu.memory_space<vmem>>, vector<1x2048xf32>
    %cst_6 = arith.constant dense<0.000000e+00> : vector<2048xf32>
    %7 = vector.multi_reduction <add>, %2, %cst_6 [0] : vector<2x2048xf32> to vector<2048xf32>
    %8 = vector.shape_cast %7 : vector<2048xf32> to vector<1x2048xf32>
    %9 = arith.addf %6, %8 : vector<1x2048xf32>
    %c0_7 = arith.constant 0 : index
    %c0_8 = arith.constant 0 : index
    %10 = vector.load %arg5[%c0_7, %c0_8] : memref<1x2048xf32, #tpu.memory_space<vmem>>, vector<1x2048xf32>
    tpu.vector_store %arg5[%c0_7, %c0_8], %9 {strides = array<i32>} : memref<1x2048xf32, #tpu.memory_space<vmem>>, vector<1x2048xf32>,
    %c0_9 = arith.constant 0 : index
    %c0_10 = arith.constant 0 : index
    %11 = vector.load %arg6[%c0_9, %c0_10] : memref<1x2048xf32, #tpu.memory_space<vmem>>, vector<1x2048xf32>
    %12 = arith.mulf %2, %2 : vector<2x2048xf32>
    %cst_11 = arith.constant dense<0.000000e+00> : vector<2048xf32>
    %13 = vector.multi_reduction <add>, %12, %cst_11 [0] : vector<2x2048xf32> to vector<2048xf32>
    %14 = vector.shape_cast %13 : vector<2048xf32> to vector<1x2048xf32>
    %15 = arith.addf %11, %14 : vector<1x2048xf32>
    %c0_12 = arith.constant 0 : index
    %c0_13 = arith.constant 0 : index
    %16 = vector.load %arg6[%c0_12, %c0_13] : memref<1x2048xf32, #tpu.memory_space<vmem>>, vector<1x2048xf32>
    tpu.vector_store %arg6[%c0_12, %c0_13], %15 {strides = array<i32>} : memref<1x2048xf32, #tpu.memory_space<vmem>>, vector<1x2048xf32>,
    %17 = arith.truncf %2 : vector<2x2048xf32> to vector<2x2048xbf16>
    %c0_14 = arith.constant 0 : index
    %c0_15 = arith.constant 0 : index
    %18 = vector.load %arg4[%c0_14, %c0_15] : memref<2x2048xbf16, #tpu.memory_space<vmem>>, vector<2x2048xbf16>
    tpu.vector_store %arg4[%c0_14, %c0_15], %17 {strides = array<i32>} : memref<2x2048xbf16, #tpu.memory_space<vmem>>, vector<2x2048xbf16>,
    return
  }
  func.func @transform_0(%arg0: i32, %arg1: i32) -> (i32, i32) {
    %c0_i32 = arith.constant 0 : i32
    %c0_i32_0 = arith.constant 0 : i32
    return %arg1, %c0_i32 : i32, i32
  }
  func.func @transform_1(%arg0: i32, %arg1: i32) -> (i32, i32) {
    %c0_i32 = arith.constant 0 : i32
    %c0_i32_0 = arith.constant 0 : i32
    return %c0_i32, %arg0 : i32, i32
  }
  func.func @transform_2(%arg0: i32, %arg1: i32) -> (i32, i32) {
    %c0_i32 = arith.constant 0 : i32
    return %arg1, %arg0 : i32, i32
  }
  func.func @transform_3(%arg0: i32, %arg1: i32) -> (i32, i32) {
    %c0_i32 = arith.constant 0 : i32
    %c0_i32_0 = arith.constant 0 : i32
    return %c0_i32, %arg0 : i32, i32
  }
  func.func @transform_4(%arg0: i32, %arg1: i32) -> (i32, i32) {
    %c0_i32 = arith.constant 0 : i32
    %c0_i32_0 = arith.constant 0 : i32
    return %c0_i32, %arg0 : i32, i32
  }
}

module attributes {stable_mosaic.version = 11 : i64} {
  func.func @_bn_relu_kernel(%arg0: i32, %arg1: memref<2x2048xbf16, #tpu.memory_space<vmem>>, %arg2: memref<1x2048xf32, #tpu.memory_space<vmem>>, %arg3: memref<1x2048xf32, #tpu.memory_space<vmem>>, %arg4: memref<2x2048xbf16, #tpu.memory_space<vmem>>) attributes {dimension_semantics = [#tpu.dimension_semantics<parallel>], iteration_bounds = array<i64: 1>, scalar_prefetch = 0 : i64, scratch_operands = 0 : i64, tpu.core_type = #tpu.core_type<tc>, window_params = [{transform_indices = @transform_0, window_bounds = array<i64: 2, 2048>}, {pipeline_mode = #tpu.pipeline_mode<synchronous>, transform_indices = @transform_1, window_bounds = array<i64: 1, 2048>}, {pipeline_mode = #tpu.pipeline_mode<synchronous>, transform_indices = @transform_2, window_bounds = array<i64: 1, 2048>}, {transform_indices = @transform_3, window_bounds = array<i64: 2, 2048>}]} {
    %c0 = arith.constant 0 : index
    %c0_0 = arith.constant 0 : index
    %0 = vector.load %arg1[%c0, %c0_0] : memref<2x2048xbf16, #tpu.memory_space<vmem>>, vector<2x2048xbf16>
    %1 = arith.extf %0 : vector<2x2048xbf16> to vector<2x2048xf32>
    %c0_1 = arith.constant 0 : index
    %c0_2 = arith.constant 0 : index
    %2 = vector.load %arg2[%c0_1, %c0_2] : memref<1x2048xf32, #tpu.memory_space<vmem>>, vector<1x2048xf32>
    %3 = vector.broadcast %2 : vector<1x2048xf32> to vector<2x2048xf32>
    %4 = arith.mulf %1, %3 : vector<2x2048xf32>
    %c0_3 = arith.constant 0 : index
    %c0_4 = arith.constant 0 : index
    %5 = vector.load %arg3[%c0_3, %c0_4] : memref<1x2048xf32, #tpu.memory_space<vmem>>, vector<1x2048xf32>
    %6 = vector.broadcast %5 : vector<1x2048xf32> to vector<2x2048xf32>
    %7 = arith.addf %4, %6 : vector<2x2048xf32>
    %cst = arith.constant 0.000000e+00 : f32
    %8 = vector.broadcast %cst : f32 to vector<2x2048xf32>
    %9 = arith.maximumf %7, %8 : vector<2x2048xf32>
    %10 = arith.truncf %9 : vector<2x2048xf32> to vector<2x2048xbf16>
    %c0_5 = arith.constant 0 : index
    %c0_6 = arith.constant 0 : index
    %11 = vector.load %arg4[%c0_5, %c0_6] : memref<2x2048xbf16, #tpu.memory_space<vmem>>, vector<2x2048xbf16>
    tpu.vector_store %arg4[%c0_5, %c0_6], %10 {strides = array<i32>} : memref<2x2048xbf16, #tpu.memory_space<vmem>>, vector<2x2048xbf16>,
    return
  }
  func.func @transform_0(%arg0: i32) -> (i32, i32) {
    %c0_i32 = arith.constant 0 : i32
    %c0_i32_0 = arith.constant 0 : i32
    return %arg0, %c0_i32 : i32, i32
  }
  func.func @transform_1(%arg0: i32) -> (i32, i32) {
    %c0_i32 = arith.constant 0 : i32
    %c0_i32_0 = arith.constant 0 : i32
    %c0_i32_1 = arith.constant 0 : i32
    return %c0_i32, %c0_i32_0 : i32, i32
  }
  func.func @transform_2(%arg0: i32) -> (i32, i32) {
    %c0_i32 = arith.constant 0 : i32
    %c0_i32_0 = arith.constant 0 : i32
    %c0_i32_1 = arith.constant 0 : i32
    return %c0_i32, %c0_i32_0 : i32, i32
  }
  func.func @transform_3(%arg0: i32) -> (i32, i32) {
    %c0_i32 = arith.constant 0 : i32
    %c0_i32_0 = arith.constant 0 : i32
    return %arg0, %c0_i32 : i32, i32
  }
}

module attributes {stable_mosaic.version = 11 : i64} {
  func.func @_gemm_kernel(%arg0: i32, %arg1: i32, %arg2: memref<50x512xbf16, #tpu.memory_space<vmem>>, %arg3: memref<512x256xbf16, #tpu.memory_space<vmem>>, %arg4: memref<50x256xbf16, #tpu.memory_space<vmem>>, %arg5: memref<1x256xf32, #tpu.memory_space<vmem>>, %arg6: memref<1x256xf32, #tpu.memory_space<vmem>>) attributes {dimension_semantics = [#tpu.dimension_semantics<parallel>, #tpu.dimension_semantics<arbitrary>], iteration_bounds = array<i64: 1, 1>, scalar_prefetch = 0 : i64, scratch_operands = 0 : i64, tpu.core_type = #tpu.core_type<tc>, window_params = [{transform_indices = @transform_0, window_bounds = array<i64: 50, 512>}, {transform_indices = @transform_1, window_bounds = array<i64: 512, 256>}, {transform_indices = @transform_2, window_bounds = array<i64: 50, 256>}, {transform_indices = @transform_3, window_bounds = array<i64: 1, 256>}, {transform_indices = @transform_4, window_bounds = array<i64: 1, 256>}]} {
    %c0 = arith.constant 0 : index
    %c0_0 = arith.constant 0 : index
    %0 = vector.load %arg2[%c0, %c0_0] : memref<50x512xbf16, #tpu.memory_space<vmem>>, vector<50x512xbf16>
    %c0_1 = arith.constant 0 : index
    %c0_2 = arith.constant 0 : index
    %1 = vector.load %arg3[%c0_1, %c0_2] : memref<512x256xbf16, #tpu.memory_space<vmem>>, vector<512x256xbf16>
    %cst = arith.constant dense<0.000000e+00> : vector<50x256xf32>
    %2 = tpu.matmul %0, %1, %cst {dimension_numbers = #tpu.dot_dimension_numbers<[1], [0], [0], [1], [0, 0, 1, 1], [], []>} : vector<50x512xbf16>, vector<512x256xbf16>, vector<50x256xf32> -> vector<50x256xf32>
    %c0_i32 = arith.constant 0 : i32
    %3 = arith.cmpi eq, %arg1, %c0_i32 : i32
    %4 = arith.extui %3 : i1 to i32
    %c0_i32_3 = arith.constant 0 : i32
    %5 = arith.cmpi ne, %4, %c0_i32_3 : i32
    scf.if %5 {
      %cst_16 = arith.constant 0.000000e+00 : f32
      %19 = vector.broadcast %cst_16 : f32 to vector<1x256xf32>
      %c0_17 = arith.constant 0 : index
      %c0_18 = arith.constant 0 : index
      %20 = vector.load %arg5[%c0_17, %c0_18] : memref<1x256xf32, #tpu.memory_space<vmem>>, vector<1x256xf32>
      tpu.vector_store %arg5[%c0_17, %c0_18], %19 {strides = array<i32>} : memref<1x256xf32, #tpu.memory_space<vmem>>, vector<1x256xf32>,
      %cst_19 = arith.constant 0.000000e+00 : f32
      %21 = vector.broadcast %cst_19 : f32 to vector<1x256xf32>
      %c0_20 = arith.constant 0 : index
      %c0_21 = arith.constant 0 : index
      %22 = vector.load %arg6[%c0_20, %c0_21] : memref<1x256xf32, #tpu.memory_space<vmem>>, vector<1x256xf32>
      tpu.vector_store %arg6[%c0_20, %c0_21], %21 {strides = array<i32>} : memref<1x256xf32, #tpu.memory_space<vmem>>, vector<1x256xf32>,
    } else {
    }
    %c0_4 = arith.constant 0 : index
    %c0_5 = arith.constant 0 : index
    %6 = vector.load %arg5[%c0_4, %c0_5] : memref<1x256xf32, #tpu.memory_space<vmem>>, vector<1x256xf32>
    %cst_6 = arith.constant dense<0.000000e+00> : vector<256xf32>
    %7 = vector.multi_reduction <add>, %2, %cst_6 [0] : vector<50x256xf32> to vector<256xf32>
    %8 = vector.shape_cast %7 : vector<256xf32> to vector<1x256xf32>
    %9 = arith.addf %6, %8 : vector<1x256xf32>
    %c0_7 = arith.constant 0 : index
    %c0_8 = arith.constant 0 : index
    %10 = vector.load %arg5[%c0_7, %c0_8] : memref<1x256xf32, #tpu.memory_space<vmem>>, vector<1x256xf32>
    tpu.vector_store %arg5[%c0_7, %c0_8], %9 {strides = array<i32>} : memref<1x256xf32, #tpu.memory_space<vmem>>, vector<1x256xf32>,
    %c0_9 = arith.constant 0 : index
    %c0_10 = arith.constant 0 : index
    %11 = vector.load %arg6[%c0_9, %c0_10] : memref<1x256xf32, #tpu.memory_space<vmem>>, vector<1x256xf32>
    %12 = arith.mulf %2, %2 : vector<50x256xf32>
    %cst_11 = arith.constant dense<0.000000e+00> : vector<256xf32>
    %13 = vector.multi_reduction <add>, %12, %cst_11 [0] : vector<50x256xf32> to vector<256xf32>
    %14 = vector.shape_cast %13 : vector<256xf32> to vector<1x256xf32>
    %15 = arith.addf %11, %14 : vector<1x256xf32>
    %c0_12 = arith.constant 0 : index
    %c0_13 = arith.constant 0 : index
    %16 = vector.load %arg6[%c0_12, %c0_13] : memref<1x256xf32, #tpu.memory_space<vmem>>, vector<1x256xf32>
    tpu.vector_store %arg6[%c0_12, %c0_13], %15 {strides = array<i32>} : memref<1x256xf32, #tpu.memory_space<vmem>>, vector<1x256xf32>,
    %17 = arith.truncf %2 : vector<50x256xf32> to vector<50x256xbf16>
    %c0_14 = arith.constant 0 : index
    %c0_15 = arith.constant 0 : index
    %18 = vector.load %arg4[%c0_14, %c0_15] : memref<50x256xbf16, #tpu.memory_space<vmem>>, vector<50x256xbf16>
    tpu.vector_store %arg4[%c0_14, %c0_15], %17 {strides = array<i32>} : memref<50x256xbf16, #tpu.memory_space<vmem>>, vector<50x256xbf16>,
    return
  }
  func.func @transform_0(%arg0: i32, %arg1: i32) -> (i32, i32) {
    %c0_i32 = arith.constant 0 : i32
    %c0_i32_0 = arith.constant 0 : i32
    return %arg1, %c0_i32 : i32, i32
  }
  func.func @transform_1(%arg0: i32, %arg1: i32) -> (i32, i32) {
    %c0_i32 = arith.constant 0 : i32
    %c0_i32_0 = arith.constant 0 : i32
    return %c0_i32, %arg0 : i32, i32
  }
  func.func @transform_2(%arg0: i32, %arg1: i32) -> (i32, i32) {
    %c0_i32 = arith.constant 0 : i32
    return %arg1, %arg0 : i32, i32
  }
  func.func @transform_3(%arg0: i32, %arg1: i32) -> (i32, i32) {
    %c0_i32 = arith.constant 0 : i32
    %c0_i32_0 = arith.constant 0 : i32
    return %c0_i32, %arg0 : i32, i32
  }
  func.func @transform_4(%arg0: i32, %arg1: i32) -> (i32, i32) {
    %c0_i32 = arith.constant 0 : i32
    %c0_i32_0 = arith.constant 0 : i32
    return %c0_i32, %arg0 : i32, i32
  }
}

module attributes {stable_mosaic.version = 11 : i64} {
  func.func @_bn_relu_kernel(%arg0: i32, %arg1: memref<50x256xbf16, #tpu.memory_space<vmem>>, %arg2: memref<1x256xf32, #tpu.memory_space<vmem>>, %arg3: memref<1x256xf32, #tpu.memory_space<vmem>>, %arg4: memref<50x256xbf16, #tpu.memory_space<vmem>>) attributes {dimension_semantics = [#tpu.dimension_semantics<parallel>], iteration_bounds = array<i64: 1>, scalar_prefetch = 0 : i64, scratch_operands = 0 : i64, tpu.core_type = #tpu.core_type<tc>, window_params = [{transform_indices = @transform_0, window_bounds = array<i64: 50, 256>}, {pipeline_mode = #tpu.pipeline_mode<synchronous>, transform_indices = @transform_1, window_bounds = array<i64: 1, 256>}, {pipeline_mode = #tpu.pipeline_mode<synchronous>, transform_indices = @transform_2, window_bounds = array<i64: 1, 256>}, {transform_indices = @transform_3, window_bounds = array<i64: 50, 256>}]} {
    %c0 = arith.constant 0 : index
    %c0_0 = arith.constant 0 : index
    %0 = vector.load %arg1[%c0, %c0_0] : memref<50x256xbf16, #tpu.memory_space<vmem>>, vector<50x256xbf16>
    %1 = arith.extf %0 : vector<50x256xbf16> to vector<50x256xf32>
    %c0_1 = arith.constant 0 : index
    %c0_2 = arith.constant 0 : index
    %2 = vector.load %arg2[%c0_1, %c0_2] : memref<1x256xf32, #tpu.memory_space<vmem>>, vector<1x256xf32>
    %3 = vector.broadcast %2 : vector<1x256xf32> to vector<50x256xf32>
    %4 = arith.mulf %1, %3 : vector<50x256xf32>
    %c0_3 = arith.constant 0 : index
    %c0_4 = arith.constant 0 : index
    %5 = vector.load %arg3[%c0_3, %c0_4] : memref<1x256xf32, #tpu.memory_space<vmem>>, vector<1x256xf32>
    %6 = vector.broadcast %5 : vector<1x256xf32> to vector<50x256xf32>
    %7 = arith.addf %4, %6 : vector<50x256xf32>
    %cst = arith.constant 0.000000e+00 : f32
    %8 = vector.broadcast %cst : f32 to vector<50x256xf32>
    %9 = arith.maximumf %7, %8 : vector<50x256xf32>
    %10 = arith.truncf %9 : vector<50x256xf32> to vector<50x256xbf16>
    %c0_5 = arith.constant 0 : index
    %c0_6 = arith.constant 0 : index
    %11 = vector.load %arg4[%c0_5, %c0_6] : memref<50x256xbf16, #tpu.memory_space<vmem>>, vector<50x256xbf16>
    tpu.vector_store %arg4[%c0_5, %c0_6], %10 {strides = array<i32>} : memref<50x256xbf16, #tpu.memory_space<vmem>>, vector<50x256xbf16>,
    return
  }
  func.func @transform_0(%arg0: i32) -> (i32, i32) {
    %c0_i32 = arith.constant 0 : i32
    %c0_i32_0 = arith.constant 0 : i32
    return %arg0, %c0_i32 : i32, i32
  }
  func.func @transform_1(%arg0: i32) -> (i32, i32) {
    %c0_i32 = arith.constant 0 : i32
    %c0_i32_0 = arith.constant 0 : i32
    %c0_i32_1 = arith.constant 0 : i32
    return %c0_i32, %c0_i32_0 : i32, i32
  }
  func.func @transform_2(%arg0: i32) -> (i32, i32) {
    %c0_i32 = arith.constant 0 : i32
    %c0_i32_0 = arith.constant 0 : i32
    %c0_i32_1 = arith.constant 0 : i32
    return %c0_i32, %c0_i32_0 : i32, i32
  }
  func.func @transform_3(%arg0: i32) -> (i32, i32) {
    %c0_i32 = arith.constant 0 : i32
    %c0_i32_0 = arith.constant 0 : i32
    return %arg0, %c0_i32 : i32, i32
  }
}

module attributes {stable_mosaic.version = 11 : i64} {
  func.func @_gemm_kernel(%arg0: i32, %arg1: i32, %arg2: memref<162x256xbf16, #tpu.memory_space<vmem>>, %arg3: memref<256x128xbf16, #tpu.memory_space<vmem>>, %arg4: memref<162x128xbf16, #tpu.memory_space<vmem>>, %arg5: memref<1x128xf32, #tpu.memory_space<vmem>>, %arg6: memref<1x128xf32, #tpu.memory_space<vmem>>) attributes {dimension_semantics = [#tpu.dimension_semantics<parallel>, #tpu.dimension_semantics<arbitrary>], iteration_bounds = array<i64: 1, 1>, scalar_prefetch = 0 : i64, scratch_operands = 0 : i64, tpu.core_type = #tpu.core_type<tc>, window_params = [{transform_indices = @transform_0, window_bounds = array<i64: 162, 256>}, {transform_indices = @transform_1, window_bounds = array<i64: 256, 128>}, {transform_indices = @transform_2, window_bounds = array<i64: 162, 128>}, {transform_indices = @transform_3, window_bounds = array<i64: 1, 128>}, {transform_indices = @transform_4, window_bounds = array<i64: 1, 128>}]} {
    %c0 = arith.constant 0 : index
    %c0_0 = arith.constant 0 : index
    %0 = vector.load %arg2[%c0, %c0_0] : memref<162x256xbf16, #tpu.memory_space<vmem>>, vector<162x256xbf16>
    %c0_1 = arith.constant 0 : index
    %c0_2 = arith.constant 0 : index
    %1 = vector.load %arg3[%c0_1, %c0_2] : memref<256x128xbf16, #tpu.memory_space<vmem>>, vector<256x128xbf16>
    %cst = arith.constant dense<0.000000e+00> : vector<162x128xf32>
    %2 = tpu.matmul %0, %1, %cst {dimension_numbers = #tpu.dot_dimension_numbers<[1], [0], [0], [1], [0, 0, 1, 1], [], []>} : vector<162x256xbf16>, vector<256x128xbf16>, vector<162x128xf32> -> vector<162x128xf32>
    %c0_i32 = arith.constant 0 : i32
    %3 = arith.cmpi eq, %arg1, %c0_i32 : i32
    %4 = arith.extui %3 : i1 to i32
    %c0_i32_3 = arith.constant 0 : i32
    %5 = arith.cmpi ne, %4, %c0_i32_3 : i32
    scf.if %5 {
      %cst_16 = arith.constant 0.000000e+00 : f32
      %19 = vector.broadcast %cst_16 : f32 to vector<1x128xf32>
      %c0_17 = arith.constant 0 : index
      %c0_18 = arith.constant 0 : index
      %20 = vector.load %arg5[%c0_17, %c0_18] : memref<1x128xf32, #tpu.memory_space<vmem>>, vector<1x128xf32>
      tpu.vector_store %arg5[%c0_17, %c0_18], %19 {strides = array<i32>} : memref<1x128xf32, #tpu.memory_space<vmem>>, vector<1x128xf32>,
      %cst_19 = arith.constant 0.000000e+00 : f32
      %21 = vector.broadcast %cst_19 : f32 to vector<1x128xf32>
      %c0_20 = arith.constant 0 : index
      %c0_21 = arith.constant 0 : index
      %22 = vector.load %arg6[%c0_20, %c0_21] : memref<1x128xf32, #tpu.memory_space<vmem>>, vector<1x128xf32>
      tpu.vector_store %arg6[%c0_20, %c0_21], %21 {strides = array<i32>} : memref<1x128xf32, #tpu.memory_space<vmem>>, vector<1x128xf32>,
    } else {
    }
    %c0_4 = arith.constant 0 : index
    %c0_5 = arith.constant 0 : index
    %6 = vector.load %arg5[%c0_4, %c0_5] : memref<1x128xf32, #tpu.memory_space<vmem>>, vector<1x128xf32>
    %cst_6 = arith.constant dense<0.000000e+00> : vector<128xf32>
    %7 = vector.multi_reduction <add>, %2, %cst_6 [0] : vector<162x128xf32> to vector<128xf32>
    %8 = vector.shape_cast %7 : vector<128xf32> to vector<1x128xf32>
    %9 = arith.addf %6, %8 : vector<1x128xf32>
    %c0_7 = arith.constant 0 : index
    %c0_8 = arith.constant 0 : index
    %10 = vector.load %arg5[%c0_7, %c0_8] : memref<1x128xf32, #tpu.memory_space<vmem>>, vector<1x128xf32>
    tpu.vector_store %arg5[%c0_7, %c0_8], %9 {strides = array<i32>} : memref<1x128xf32, #tpu.memory_space<vmem>>, vector<1x128xf32>,
    %c0_9 = arith.constant 0 : index
    %c0_10 = arith.constant 0 : index
    %11 = vector.load %arg6[%c0_9, %c0_10] : memref<1x128xf32, #tpu.memory_space<vmem>>, vector<1x128xf32>
    %12 = arith.mulf %2, %2 : vector<162x128xf32>
    %cst_11 = arith.constant dense<0.000000e+00> : vector<128xf32>
    %13 = vector.multi_reduction <add>, %12, %cst_11 [0] : vector<162x128xf32> to vector<128xf32>
    %14 = vector.shape_cast %13 : vector<128xf32> to vector<1x128xf32>
    %15 = arith.addf %11, %14 : vector<1x128xf32>
    %c0_12 = arith.constant 0 : index
    %c0_13 = arith.constant 0 : index
    %16 = vector.load %arg6[%c0_12, %c0_13] : memref<1x128xf32, #tpu.memory_space<vmem>>, vector<1x128xf32>
    tpu.vector_store %arg6[%c0_12, %c0_13], %15 {strides = array<i32>} : memref<1x128xf32, #tpu.memory_space<vmem>>, vector<1x128xf32>,
    %17 = arith.truncf %2 : vector<162x128xf32> to vector<162x128xbf16>
    %c0_14 = arith.constant 0 : index
    %c0_15 = arith.constant 0 : index
    %18 = vector.load %arg4[%c0_14, %c0_15] : memref<162x128xbf16, #tpu.memory_space<vmem>>, vector<162x128xbf16>
    tpu.vector_store %arg4[%c0_14, %c0_15], %17 {strides = array<i32>} : memref<162x128xbf16, #tpu.memory_space<vmem>>, vector<162x128xbf16>,
    return
  }
  func.func @transform_0(%arg0: i32, %arg1: i32) -> (i32, i32) {
    %c0_i32 = arith.constant 0 : i32
    %c0_i32_0 = arith.constant 0 : i32
    return %arg1, %c0_i32 : i32, i32
  }
  func.func @transform_1(%arg0: i32, %arg1: i32) -> (i32, i32) {
    %c0_i32 = arith.constant 0 : i32
    %c0_i32_0 = arith.constant 0 : i32
    return %c0_i32, %arg0 : i32, i32
  }
  func.func @transform_2(%arg0: i32, %arg1: i32) -> (i32, i32) {
    %c0_i32 = arith.constant 0 : i32
    return %arg1, %arg0 : i32, i32
  }
  func.func @transform_3(%arg0: i32, %arg1: i32) -> (i32, i32) {
    %c0_i32 = arith.constant 0 : i32
    %c0_i32_0 = arith.constant 0 : i32
    return %c0_i32, %arg0 : i32, i32
  }
  func.func @transform_4(%arg0: i32, %arg1: i32) -> (i32, i32) {
    %c0_i32 = arith.constant 0 : i32
    %c0_i32_0 = arith.constant 0 : i32
    return %c0_i32, %arg0 : i32, i32
  }
}

module attributes {stable_mosaic.version = 11 : i64} {
  func.func @_bn_relu_kernel(%arg0: i32, %arg1: memref<162x128xbf16, #tpu.memory_space<vmem>>, %arg2: memref<1x128xf32, #tpu.memory_space<vmem>>, %arg3: memref<1x128xf32, #tpu.memory_space<vmem>>, %arg4: memref<162x128xbf16, #tpu.memory_space<vmem>>) attributes {dimension_semantics = [#tpu.dimension_semantics<parallel>], iteration_bounds = array<i64: 1>, scalar_prefetch = 0 : i64, scratch_operands = 0 : i64, tpu.core_type = #tpu.core_type<tc>, window_params = [{transform_indices = @transform_0, window_bounds = array<i64: 162, 128>}, {pipeline_mode = #tpu.pipeline_mode<synchronous>, transform_indices = @transform_1, window_bounds = array<i64: 1, 128>}, {pipeline_mode = #tpu.pipeline_mode<synchronous>, transform_indices = @transform_2, window_bounds = array<i64: 1, 128>}, {transform_indices = @transform_3, window_bounds = array<i64: 162, 128>}]} {
    %c0 = arith.constant 0 : index
    %c0_0 = arith.constant 0 : index
    %0 = vector.load %arg1[%c0, %c0_0] : memref<162x128xbf16, #tpu.memory_space<vmem>>, vector<162x128xbf16>
    %1 = arith.extf %0 : vector<162x128xbf16> to vector<162x128xf32>
    %c0_1 = arith.constant 0 : index
    %c0_2 = arith.constant 0 : index
    %2 = vector.load %arg2[%c0_1, %c0_2] : memref<1x128xf32, #tpu.memory_space<vmem>>, vector<1x128xf32>
    %3 = vector.broadcast %2 : vector<1x128xf32> to vector<162x128xf32>
    %4 = arith.mulf %1, %3 : vector<162x128xf32>
    %c0_3 = arith.constant 0 : index
    %c0_4 = arith.constant 0 : index
    %5 = vector.load %arg3[%c0_3, %c0_4] : memref<1x128xf32, #tpu.memory_space<vmem>>, vector<1x128xf32>
    %6 = vector.broadcast %5 : vector<1x128xf32> to vector<162x128xf32>
    %7 = arith.addf %4, %6 : vector<162x128xf32>
    %cst = arith.constant 0.000000e+00 : f32
    %8 = vector.broadcast %cst : f32 to vector<162x128xf32>
    %9 = arith.maximumf %7, %8 : vector<162x128xf32>
    %10 = arith.truncf %9 : vector<162x128xf32> to vector<162x128xbf16>
    %c0_5 = arith.constant 0 : index
    %c0_6 = arith.constant 0 : index
    %11 = vector.load %arg4[%c0_5, %c0_6] : memref<162x128xbf16, #tpu.memory_space<vmem>>, vector<162x128xbf16>
    tpu.vector_store %arg4[%c0_5, %c0_6], %10 {strides = array<i32>} : memref<162x128xbf16, #tpu.memory_space<vmem>>, vector<162x128xbf16>,
    return
  }
  func.func @transform_0(%arg0: i32) -> (i32, i32) {
    %c0_i32 = arith.constant 0 : i32
    %c0_i32_0 = arith.constant 0 : i32
    return %arg0, %c0_i32 : i32, i32
  }
  func.func @transform_1(%arg0: i32) -> (i32, i32) {
    %c0_i32 = arith.constant 0 : i32
    %c0_i32_0 = arith.constant 0 : i32
    %c0_i32_1 = arith.constant 0 : i32
    return %c0_i32, %c0_i32_0 : i32, i32
  }
  func.func @transform_2(%arg0: i32) -> (i32, i32) {
    %c0_i32 = arith.constant 0 : i32
    %c0_i32_0 = arith.constant 0 : i32
    %c0_i32_1 = arith.constant 0 : i32
    return %c0_i32, %c0_i32_0 : i32, i32
  }
  func.func @transform_3(%arg0: i32) -> (i32, i32) {
    %c0_i32 = arith.constant 0 : i32
    %c0_i32_0 = arith.constant 0 : i32
    return %arg0, %c0_i32 : i32, i32
  }
}

module attributes {stable_mosaic.version = 11 : i64} {
  func.func @_gemm_kernel(%arg0: i32, %arg1: i32, %arg2: memref<578x128xbf16, #tpu.memory_space<vmem>>, %arg3: memref<128x128xbf16, #tpu.memory_space<vmem>>, %arg4: memref<578x128xf32, #tpu.memory_space<vmem>>) attributes {dimension_semantics = [#tpu.dimension_semantics<parallel>, #tpu.dimension_semantics<parallel>], iteration_bounds = array<i64: 1, 1>, scalar_prefetch = 0 : i64, scratch_operands = 0 : i64, tpu.core_type = #tpu.core_type<tc>, window_params = [{transform_indices = @transform_0, window_bounds = array<i64: 578, 128>}, {transform_indices = @transform_1, window_bounds = array<i64: 128, 128>}, {transform_indices = @transform_2, window_bounds = array<i64: 578, 128>}]} {
    %c0 = arith.constant 0 : index
    %c0_0 = arith.constant 0 : index
    %0 = vector.load %arg2[%c0, %c0_0] : memref<578x128xbf16, #tpu.memory_space<vmem>>, vector<578x128xbf16>
    %c0_1 = arith.constant 0 : index
    %c0_2 = arith.constant 0 : index
    %1 = vector.load %arg3[%c0_1, %c0_2] : memref<128x128xbf16, #tpu.memory_space<vmem>>, vector<128x128xbf16>
    %cst = arith.constant dense<0.000000e+00> : vector<578x128xf32>
    %2 = tpu.matmul %0, %1, %cst {dimension_numbers = #tpu.dot_dimension_numbers<[1], [0], [0], [1], [0, 0, 1, 1], [], []>} : vector<578x128xbf16>, vector<128x128xbf16>, vector<578x128xf32> -> vector<578x128xf32>
    %3 = math.tanh %2 : vector<578x128xf32>
    %c0_3 = arith.constant 0 : index
    %c0_4 = arith.constant 0 : index
    %4 = vector.load %arg4[%c0_3, %c0_4] : memref<578x128xf32, #tpu.memory_space<vmem>>, vector<578x128xf32>
    tpu.vector_store %arg4[%c0_3, %c0_4], %3 {strides = array<i32>} : memref<578x128xf32, #tpu.memory_space<vmem>>, vector<578x128xf32>,
    return
  }
  func.func @transform_0(%arg0: i32, %arg1: i32) -> (i32, i32) {
    %c0_i32 = arith.constant 0 : i32
    %c0_i32_0 = arith.constant 0 : i32
    return %arg1, %c0_i32 : i32, i32
  }
  func.func @transform_1(%arg0: i32, %arg1: i32) -> (i32, i32) {
    %c0_i32 = arith.constant 0 : i32
    %c0_i32_0 = arith.constant 0 : i32
    return %c0_i32, %arg0 : i32, i32
  }
  func.func @transform_2(%arg0: i32, %arg1: i32) -> (i32, i32) {
    %c0_i32 = arith.constant 0 : i32
    return %arg1, %arg0 : i32, i32
  }
}

</mosaic_0001>

<llo_original>
// kernel: tile.37
$region0: #{tile.37}
  #allocation0 [shape = 's32[1]{0}', space=sflag, size = 0x4, scoped, tag = 'scoped memory for tile.37']
  %s0 = inlined_call_operand.vmem [shape: f32[128], index: 0, kind: input, shape index: {}]
  %s1 = inlined_call_operand.vmem [shape: f32[16,128], index: 1, kind: output, shape index: {}]
  // Predicated region
  $region2: #{tile.37} parent=0 // pred_check
    _
  $region3: #{tile.37} parent=0 // pred_check_branch
    %3 = sbr.rel (0) target = $region5
  $region4: #{tile.37} parent=0 // pred_region
    _
  $region5: #{tile.37} parent=0 // pred_fallthru
    _
  %v4 = vld [vmem:[%s0] ss:$0 sm:$0xff]
  %5 = vst [vmem:[%s1] sm:$0xff] %v4
  %s6 = scalar_lea.vmem %s1, 8
  %7 = vst [vmem:[%s6] sm:$0xff] %v4

// kernel: squeeze.41
$region0: #{squeeze.41}
  %s0 = inlined_call_operand.vmem [shape: f32[256], index: 0, kind: input, shape index: {}]
  %s1 = inlined_call_operand.vmem [shape: f32[4,64], index: 1, kind: output, shape index: {}]
  $region1: #{squeeze.41} parent=0
    #allocation0 [shape = 'u8[4096]{0}', space=vmem, size = 0x1000, scoped, tag = 'scoped mem for output reshape']
    #allocation1 [shape = 'u8[4096]{0}', space=vmem, size = 0x1000, scoped, tag = 'scoped mem for input reshape']
    %s3 = ssub.s32 4, 1
    %v4 = vld [vmem:[%s0] sm:%s3]
    %5 = vst [vmem:[#allocation1] sm:%s3] %v4
    %v6 = vld [vmem:[#allocation1] sm:$0x3]
    %vm7 = vcmask 523264
    %8 = vst.msk [vmem:[#allocation0] ss:$2 sm:$0x3] %vm7, %v6
    %v9 = vld [vmem:[#allocation1] sm:$0x3]
    %10 = vrot.lane.b32.xlu0 %v9, 64
    %v11 = vpop.permute.xlu0 %10
    %vm12 = vcmask 523264
    %s13 = scalar_lea.vmem [#allocation0], 1
    %14 = vst.msk [vmem:[%s13] ss:$2 sm:$0x3] %vm12, %v11
    %s16 = ssub.s32 16, 1
    %v17 = vld [vmem:[#allocation0] sm:%s16]
    %s19 = ssub.s32 16, 1
    %20 = vst [vmem:[%s1] sm:%s19] %v17

// kernel: generator_forward.8
$region0: #{generator_forward.8}
  #allocation0 [shape = 'u32[]', space=smem, size = 0x4, offset = 0x4, fixed_abs, tag = 'smem constant byte address 0x4 - core index']
  #allocation1 [shape = 'u32[72,128]{1,0:T(1,128)}', space=vmem, size = 0x9000, scoped, tag = 'internal scratch']
  %s0 = inlined_call_operand.vmem [shape: bf16[2,2048], index: 0, kind: input, shape index: {}]
  %s1 = inlined_call_operand.vmem [shape: f32[1,2048], index: 1, kind: input, shape index: {}]
  %s2 = inlined_call_operand.vmem [shape: f32[1,2048], index: 2, kind: input, shape index: {}]
  %s3 = inlined_call_operand.vmem [shape: bf16[2,2048], index: 3, kind: output, shape index: {}]
  %s4 = sld [smem:[#allocation0]]
  $region22: #{generator_forward.8} parent=0
    _
  %s6 = ssub.s32 1, %s4
  %s7 = scalar_select 0, %s6, %s4
  // Predicated region
  $region2: #{generator_forward.8} parent=0 // pred_check
    _
  $region3: #{generator_forward.8} parent=0 // pred_check_branch
    %9 = sbr.rel (0) target = $region5
  $region4: #{generator_forward.8} parent=0 // pred_region
    _
  $region5: #{generator_forward.8} parent=0 // pred_fallthru
    _
  // Predicated region
  $region6: #{generator_forward.8} parent=0 // pred_check
    _
  $region7: #{generator_forward.8} parent=0 // pred_check_branch
    %11 = sbr.rel (0) target = $region9
  $region8: #{generator_forward.8} parent=0 // pred_region
    _
  $region9: #{generator_forward.8} parent=0 // pred_fallthru
    _
  // Predicated region
  $region10: #{generator_forward.8} parent=0 // pred_check
    _
  $region11: #{generator_forward.8} parent=0 // pred_check_branch
    %13 = sbr.rel (0) target = $region13
  $region12: #{generator_forward.8} parent=0 // pred_region
    _
  $region13: #{generator_forward.8} parent=0 // pred_fallthru
    _
  %v14 = vld [vmem:[%s0] sm:$0xff]
  %v15 = vld [vmem:[%s0 + $0x8] sm:$0xff]
  %v16 = vunpack.c.l.bf16 %v14
  %v17 = vunpack.c.h.bf16 %v14
  %v18 = vunpack.c.l.bf16 %v15
  %v19 = vunpack.c.h.bf16 %v15
  %v20 = vld [vmem:[%s1] sm:$0xff]
  %v21 = vld [vmem:[%s1 + $0x8] sm:$0xff]
  %v24 = vperm.slane %v20, 0
  %v25 = vperm.slane %v20, 1
  %v26 = vperm.slane %v20, 2
  %v27 = vperm.slane %v20, 3
  %v28 = vperm.slane %v20, 4
  %v29 = vperm.slane %v20, 5
  %v30 = vperm.slane %v20, 6
  %v31 = vperm.slane %v20, 7
  %v32 = vperm.slane %v21, 0
  %v33 = vperm.slane %v21, 1
  %v34 = vperm.slane %v21, 2
  %v35 = vperm.slane %v21, 3
  %v36 = vperm.slane %v21, 4
  %v37 = vperm.slane %v21, 5
  %v38 = vperm.slane %v21, 6
  %v39 = vperm.slane %v21, 7
  %v40 = vrot.slane %v25, 6
  %v41 = vrot.slane %v26, 4
  %v42 = vrot.slane %v27, 2
  %v43 = vrot.slane %v29, 6
  %v44 = vrot.slane %v30, 4
  %v45 = vrot.slane %v31, 2
  %v46 = vrot.slane %v33, 6
  %v47 = vrot.slane %v34, 4
  %v48 = vrot.slane %v35, 2
  %v49 = vrot.slane %v37, 6
  %v50 = vrot.slane %v38, 4
  %v51 = vrot.slane %v39, 2
  %vm52 = vcmask 1041408
  %v53 = vsel %vm52, %v24, %v40
  %vm54 = vcmask 1045508
  %v55 = vsel %vm54, %v41, %v42
  %vm56 = vcmask 1043456
  %v57 = vsel %vm56, %v53, %v55
  %v58 = vsel %vm52, %v28, %v43
  %v59 = vsel %vm54, %v44, %v45
  %v60 = vsel %vm56, %v58, %v59
  %v61 = vsel %vm52, %v32, %v46
  %v62 = vsel %vm54, %v47, %v48
  %v63 = vsel %vm56, %v61, %v62
  %v64 = vsel %vm52, %v36, %v49
  %v65 = vsel %vm54, %v50, %v51
  %v66 = vsel %vm56, %v64, %v65
  %v71 = vmul.f32 %v16, %v57
  %v72 = vmul.f32 %v17, %v60
  %v73 = vmul.f32 %v18, %v63
  %v74 = vmul.f32 %v19, %v66
  %v75 = vld [vmem:[%s2] sm:$0xff]
  %v76 = vld [vmem:[%s2 + $0x8] sm:$0xff]
  %v79 = vperm.slane %v75, 0
  %v80 = vperm.slane %v75, 1
  %v81 = vperm.slane %v75, 2
  %v82 = vperm.slane %v75, 3
  %v83 = vperm.slane %v75, 4
  %v84 = vperm.slane %v75, 5
  %v85 = vperm.slane %v75, 6
  %v86 = vperm.slane %v75, 7
  %v87 = vperm.slane %v76, 0
  %v88 = vperm.slane %v76, 1
  %v89 = vperm.slane %v76, 2
  %v90 = vperm.slane %v76, 3
  %v91 = vperm.slane %v76, 4
  %v92 = vperm.slane %v76, 5
  %v93 = vperm.slane %v76, 6
  %v94 = vperm.slane %v76, 7
  %v95 = vrot.slane %v80, 6
  %v96 = vrot.slane %v81, 4
  %v97 = vrot.slane %v82, 2
  %v98 = vrot.slane %v84, 6
  %v99 = vrot.slane %v85, 4
  %v100 = vrot.slane %v86, 2
  %v101 = vrot.slane %v88, 6
  %v102 = vrot.slane %v89, 4
  %v103 = vrot.slane %v90, 2
  %v104 = vrot.slane %v92, 6
  %v105 = vrot.slane %v93, 4
  %v106 = vrot.slane %v94, 2
  %v107 = vsel %vm52, %v79, %v95
  %v108 = vsel %vm54, %v96, %v97
  %v109 = vsel %vm56, %v107, %v108
  %v110 = vsel %vm52, %v83, %v98
  %v111 = vsel %vm54, %v99, %v100
  %v112 = vsel %vm56, %v110, %v111
  %v113 = vsel %vm52, %v87, %v101
  %v114 = vsel %vm54, %v102, %v103
  %v115 = vsel %vm56, %v113, %v114
  %v116 = vsel %vm52, %v91, %v104
  %v117 = vsel %vm54, %v105, %v106
  %v118 = vsel %vm56, %v116, %v117
  %v123 = vadd.f32 %v71, %v109
  %v124 = vadd.f32 %v72, %v112
  %v125 = vadd.f32 %v73, %v115
  %v126 = vadd.f32 %v74, %v118
  %v127 = vmax.f32 %v123, 0.0
  %v128 = vmax.f32 %v124, 0.0
  %v129 = vmax.f32 %v125, 0.0
  %v130 = vmax.f32 %v126, 0.0
  %135 = vst [vmem:[#allocation1] ss:$4 sm:$0xff] %v127
  %s136 = scalar_lea.vmem [#allocation1], 32
  %137 = vst [vmem:[%s136] ss:$4 sm:$0xff] %v128
  %v138 = vld.sshfl [vmem:[#allocation1] sm:$0xff pattern:$0x73625140]
  %v139 = vld.sshfl [vmem:[#allocation1 + $0x8] sm:$0xff pattern:$0x73625140]
  %v140 = vld.sshfl [vmem:[#allocation1 + $0x10] sm:$0xff pattern:$0x73625140]
  %v141 = vld.sshfl [vmem:[#allocation1 + $0x18] sm:$0xff pattern:$0x73625140]
  %v142 = vld.sshfl [vmem:[#allocation1 + $0x20] sm:$0xff pattern:$0x73625140]
  %v143 = vld.sshfl [vmem:[#allocation1 + $0x28] sm:$0xff pattern:$0x73625140]
  %v144 = vld.sshfl [vmem:[#allocation1 + $0x30] sm:$0xff pattern:$0x73625140]
  %v145 = vld.sshfl [vmem:[#allocation1 + $0x38] sm:$0xff pattern:$0x73625140]
  %146 = vst [vmem:[#allocation1] ss:$4 sm:$0xff] %v129
  %147 = vst [vmem:[%s136] ss:$4 sm:$0xff] %v130
  %v148 = vld.sshfl [vmem:[#allocation1] sm:$0xff pattern:$0x73625140]
  %v149 = vld.sshfl [vmem:[#allocation1 + $0x8] sm:$0xff pattern:$0x73625140]
  %v150 = vld.sshfl [vmem:[#allocation1 + $0x10] sm:$0xff pattern:$0x73625140]
  %v151 = vld.sshfl [vmem:[#allocation1 + $0x18] sm:$0xff pattern:$0x73625140]
  %v152 = vld.sshfl [vmem:[#allocation1 + $0x20] sm:$0xff pattern:$0x73625140]
  %v153 = vld.sshfl [vmem:[#allocation1 + $0x28] sm:$0xff pattern:$0x73625140]
  %v154 = vld.sshfl [vmem:[#allocation1 + $0x30] sm:$0xff pattern:$0x73625140]
  %v155 = vld.sshfl [vmem:[#allocation1 + $0x38] sm:$0xff pattern:$0x73625140]
  %v172 = vpack.c.bf16 %v139, %v138
  %v173 = vpack.c.bf16 %v141, %v140
  %v174 = vpack.c.bf16 %v143, %v142
  %v175 = vpack.c.bf16 %v145, %v144
  %v176 = vpack.c.bf16 %v149, %v148
  %v177 = vpack.c.bf16 %v151, %v150
  %v178 = vpack.c.bf16 %v153, %v152
  %v179 = vpack.c.bf16 %v155, %v154
  %v188 = vrot.slane %v172, 3
  %v189 = vrot.slane %v173, 6
  %v190 = vrot.slane %v173, 1
  %v191 = vrot.slane %v174, 4
  %v192 = vrot.slane %v174, 7
  %v193 = vrot.slane %v175, 2
  %v194 = vrot.slane %v175, 5
  %v195 = vrot.slane %v176, 3
  %v196 = vrot.slane %v177, 6
  %v197 = vrot.slane %v177, 1
  %v198 = vrot.slane %v178, 4
  %v199 = vrot.slane %v178, 7
  %v200 = vrot.slane %v179, 2
  %v201 = vrot.slane %v179, 5
  %vm202 = vcmask 1040384
  %v205 = vsel %vm202, %v172, %v188
  %vm206 = vcmask 1042434
  %v209 = vsel %vm206, %v189, %v190
  %v210 = vsel %vm52, %v205, %v209
  %vm211 = vcmask 1044484
  %v214 = vsel %vm211, %v191, %v192
  %vm215 = vcmask 1046534
  %v218 = vsel %vm215, %v193, %v194
  %v219 = vsel %vm54, %v214, %v218
  %v220 = vsel %vm56, %v210, %v219
  %v223 = vsel %vm202, %v176, %v195
  %v226 = vsel %vm206, %v196, %v197
  %v227 = vsel %vm52, %v223, %v226
  %v230 = vsel %vm211, %v198, %v199
  %v233 = vsel %vm215, %v200, %v201
  %v234 = vsel %vm54, %v230, %v233
  %v235 = vsel %vm56, %v227, %v234
  %238 = vst [vmem:[%s3] sm:$0xff] %v220
  %239 = vst [vmem:[%s3 + $0x8] sm:$0xff] %v235
  // Predicated region
  $region14: #{generator_forward.8} parent=0 // pred_check
    _
  $region15: #{generator_forward.8} parent=0 // pred_check_branch
    %241 = sbr.rel (0) target = $region17
  $region16: #{generator_forward.8} parent=0 // pred_region
    _
  $region17: #{generator_forward.8} parent=0 // pred_fallthru
    _
  // Predicated region
  $region18: #{generator_forward.8} parent=0 // pred_check
    _
  $region19: #{generator_forward.8} parent=0 // pred_check_branch
    %243 = sbr.rel (0) target = $region21
  $region20: #{generator_forward.8} parent=0 // pred_region
    _
  $region21: #{generator_forward.8} parent=0 // pred_fallthru
    _

// kernel: generator_forward.7
$region0: #{generator_forward.7}
  #allocation0 [shape = 'u32[]', space=smem, size = 0x4, offset = 0x4, fixed_abs, tag = 'smem constant byte address 0x4 - core index']
  #allocation1 [shape = 'u32[72,128]{1,0:T(1,128)}', space=vmem, size = 0x9000, scoped, tag = 'internal scratch']
  %s0 = inlined_call_operand.vmem [shape: bf16[2,128], index: 0, kind: input, shape index: {}]
  %s1 = inlined_call_operand.hbm [shape: bf16[128,2048], index: 1, kind: input, shape index: {}]
  %s2 = inlined_call_operand.vmem [shape: bf16[2,2048], index: 2, kind: output, shape index: {0}]
  %s3 = inlined_call_operand.vmem [shape: f32[1,2048], index: 3, kind: output, shape index: {1}]
  %s4 = inlined_call_operand.vmem [shape: f32[1,2048], index: 4, kind: output, shape index: {2}]
  %5 = xla_tuple %s2, %s3, %s4
  %s6 = sld [smem:[#allocation0]]
  $region42: #{generator_forward.7} parent=0
    _
  %s8 = ssub.s32 1, %s6
  %s9 = scalar_select 0, %s8, %s6
  $region1: #{generator_forward.7} parent=0
    #allocation2 [shape = 'u8[524288]{0}', space=vmem, size = 0x80000, scoped, tag = 'input window, operand 1, single buffered']
    #allocation3 [shape = 's32[1]{0}', space=sflag, size = 0x4, scoped, tag = 'scoped memory for generator_forward.7']
    %10 = vsyncpa [#allocation3], 0
    // Predicated region
    $region2: #{generator_forward.7} parent=1 // pred_check
      _
    $region3: #{generator_forward.7} parent=1 // pred_check_branch
      %12 = sbr.rel (0) target = $region5
    $region4: #{generator_forward.7} parent=1 // pred_region
      _
    $region5: #{generator_forward.7} parent=1 // pred_fallthru
      _
    // Predicated region
    $region6: #{generator_forward.7} parent=1 // pred_check
      _
    $region7: #{generator_forward.7} parent=1 // pred_check_branch
      %14 = sbr.rel (0) target = $region9
    $region8: #{generator_forward.7} parent=1 // pred_region
      %16 = vsyncadd [#allocation3], 0
      %s17 = sshll.u32 %s1, 4
      %s18 = int_to_ptr.hbm [resolvable:$true] %s17
      %s19 = sshll.u32 [#allocation2], 4
      %s20 = int_to_ptr.vmem [resolvable:$true] %s19
      %25 = dma.hbm_to_vmem [thread:$0]  %s18, 16384, %s20, [#allocation3], 1024, 1024, 64
    $region9: #{generator_forward.7} parent=1 // pred_fallthru
      _
    // Predicated region
    $region10: #{generator_forward.7} parent=1 // pred_check
      _
    $region11: #{generator_forward.7} parent=1 // pred_check_branch
      %27 = sbr.rel (0) target = $region13
    $region12: #{generator_forward.7} parent=1 // pred_region
      %29 = dma.done [#allocation3], 16384
    $region13: #{generator_forward.7} parent=1 // pred_fallthru
      _
    %v30 = vld [vmem:[%s0] sm:$0x1]
    %v31 = vld [vmem:[#allocation2] sm:$0xff]
    %v32 = vld [vmem:[#allocation2 + $0x8] sm:$0xff]
    %v33 = vld [vmem:[#allocation2 + $0x10] sm:$0xff]
    %v34 = vld [vmem:[#allocation2 + $0x18] sm:$0xff]
    %v35 = vld [vmem:[#allocation2 + $0x20] sm:$0xff]
    %v36 = vld [vmem:[#allocation2 + $0x28] sm:$0xff]
    %v37 = vld [vmem:[#allocation2 + $0x30] sm:$0xff]
    %v38 = vld [vmem:[#allocation2 + $0x38] sm:$0xff]
    %v39 = vld [vmem:[#allocation2 + $0x40] sm:$0xff]
    %v40 = vld [vmem:[#allocation2 + $0x48] sm:$0xff]
    %v41 = vld [vmem:[#allocation2 + $0x50] sm:$0xff]
    %v42 = vld [vmem:[#allocation2 + $0x58] sm:$0xff]
    %v43 = vld [vmem:[#allocation2 + $0x60] sm:$0xff]
    %v44 = vld [vmem:[#allocation2 + $0x68] sm:$0xff]
    %v45 = vld [vmem:[#allocation2 + $0x70] sm:$0xff]
    %v46 = vld [vmem:[#allocation2 + $0x78] sm:$0xff]
    %v47 = vld [vmem:[#allocation2 + $0x80] sm:$0xff]
    %v48 = vld [vmem:[#allocation2 + $0x88] sm:$0xff]
    %v49 = vld [vmem:[#allocation2 + $0x90] sm:$0xff]
    %v50 = vld [vmem:[#allocation2 + $0x98] sm:$0xff]
    %v51 = vld [vmem:[#allocation2 + $0xa0] sm:$0xff]
    %v52 = vld [vmem:[#allocation2 + $0xa8] sm:$0xff]
    %v53 = vld [vmem:[#allocation2 + $0xb0] sm:$0xff]
    %v54 = vld [vmem:[#allocation2 + $0xb8] sm:$0xff]
    %v55 = vld [vmem:[#allocation2 + $0xc0] sm:$0xff]
    %v56 = vld [vmem:[#allocation2 + $0xc8] sm:$0xff]
    %v57 = vld [vmem:[#allocation2 + $0xd0] sm:$0xff]
    %v58 = vld [vmem:[#allocation2 + $0xd8] sm:$0xff]
    %v59 = vld [vmem:[#allocation2 + $0xe0] sm:$0xff]
    %v60 = vld [vmem:[#allocation2 + $0xe8] sm:$0xff]
    %v61 = vld [vmem:[#allocation2 + $0xf0] sm:$0xff]
    %v62 = vld [vmem:[#allocation2 + $0xf8] sm:$0xff]
    %v63 = vld [vmem:[#allocation2 + $0x100] sm:$0xff]
    %v64 = vld [vmem:[#allocation2 + $0x108] sm:$0xff]
    %v65 = vld [vmem:[#allocation2 + $0x110] sm:$0xff]
    %v66 = vld [vmem:[#allocation2 + $0x118] sm:$0xff]
    %v67 = vld [vmem:[#allocation2 + $0x120] sm:$0xff]
    %v68 = vld [vmem:[#allocation2 + $0x128] sm:$0xff]
    %v69 = vld [vmem:[#allocation2 + $0x130] sm:$0xff]
    %v70 = vld [vmem:[#allocation2 + $0x138] sm:$0xff]
    %v71 = vld [vmem:[#allocation2 + $0x140] sm:$0xff]
    %v72 = vld [vmem:[#allocation2 + $0x148] sm:$0xff]
    %v73 = vld [vmem:[#allocation2 + $0x150] sm:$0xff]
    %v74 = vld [vmem:[#allocation2 + $0x158] sm:$0xff]
    %v75 = vld [vmem:[#allocation2 + $0x160] sm:$0xff]
    %v76 = vld [vmem:[#allocation2 + $0x168] sm:$0xff]
    %v77 = vld [vmem:[#allocation2 + $0x170] sm:$0xff]
    %v78 = vld [vmem:[#allocation2 + $0x178] sm:$0xff]
    %v79 = vld [vmem:[#allocation2 + $0x180] sm:$0xff]
    %v80 = vld [vmem:[#allocation2 + $0x188] sm:$0xff]
    %v81 = vld [vmem:[#allocation2 + $0x190] sm:$0xff]
    %v82 = vld [vmem:[#allocation2 + $0x198] sm:$0xff]
    %v83 = vld [vmem:[#allocation2 + $0x1a0] sm:$0xff]
    %v84 = vld [vmem:[#allocation2 + $0x1a8] sm:$0xff]
    %v85 = vld [vmem:[#allocation2 + $0x1b0] sm:$0xff]
    %v86 = vld [vmem:[#allocation2 + $0x1b8] sm:$0xff]
    %v87 = vld [vmem:[#allocation2 + $0x1c0] sm:$0xff]
    %v88 = vld [vmem:[#allocation2 + $0x1c8] sm:$0xff]
    %v89 = vld [vmem:[#allocation2 + $0x1d0] sm:$0xff]
    %v90 = vld [vmem:[#allocation2 + $0x1d8] sm:$0xff]
    %v91 = vld [vmem:[#allocation2 + $0x1e0] sm:$0xff]
    %v92 = vld [vmem:[#allocation2 + $0x1e8] sm:$0xff]
    %v93 = vld [vmem:[#allocation2 + $0x1f0] sm:$0xff]
    %v94 = vld [vmem:[#allocation2 + $0x1f8] sm:$0xff]
    %v95 = vld [vmem:[#allocation2 + $0x200] sm:$0xff]
    %v96 = vld [vmem:[#allocation2 + $0x208] sm:$0xff]
    %v97 = vld [vmem:[#allocation2 + $0x210] sm:$0xff]
    %v98 = vld [vmem:[#allocation2 + $0x218] sm:$0xff]
    %v99 = vld [vmem:[#allocation2 + $0x220] sm:$0xff]
    %v100 = vld [vmem:[#allocation2 + $0x228] sm:$0xff]
    %v101 = vld [vmem:[#allocation2 + $0x230] sm:$0xff]
    %v102 = vld [vmem:[#allocation2 + $0x238] sm:$0xff]
    %v103 = vld [vmem:[#allocation2 + $0x240] sm:$0xff]
    %v104 = vld [vmem:[#allocation2 + $0x248] sm:$0xff]
    %v105 = vld [vmem:[#allocation2 + $0x250] sm:$0xff]
    %v106 = vld [vmem:[#allocation2 + $0x258] sm:$0xff]
    %v107 = vld [vmem:[#allocation2 + $0x260] sm:$0xff]
    %v108 = vld [vmem:[#allocation2 + $0x268] sm:$0xff]
    %v109 = vld [vmem:[#allocation2 + $0x270] sm:$0xff]
    %v110 = vld [vmem:[#allocation2 + $0x278] sm:$0xff]
    %v111 = vld [vmem:[#allocation2 + $0x280] sm:$0xff]
    %v112 = vld [vmem:[#allocation2 + $0x288] sm:$0xff]
    %v113 = vld [vmem:[#allocation2 + $0x290] sm:$0xff]
    %v114 = vld [vmem:[#allocation2 + $0x298] sm:$0xff]
    %v115 = vld [vmem:[#allocation2 + $0x2a0] sm:$0xff]
    %v116 = vld [vmem:[#allocation2 + $0x2a8] sm:$0xff]
    %v117 = vld [vmem:[#allocation2 + $0x2b0] sm:$0xff]
    %v118 = vld [vmem:[#allocation2 + $0x2b8] sm:$0xff]
    %v119 = vld [vmem:[#allocation2 + $0x2c0] sm:$0xff]
    %v120 = vld [vmem:[#allocation2 + $0x2c8] sm:$0xff]
    %v121 = vld [vmem:[#allocation2 + $0x2d0] sm:$0xff]
    %v122 = vld [vmem:[#allocation2 + $0x2d8] sm:$0xff]
    %v123 = vld [vmem:[#allocation2 + $0x2e0] sm:$0xff]
    %v124 = vld [vmem:[#allocation2 + $0x2e8] sm:$0xff]
    %v125 = vld [vmem:[#allocation2 + $0x2f0] sm:$0xff]
    %v126 = vld [vmem:[#allocation2 + $0x2f8] sm:$0xff]
    %v127 = vld [vmem:[#allocation2 + $0x300] sm:$0xff]
    %v128 = vld [vmem:[#allocation2 + $0x308] sm:$0xff]
    %v129 = vld [vmem:[#allocation2 + $0x310] sm:$0xff]
    %v130 = vld [vmem:[#allocation2 + $0x318] sm:$0xff]
    %v131 = vld [vmem:[#allocation2 + $0x320] sm:$0xff]
    %v132 = vld [vmem:[#allocation2 + $0x328] sm:$0xff]
    %v133 = vld [vmem:[#allocation2 + $0x330] sm:$0xff]
    %v134 = vld [vmem:[#allocation2 + $0x338] sm:$0xff]
    %v135 = vld [vmem:[#allocation2 + $0x340] sm:$0xff]
    %v136 = vld [vmem:[#allocation2 + $0x348] sm:$0xff]
    %v137 = vld [vmem:[#allocation2 + $0x350] sm:$0xff]
    %v138 = vld [vmem:[#allocation2 + $0x358] sm:$0xff]
    %v139 = vld [vmem:[#allocation2 + $0x360] sm:$0xff]
    %v140 = vld [vmem:[#allocation2 + $0x368] sm:$0xff]
    %v141 = vld [vmem:[#allocation2 + $0x370] sm:$0xff]
    %v142 = vld [vmem:[#allocation2 + $0x378] sm:$0xff]
    %v143 = vld [vmem:[#allocation2 + $0x380] sm:$0xff]
    %v144 = vld [vmem:[#allocation2 + $0x388] sm:$0xff]
    %v145 = vld [vmem:[#allocation2 + $0x390] sm:$0xff]
    %v146 = vld [vmem:[#allocation2 + $0x398] sm:$0xff]
    %v147 = vld [vmem:[#allocation2 + $0x3a0] sm:$0xff]
    %v148 = vld [vmem:[#allocation2 + $0x3a8] sm:$0xff]
    %v149 = vld [vmem:[#allocation2 + $0x3b0] sm:$0xff]
    %v150 = vld [vmem:[#allocation2 + $0x3b8] sm:$0xff]
    %v151 = vld [vmem:[#allocation2 + $0x3c0] sm:$0xff]
    %v152 = vld [vmem:[#allocation2 + $0x3c8] sm:$0xff]
    %v153 = vld [vmem:[#allocation2 + $0x3d0] sm:$0xff]
    %v154 = vld [vmem:[#allocation2 + $0x3d8] sm:$0xff]
    %v155 = vld [vmem:[#allocation2 + $0x3e0] sm:$0xff]
    %v156 = vld [vmem:[#allocation2 + $0x3e8] sm:$0xff]
    %v157 = vld [vmem:[#allocation2 + $0x3f0] sm:$0xff]
    %v158 = vld [vmem:[#allocation2 + $0x3f8] sm:$0xff]
    %v287 = vunpack.c.l.b16 %v31
    %v288 = vunpack.c.h.b16 %v31
    %v289 = vunpack.c.l.b16 %v32
    %v290 = vunpack.c.h.b16 %v32
    %v291 = vunpack.c.l.b16 %v33
    %v292 = vunpack.c.h.b16 %v33
    %v293 = vunpack.c.l.b16 %v34
    %v294 = vunpack.c.h.b16 %v34
    %v295 = vunpack.c.l.b16 %v35
    %v296 = vunpack.c.h.b16 %v35
    %v297 = vunpack.c.l.b16 %v36
    %v298 = vunpack.c.h.b16 %v36
    %v299 = vunpack.c.l.b16 %v37
    %v300 = vunpack.c.h.b16 %v37
    %v301 = vunpack.c.l.b16 %v38
    %v302 = vunpack.c.h.b16 %v38
    %v303 = vunpack.c.l.b16 %v39
    %v304 = vunpack.c.h.b16 %v39
    %v305 = vunpack.c.l.b16 %v40
    %v306 = vunpack.c.h.b16 %v40
    %v307 = vunpack.c.l.b16 %v41
    %v308 = vunpack.c.h.b16 %v41
    %v309 = vunpack.c.l.b16 %v42
    %v310 = vunpack.c.h.b16 %v42
    %v311 = vunpack.c.l.b16 %v43
    %v312 = vunpack.c.h.b16 %v43
    %v313 = vunpack.c.l.b16 %v44
    %v314 = vunpack.c.h.b16 %v44
    %v315 = vunpack.c.l.b16 %v45
    %v316 = vunpack.c.h.b16 %v45
    %v317 = vunpack.c.l.b16 %v46
    %v318 = vunpack.c.h.b16 %v46
    %v319 = vunpack.c.l.b16 %v47
    %v320 = vunpack.c.h.b16 %v47
    %v321 = vunpack.c.l.b16 %v48
    %v322 = vunpack.c.h.b16 %v48
    %v323 = vunpack.c.l.b16 %v49
    %v324 = vunpack.c.h.b16 %v49
    %v325 = vunpack.c.l.b16 %v50
    %v326 = vunpack.c.h.b16 %v50
    %v327 = vunpack.c.l.b16 %v51
    %v328 = vunpack.c.h.b16 %v51
    %v329 = vunpack.c.l.b16 %v52
    %v330 = vunpack.c.h.b16 %v52
    %v331 = vunpack.c.l.b16 %v53
    %v332 = vunpack.c.h.b16 %v53
    %v333 = vunpack.c.l.b16 %v54
    %v334 = vunpack.c.h.b16 %v54
    %v335 = vunpack.c.l.b16 %v55
    %v336 = vunpack.c.h.b16 %v55
    %v337 = vunpack.c.l.b16 %v56
    %v338 = vunpack.c.h.b16 %v56
    %v339 = vunpack.c.l.b16 %v57
    %v340 = vunpack.c.h.b16 %v57
    %v341 = vunpack.c.l.b16 %v58
    %v342 = vunpack.c.h.b16 %v58
    %v343 = vunpack.c.l.b16 %v59
    %v344 = vunpack.c.h.b16 %v59
    %v345 = vunpack.c.l.b16 %v60
    %v346 = vunpack.c.h.b16 %v60
    %v347 = vunpack.c.l.b16 %v61
    %v348 = vunpack.c.h.b16 %v61
    %v349 = vunpack.c.l.b16 %v62
    %v350 = vunpack.c.h.b16 %v62
    %v351 = vunpack.c.l.b16 %v63
    %v352 = vunpack.c.h.b16 %v63
    %v353 = vunpack.c.l.b16 %v64
    %v354 = vunpack.c.h.b16 %v64
    %v355 = vunpack.c.l.b16 %v65
    %v356 = vunpack.c.h.b16 %v65
    %v357 = vunpack.c.l.b16 %v66
    %v358 = vunpack.c.h.b16 %v66
    %v359 = vunpack.c.l.b16 %v67
    %v360 = vunpack.c.h.b16 %v67
    %v361 = vunpack.c.l.b16 %v68
    %v362 = vunpack.c.h.b16 %v68
    %v363 = vunpack.c.l.b16 %v69
    %v364 = vunpack.c.h.b16 %v69
    %v365 = vunpack.c.l.b16 %v70
    %v366 = vunpack.c.h.b16 %v70
    %v367 = vunpack.c.l.b16 %v71
    %v368 = vunpack.c.h.b16 %v71
    %v369 = vunpack.c.l.b16 %v72
    %v370 = vunpack.c.h.b16 %v72
    %v371 = vunpack.c.l.b16 %v73
    %v372 = vunpack.c.h.b16 %v73
    %v373 = vunpack.c.l.b16 %v74
    %v374 = vunpack.c.h.b16 %v74
    %v375 = vunpack.c.l.b16 %v75
    %v376 = vunpack.c.h.b16 %v75
    %v377 = vunpack.c.l.b16 %v76
    %v378 = vunpack.c.h.b16 %v76
    %v379 = vunpack.c.l.b16 %v77
    %v380 = vunpack.c.h.b16 %v77
    %v381 = vunpack.c.l.b16 %v78
    %v382 = vunpack.c.h.b16 %v78
    %v383 = vunpack.c.l.b16 %v79
    %v384 = vunpack.c.h.b16 %v79
    %v385 = vunpack.c.l.b16 %v80
    %v386 = vunpack.c.h.b16 %v80
    %v387 = vunpack.c.l.b16 %v81
    %v388 = vunpack.c.h.b16 %v81
    %v389 = vunpack.c.l.b16 %v82
    %v390 = vunpack.c.h.b16 %v82
    %v391 = vunpack.c.l.b16 %v83
    %v392 = vunpack.c.h.b16 %v83
    %v393 = vunpack.c.l.b16 %v84
    %v394 = vunpack.c.h.b16 %v84
    %v395 = vunpack.c.l.b16 %v85
    %v396 = vunpack.c.h.b16 %v85
    %v397 = vunpack.c.l.b16 %v86
    %v398 = vunpack.c.h.b16 %v86
    %v399 = vunpack.c.l.b16 %v87
    %v400 = vunpack.c.h.b16 %v87
    %v401 = vunpack.c.l.b16 %v88
    %v402 = vunpack.c.h.b16 %v88
    %v403 = vunpack.c.l.b16 %v89
    %v404 = vunpack.c.h.b16 %v89
    %v405 = vunpack.c.l.b16 %v90
    %v406 = vunpack.c.h.b16 %v90
    %v407 = vunpack.c.l.b16 %v91
    %v408 = vunpack.c.h.b16 %v91
    %v409 = vunpack.c.l.b16 %v92
    %v410 = vunpack.c.h.b16 %v92
    %v411 = vunpack.c.l.b16 %v93
    %v412 = vunpack.c.h.b16 %v93
    %v413 = vunpack.c.l.b16 %v94
    %v414 = vunpack.c.h.b16 %v94
    %v415 = vunpack.c.l.b16 %v95
    %v416 = vunpack.c.h.b16 %v95
    %v417 = vunpack.c.l.b16 %v96
    %v418 = vunpack.c.h.b16 %v96
    %v419 = vunpack.c.l.b16 %v97
    %v420 = vunpack.c.h.b16 %v97
    %v421 = vunpack.c.l.b16 %v98
    %v422 = vunpack.c.h.b16 %v98
    %v423 = vunpack.c.l.b16 %v99
    %v424 = vunpack.c.h.b16 %v99
    %v425 = vunpack.c.l.b16 %v100
    %v426 = vunpack.c.h.b16 %v100
    %v427 = vunpack.c.l.b16 %v101
    %v428 = vunpack.c.h.b16 %v101
    %v429 = vunpack.c.l.b16 %v102
    %v430 = vunpack.c.h.b16 %v102
    %v431 = vunpack.c.l.b16 %v103
    %v432 = vunpack.c.h.b16 %v103
    %v433 = vunpack.c.l.b16 %v104
    %v434 = vunpack.c.h.b16 %v104
    %v435 = vunpack.c.l.b16 %v105
    %v436 = vunpack.c.h.b16 %v105
    %v437 = vunpack.c.l.b16 %v106
    %v438 = vunpack.c.h.b16 %v106
    %v439 = vunpack.c.l.b16 %v107
    %v440 = vunpack.c.h.b16 %v107
    %v441 = vunpack.c.l.b16 %v108
    %v442 = vunpack.c.h.b16 %v108
    %v443 = vunpack.c.l.b16 %v109
    %v444 = vunpack.c.h.b16 %v109
    %v445 = vunpack.c.l.b16 %v110
    %v446 = vunpack.c.h.b16 %v110
    %v447 = vunpack.c.l.b16 %v111
    %v448 = vunpack.c.h.b16 %v111
    %v449 = vunpack.c.l.b16 %v112
    %v450 = vunpack.c.h.b16 %v112
    %v451 = vunpack.c.l.b16 %v113
    %v452 = vunpack.c.h.b16 %v113
    %v453 = vunpack.c.l.b16 %v114
    %v454 = vunpack.c.h.b16 %v114
    %v455 = vunpack.c.l.b16 %v115
    %v456 = vunpack.c.h.b16 %v115
    %v457 = vunpack.c.l.b16 %v116
    %v458 = vunpack.c.h.b16 %v116
    %v459 = vunpack.c.l.b16 %v117
    %v460 = vunpack.c.h.b16 %v117
    %v461 = vunpack.c.l.b16 %v118
    %v462 = vunpack.c.h.b16 %v118
    %v463 = vunpack.c.l.b16 %v119
    %v464 = vunpack.c.h.b16 %v119
    %v465 = vunpack.c.l.b16 %v120
    %v466 = vunpack.c.h.b16 %v120
    %v467 = vunpack.c.l.b16 %v121
    %v468 = vunpack.c.h.b16 %v121
    %v469 = vunpack.c.l.b16 %v122
    %v470 = vunpack.c.h.b16 %v122
    %v471 = vunpack.c.l.b16 %v123
    %v472 = vunpack.c.h.b16 %v123
    %v473 = vunpack.c.l.b16 %v124
    %v474 = vunpack.c.h.b16 %v124
    %v475 = vunpack.c.l.b16 %v125
    %v476 = vunpack.c.h.b16 %v125
    %v477 = vunpack.c.l.b16 %v126
    %v478 = vunpack.c.h.b16 %v126
    %v479 = vunpack.c.l.b16 %v127
    %v480 = vunpack.c.h.b16 %v127
    %v481 = vunpack.c.l.b16 %v128
    %v482 = vunpack.c.h.b16 %v128
    %v483 = vunpack.c.l.b16 %v129
    %v484 = vunpack.c.h.b16 %v129
    %v485 = vunpack.c.l.b16 %v130
    %v486 = vunpack.c.h.b16 %v130
    %v487 = vunpack.c.l.b16 %v131
    %v488 = vunpack.c.h.b16 %v131
    %v489 = vunpack.c.l.b16 %v132
    %v490 = vunpack.c.h.b16 %v132
    %v491 = vunpack.c.l.b16 %v133
    %v492 = vunpack.c.h.b16 %v133
    %v493 = vunpack.c.l.b16 %v134
    %v494 = vunpack.c.h.b16 %v134
    %v495 = vunpack.c.l.b16 %v135
    %v496 = vunpack.c.h.b16 %v135
    %v497 = vunpack.c.l.b16 %v136
    %v498 = vunpack.c.h.b16 %v136
    %v499 = vunpack.c.l.b16 %v137
    %v500 = vunpack.c.h.b16 %v137
    %v501 = vunpack.c.l.b16 %v138
    %v502 = vunpack.c.h.b16 %v138
    %v503 = vunpack.c.l.b16 %v139
    %v504 = vunpack.c.h.b16 %v139
    %v505 = vunpack.c.l.b16 %v140
    %v506 = vunpack.c.h.b16 %v140
    %v507 = vunpack.c.l.b16 %v141
    %v508 = vunpack.c.h.b16 %v141
    %v509 = vunpack.c.l.b16 %v142
    %v510 = vunpack.c.h.b16 %v142
    %v511 = vunpack.c.l.b16 %v143
    %v512 = vunpack.c.h.b16 %v143
    %v513 = vunpack.c.l.b16 %v144
    %v514 = vunpack.c.h.b16 %v144
    %v515 = vunpack.c.l.b16 %v145
    %v516 = vunpack.c.h.b16 %v145
    %v517 = vunpack.c.l.b16 %v146
    %v518 = vunpack.c.h.b16 %v146
    %v519 = vunpack.c.l.b16 %v147
    %v520 = vunpack.c.h.b16 %v147
    %v521 = vunpack.c.l.b16 %v148
    %v522 = vunpack.c.h.b16 %v148
    %v523 = vunpack.c.l.b16 %v149
    %v524 = vunpack.c.h.b16 %v149
    %v525 = vunpack.c.l.b16 %v150
    %v526 = vunpack.c.h.b16 %v150
    %v527 = vunpack.c.l.b16 %v151
    %v528 = vunpack.c.h.b16 %v151
    %v529 = vunpack.c.l.b16 %v152
    %v530 = vunpack.c.h.b16 %v152
    %v531 = vunpack.c.l.b16 %v153
    %v532 = vunpack.c.h.b16 %v153
    %v533 = vunpack.c.l.b16 %v154
    %v534 = vunpack.c.h.b16 %v154
    %v535 = vunpack.c.l.b16 %v155
    %v536 = vunpack.c.h.b16 %v155
    %v537 = vunpack.c.l.b16 %v156
    %v538 = vunpack.c.h.b16 %v156
    %v539 = vunpack.c.l.b16 %v157
    %v540 = vunpack.c.h.b16 %v157
    %v541 = vunpack.c.l.b16 %v158
    %v542 = vunpack.c.h.b16 %v158
    %v543 = vpack.c.b16 %v303, %v287
    %v544 = vpack.c.b16 %v304, %v288
    %v545 = vpack.c.b16 %v305, %v289
    %v546 = vpack.c.b16 %v306, %v290
    %v547 = vpack.c.b16 %v307, %v291
    %v548 = vpack.c.b16 %v308, %v292
    %v549 = vpack.c.b16 %v309, %v293
    %v550 = vpack.c.b16 %v310, %v294
    %v551 = vpack.c.b16 %v311, %v295
    %v552 = vpack.c.b16 %v312, %v296
    %v553 = vpack.c.b16 %v313, %v297
    %v554 = vpack.c.b16 %v314, %v298
    %v555 = vpack.c.b16 %v315, %v299
    %v556 = vpack.c.b16 %v316, %v300
    %v557 = vpack.c.b16 %v317, %v301
    %v558 = vpack.c.b16 %v318, %v302
    %v559 = vpack.c.b16 %v335, %v319
    %v560 = vpack.c.b16 %v336, %v320
    %v561 = vpack.c.b16 %v337, %v321
    %v562 = vpack.c.b16 %v338, %v322
    %v563 = vpack.c.b16 %v339, %v323
    %v564 = vpack.c.b16 %v340, %v324
    %v565 = vpack.c.b16 %v341, %v325
    %v566 = vpack.c.b16 %v342, %v326
    %v567 = vpack.c.b16 %v343, %v327
    %v568 = vpack.c.b16 %v344, %v328
    %v569 = vpack.c.b16 %v345, %v329
    %v570 = vpack.c.b16 %v346, %v330
    %v571 = vpack.c.b16 %v347, %v331
    %v572 = vpack.c.b16 %v348, %v332
    %v573 = vpack.c.b16 %v349, %v333
    %v574 = vpack.c.b16 %v350, %v334
    %v575 = vpack.c.b16 %v367, %v351
    %v576 = vpack.c.b16 %v368, %v352
    %v577 = vpack.c.b16 %v369, %v353
    %v578 = vpack.c.b16 %v370, %v354
    %v579 = vpack.c.b16 %v371, %v355
    %v580 = vpack.c.b16 %v372, %v356
    %v581 = vpack.c.b16 %v373, %v357
    %v582 = vpack.c.b16 %v374, %v358
    %v583 = vpack.c.b16 %v375, %v359
    %v584 = vpack.c.b16 %v376, %v360
    %v585 = vpack.c.b16 %v377, %v361
    %v586 = vpack.c.b16 %v378, %v362
    %v587 = vpack.c.b16 %v379, %v363
    %v588 = vpack.c.b16 %v380, %v364
    %v589 = vpack.c.b16 %v381, %v365
    %v590 = vpack.c.b16 %v382, %v366
    %v591 = vpack.c.b16 %v399, %v383
    %v592 = vpack.c.b16 %v400, %v384
    %v593 = vpack.c.b16 %v401, %v385
    %v594 = vpack.c.b16 %v402, %v386
    %v595 = vpack.c.b16 %v403, %v387
    %v596 = vpack.c.b16 %v404, %v388
    %v597 = vpack.c.b16 %v405, %v389
    %v598 = vpack.c.b16 %v406, %v390
    %v599 = vpack.c.b16 %v407, %v391
    %v600 = vpack.c.b16 %v408, %v392
    %v601 = vpack.c.b16 %v409, %v393
    %v602 = vpack.c.b16 %v410, %v394
    %v603 = vpack.c.b16 %v411, %v395
    %v604 = vpack.c.b16 %v412, %v396
    %v605 = vpack.c.b16 %v413, %v397
    %v606 = vpack.c.b16 %v414, %v398
    %v607 = vpack.c.b16 %v431, %v415
    %v608 = vpack.c.b16 %v432, %v416
    %v609 = vpack.c.b16 %v433, %v417
    %v610 = vpack.c.b16 %v434, %v418
    %v611 = vpack.c.b16 %v435, %v419
    %v612 = vpack.c.b16 %v436, %v420
    %v613 = vpack.c.b16 %v437, %v421
    %v614 = vpack.c.b16 %v438, %v422
    %v615 = vpack.c.b16 %v439, %v423
    %v616 = vpack.c.b16 %v440, %v424
    %v617 = vpack.c.b16 %v441, %v425
    %v618 = vpack.c.b16 %v442, %v426
    %v619 = vpack.c.b16 %v443, %v427
    %v620 = vpack.c.b16 %v444, %v428
    %v621 = vpack.c.b16 %v445, %v429
    %v622 = vpack.c.b16 %v446, %v430
    %v623 = vpack.c.b16 %v463, %v447
    %v624 = vpack.c.b16 %v464, %v448
    %v625 = vpack.c.b16 %v465, %v449
    %v626 = vpack.c.b16 %v466, %v450
    %v627 = vpack.c.b16 %v467, %v451
    %v628 = vpack.c.b16 %v468, %v452
    %v629 = vpack.c.b16 %v469, %v453
    %v630 = vpack.c.b16 %v470, %v454
    %v631 = vpack.c.b16 %v471, %v455
    %v632 = vpack.c.b16 %v472, %v456
    %v633 = vpack.c.b16 %v473, %v457
    %v634 = vpack.c.b16 %v474, %v458
    %v635 = vpack.c.b16 %v475, %v459
    %v636 = vpack.c.b16 %v476, %v460
    %v637 = vpack.c.b16 %v477, %v461
    %v638 = vpack.c.b16 %v478, %v462
    %v639 = vpack.c.b16 %v495, %v479
    %v640 = vpack.c.b16 %v496, %v480
    %v641 = vpack.c.b16 %v497, %v481
    %v642 = vpack.c.b16 %v498, %v482
    %v643 = vpack.c.b16 %v499, %v483
    %v644 = vpack.c.b16 %v500, %v484
    %v645 = vpack.c.b16 %v501, %v485
    %v646 = vpack.c.b16 %v502, %v486
    %v647 = vpack.c.b16 %v503, %v487
    %v648 = vpack.c.b16 %v504, %v488
    %v649 = vpack.c.b16 %v505, %v489
    %v650 = vpack.c.b16 %v506, %v490
    %v651 = vpack.c.b16 %v507, %v491
    %v652 = vpack.c.b16 %v508, %v492
    %v653 = vpack.c.b16 %v509, %v493
    %v654 = vpack.c.b16 %v510, %v494
    %v655 = vpack.c.b16 %v527, %v511
    %v656 = vpack.c.b16 %v528, %v512
    %v657 = vpack.c.b16 %v529, %v513
    %v658 = vpack.c.b16 %v530, %v514
    %v659 = vpack.c.b16 %v531, %v515
    %v660 = vpack.c.b16 %v532, %v516
    %v661 = vpack.c.b16 %v533, %v517
    %v662 = vpack.c.b16 %v534, %v518
    %v663 = vpack.c.b16 %v535, %v519
    %v664 = vpack.c.b16 %v536, %v520
    %v665 = vpack.c.b16 %v537, %v521
    %v666 = vpack.c.b16 %v538, %v522
    %v667 = vpack.c.b16 %v539, %v523
    %v668 = vpack.c.b16 %v540, %v524
    %v669 = vpack.c.b16 %v541, %v525
    %v670 = vpack.c.b16 %v542, %v526
    %799 = vmatpush.bf16.msra.mxu0 %v655
    %800 = vmatpush.bf16.msra.mxu0 %v639
    %801 = vmatpush.bf16.msra.mxu0 %v623
    %802 = vmatpush.bf16.msra.mxu0 %v607
    %803 = vmatpush.bf16.msra.mxu0 %v591
    %804 = vmatpush.bf16.msra.mxu0 %v575
    %805 = vmatpush.bf16.msra.mxu0 %v559
    %806 = vmatpush.bf16.msra.mxu0 %v543
    %807 = vmatmul.bf16.gmra.mxu0 %v30
    %v808 = vpop.f32.mrf.mxu0
    %v809 = vadd.f32 0.0, %v808
    %v810 = vpop.f32.mrf.mxu0
    %811 = vdwg.mxu0
    %812 = vmatpush.bf16.msra.mxu0 %v656
    %813 = vmatpush.bf16.msra.mxu0 %v640
    %814 = vmatpush.bf16.msra.mxu0 %v624
    %815 = vmatpush.bf16.msra.mxu0 %v608
    %816 = vmatpush.bf16.msra.mxu0 %v592
    %817 = vmatpush.bf16.msra.mxu0 %v576
    %818 = vmatpush.bf16.msra.mxu0 %v560
    %819 = vmatpush.bf16.msra.mxu0 %v544
    %820 = vmatmul.bf16.gmra.mxu0 %v30
    %v821 = vpop.f32.mrf.mxu0
    %v822 = vadd.f32 0.0, %v821
    %v823 = vpop.f32.mrf.mxu0
    %824 = vdwg.mxu0
    %825 = vmatpush.bf16.msra.mxu0 %v657
    %826 = vmatpush.bf16.msra.mxu0 %v641
    %827 = vmatpush.bf16.msra.mxu0 %v625
    %828 = vmatpush.bf16.msra.mxu0 %v609
    %829 = vmatpush.bf16.msra.mxu0 %v593
    %830 = vmatpush.bf16.msra.mxu0 %v577
    %831 = vmatpush.bf16.msra.mxu0 %v561
    %832 = vmatpush.bf16.msra.mxu0 %v545
    %833 = vmatmul.bf16.gmra.mxu0 %v30
    %v834 = vpop.f32.mrf.mxu0
    %v835 = vadd.f32 0.0, %v834
    %v836 = vpop.f32.mrf.mxu0
    %837 = vdwg.mxu0
    %838 = vmatpush.bf16.msra.mxu0 %v658
    %839 = vmatpush.bf16.msra.mxu0 %v642
    %840 = vmatpush.bf16.msra.mxu0 %v626
    %841 = vmatpush.bf16.msra.mxu0 %v610
    %842 = vmatpush.bf16.msra.mxu0 %v594
    %843 = vmatpush.bf16.msra.mxu0 %v578
    %844 = vmatpush.bf16.msra.mxu0 %v562
    %845 = vmatpush.bf16.msra.mxu0 %v546
    %846 = vmatmul.bf16.gmra.mxu0 %v30
    %v847 = vpop.f32.mrf.mxu0
    %v848 = vadd.f32 0.0, %v847
    %v849 = vpop.f32.mrf.mxu0
    %850 = vdwg.mxu0
    %851 = vmatpush.bf16.msra.mxu0 %v659
    %852 = vmatpush.bf16.msra.mxu0 %v643
    %853 = vmatpush.bf16.msra.mxu0 %v627
    %854 = vmatpush.bf16.msra.mxu0 %v611
    %855 = vmatpush.bf16.msra.mxu0 %v595
    %856 = vmatpush.bf16.msra.mxu0 %v579
    %857 = vmatpush.bf16.msra.mxu0 %v563
    %858 = vmatpush.bf16.msra.mxu0 %v547
    %859 = vmatmul.bf16.gmra.mxu0 %v30
    %v860 = vpop.f32.mrf.mxu0
    %v861 = vadd.f32 0.0, %v860
    %v862 = vpop.f32.mrf.mxu0
    %863 = vdwg.mxu0
    %864 = vmatpush.bf16.msra.mxu0 %v660
    %865 = vmatpush.bf16.msra.mxu0 %v644
    %866 = vmatpush.bf16.msra.mxu0 %v628
    %867 = vmatpush.bf16.msra.mxu0 %v612
    %868 = vmatpush.bf16.msra.mxu0 %v596
    %869 = vmatpush.bf16.msra.mxu0 %v580
    %870 = vmatpush.bf16.msra.mxu0 %v564
    %871 = vmatpush.bf16.msra.mxu0 %v548
    %872 = vmatmul.bf16.gmra.mxu0 %v30
    %v873 = vpop.f32.mrf.mxu0
    %v874 = vadd.f32 0.0, %v873
    %v875 = vpop.f32.mrf.mxu0
    %876 = vdwg.mxu0
    %877 = vmatpush.bf16.msra.mxu0 %v661
    %878 = vmatpush.bf16.msra.mxu0 %v645
    %879 = vmatpush.bf16.msra.mxu0 %v629
    %880 = vmatpush.bf16.msra.mxu0 %v613
    %881 = vmatpush.bf16.msra.mxu0 %v597
    %882 = vmatpush.bf16.msra.mxu0 %v581
    %883 = vmatpush.bf16.msra.mxu0 %v565
    %884 = vmatpush.bf16.msra.mxu0 %v549
    %885 = vmatmul.bf16.gmra.mxu0 %v30
    %v886 = vpop.f32.mrf.mxu0
    %v887 = vadd.f32 0.0, %v886
    %v888 = vpop.f32.mrf.mxu0
    %889 = vdwg.mxu0
    %890 = vmatpush.bf16.msra.mxu0 %v662
    %891 = vmatpush.bf16.msra.mxu0 %v646
    %892 = vmatpush.bf16.msra.mxu0 %v630
    %893 = vmatpush.bf16.msra.mxu0 %v614
    %894 = vmatpush.bf16.msra.mxu0 %v598
    %895 = vmatpush.bf16.msra.mxu0 %v582
    %896 = vmatpush.bf16.msra.mxu0 %v566
    %897 = vmatpush.bf16.msra.mxu0 %v550
    %898 = vmatmul.bf16.gmra.mxu0 %v30
    %v899 = vpop.f32.mrf.mxu0
    %v900 = vadd.f32 0.0, %v899
    %v901 = vpop.f32.mrf.mxu0
    %902 = vdwg.mxu0
    %903 = vmatpush.bf16.msra.mxu0 %v663
    %904 = vmatpush.bf16.msra.mxu0 %v647
    %905 = vmatpush.bf16.msra.mxu0 %v631
    %906 = vmatpush.bf16.msra.mxu0 %v615
    %907 = vmatpush.bf16.msra.mxu0 %v599
    %908 = vmatpush.bf16.msra.mxu0 %v583
    %909 = vmatpush.bf16.msra.mxu0 %v567
    %910 = vmatpush.bf16.msra.mxu0 %v551
    %911 = vmatmul.bf16.gmra.mxu0 %v30
    %v912 = vpop.f32.mrf.mxu0
    %v913 = vadd.f32 0.0, %v912
    %v914 = vpop.f32.mrf.mxu0
    %915 = vdwg.mxu0
    %916 = vmatpush.bf16.msra.mxu0 %v664
    %917 = vmatpush.bf16.msra.mxu0 %v648
    %918 = vmatpush.bf16.msra.mxu0 %v632
    %919 = vmatpush.bf16.msra.mxu0 %v616
    %920 = vmatpush.bf16.msra.mxu0 %v600
    %921 = vmatpush.bf16.msra.mxu0 %v584
    %922 = vmatpush.bf16.msra.mxu0 %v568
    %923 = vmatpush.bf16.msra.mxu0 %v552
    %924 = vmatmul.bf16.gmra.mxu0 %v30
    %v925 = vpop.f32.mrf.mxu0
    %v926 = vadd.f32 0.0, %v925
    %v927 = vpop.f32.mrf.mxu0
    %928 = vdwg.mxu0
    %929 = vmatpush.bf16.msra.mxu0 %v665
    %930 = vmatpush.bf16.msra.mxu0 %v649
    %931 = vmatpush.bf16.msra.mxu0 %v633
    %932 = vmatpush.bf16.msra.mxu0 %v617
    %933 = vmatpush.bf16.msra.mxu0 %v601
    %934 = vmatpush.bf16.msra.mxu0 %v585
    %935 = vmatpush.bf16.msra.mxu0 %v569
    %936 = vmatpush.bf16.msra.mxu0 %v553
    %937 = vmatmul.bf16.gmra.mxu0 %v30
    %v938 = vpop.f32.mrf.mxu0
    %v939 = vadd.f32 0.0, %v938
    %v940 = vpop.f32.mrf.mxu0
    %941 = vdwg.mxu0
    %942 = vmatpush.bf16.msra.mxu0 %v666
    %943 = vmatpush.bf16.msra.mxu0 %v650
    %944 = vmatpush.bf16.msra.mxu0 %v634
    %945 = vmatpush.bf16.msra.mxu0 %v618
    %946 = vmatpush.bf16.msra.mxu0 %v602
    %947 = vmatpush.bf16.msra.mxu0 %v586
    %948 = vmatpush.bf16.msra.mxu0 %v570
    %949 = vmatpush.bf16.msra.mxu0 %v554
    %950 = vmatmul.bf16.gmra.mxu0 %v30
    %v951 = vpop.f32.mrf.mxu0
    %v952 = vadd.f32 0.0, %v951
    %v953 = vpop.f32.mrf.mxu0
    %954 = vdwg.mxu0
    %955 = vmatpush.bf16.msra.mxu0 %v667
    %956 = vmatpush.bf16.msra.mxu0 %v651
    %957 = vmatpush.bf16.msra.mxu0 %v635
    %958 = vmatpush.bf16.msra.mxu0 %v619
    %959 = vmatpush.bf16.msra.mxu0 %v603
    %960 = vmatpush.bf16.msra.mxu0 %v587
    %961 = vmatpush.bf16.msra.mxu0 %v571
    %962 = vmatpush.bf16.msra.mxu0 %v555
    %963 = vmatmul.bf16.gmra.mxu0 %v30
    %v964 = vpop.f32.mrf.mxu0
    %v965 = vadd.f32 0.0, %v964
    %v966 = vpop.f32.mrf.mxu0
    %967 = vdwg.mxu0
    %968 = vmatpush.bf16.msra.mxu0 %v668
    %969 = vmatpush.bf16.msra.mxu0 %v652
    %970 = vmatpush.bf16.msra.mxu0 %v636
    %971 = vmatpush.bf16.msra.mxu0 %v620
    %972 = vmatpush.bf16.msra.mxu0 %v604
    %973 = vmatpush.bf16.msra.mxu0 %v588
    %974 = vmatpush.bf16.msra.mxu0 %v572
    %975 = vmatpush.bf16.msra.mxu0 %v556
    %976 = vmatmul.bf16.gmra.mxu0 %v30
    %v977 = vpop.f32.mrf.mxu0
    %v978 = vadd.f32 0.0, %v977
    %v979 = vpop.f32.mrf.mxu0
    %980 = vdwg.mxu0
    %981 = vmatpush.bf16.msra.mxu0 %v669
    %982 = vmatpush.bf16.msra.mxu0 %v653
    %983 = vmatpush.bf16.msra.mxu0 %v637
    %984 = vmatpush.bf16.msra.mxu0 %v621
    %985 = vmatpush.bf16.msra.mxu0 %v605
    %986 = vmatpush.bf16.msra.mxu0 %v589
    %987 = vmatpush.bf16.msra.mxu0 %v573
    %988 = vmatpush.bf16.msra.mxu0 %v557
    %989 = vmatmul.bf16.gmra.mxu0 %v30
    %v990 = vpop.f32.mrf.mxu0
    %v991 = vadd.f32 0.0, %v990
    %v992 = vpop.f32.mrf.mxu0
    %993 = vdwg.mxu0
    %994 = vmatpush.bf16.msra.mxu0 %v670
    %995 = vmatpush.bf16.msra.mxu0 %v654
    %996 = vmatpush.bf16.msra.mxu0 %v638
    %997 = vmatpush.bf16.msra.mxu0 %v622
    %998 = vmatpush.bf16.msra.mxu0 %v606
    %999 = vmatpush.bf16.msra.mxu0 %v590
    %1000 = vmatpush.bf16.msra.mxu0 %v574
    %1001 = vmatpush.bf16.msra.mxu0 %v558
    %1002 = vmatmul.bf16.gmra.mxu0 %v30
    %v1003 = vpop.f32.mrf.mxu0
    %v1004 = vadd.f32 0.0, %v1003
    %v1005 = vpop.f32.mrf.mxu0
    %1006 = vdwg.mxu0
    %p1007 = scmp.eq.s32.totalorder 0, 0
    // Predicated region
    $region14: #{generator_forward.7} parent=1 // pred_check
      %p1008 = pneg %p1007
    $region15: #{generator_forward.7} parent=1 // pred_check_branch
      %1010 = sbr.rel (%p1008) target = $region17
    $region16: #{generator_forward.7} parent=1 // pred_region
      %1011 = vst [vmem:[%s3] sm:$0xff] 0.0
      %1012 = vst [vmem:[%s3 + $0x8] sm:$0xff] 0.0
      %1013 = vst [vmem:[%s4] sm:$0xff] 0.0
      %1014 = vst [vmem:[%s4 + $0x8] sm:$0xff] 0.0
    $region17: #{generator_forward.7} parent=1 // pred_fallthru
      _
    %v1015 = vld [vmem:[%s3] sm:$0xff]
    %v1016 = vld [vmem:[%s3 + $0x8] sm:$0xff]
    %vm1017 = vcmask 1041408
    %v1018 = vsel %vm1017, %v809, 0.0
    %v1019 = vrot.slane %v1018, 4
    %v1020 = vadd.f32 %v1018, %v1019
    %v1021 = vrot.slane %v1020, 2
    %v1022 = vadd.f32 %v1020, %v1021
    %v1023 = vrot.slane %v1022, 1
    %v1024 = vadd.f32 %v1022, %v1023
    %v1025 = vsel %vm1017, %v822, 0.0
    %v1026 = vrot.slane %v1025, 4
    %v1027 = vadd.f32 %v1025, %v1026
    %v1028 = vrot.slane %v1027, 2
    %v1029 = vadd.f32 %v1027, %v1028
    %v1030 = vrot.slane %v1029, 1
    %v1031 = vadd.f32 %v1029, %v1030
    %v1032 = vsel %vm1017, %v835, 0.0
    %v1033 = vrot.slane %v1032, 4
    %v1034 = vadd.f32 %v1032, %v1033
    %v1035 = vrot.slane %v1034, 2
    %v1036 = vadd.f32 %v1034, %v1035
    %v1037 = vrot.slane %v1036, 1
    %v1038 = vadd.f32 %v1036, %v1037
    %v1039 = vsel %vm1017, %v848, 0.0
    %v1040 = vrot.slane %v1039, 4
    %v1041 = vadd.f32 %v1039, %v1040
    %v1042 = vrot.slane %v1041, 2
    %v1043 = vadd.f32 %v1041, %v1042
    %v1044 = vrot.slane %v1043, 1
    %v1045 = vadd.f32 %v1043, %v1044
    %v1046 = vsel %vm1017, %v861, 0.0
    %v1047 = vrot.slane %v1046, 4
    %v1048 = vadd.f32 %v1046, %v1047
    %v1049 = vrot.slane %v1048, 2
    %v1050 = vadd.f32 %v1048, %v1049
    %v1051 = vrot.slane %v1050, 1
    %v1052 = vadd.f32 %v1050, %v1051
    %v1053 = vsel %vm1017, %v874, 0.0
    %v1054 = vrot.slane %v1053, 4
    %v1055 = vadd.f32 %v1053, %v1054
    %v1056 = vrot.slane %v1055, 2
    %v1057 = vadd.f32 %v1055, %v1056
    %v1058 = vrot.slane %v1057, 1
    %v1059 = vadd.f32 %v1057, %v1058
    %v1060 = vsel %vm1017, %v887, 0.0
    %v1061 = vrot.slane %v1060, 4
    %v1062 = vadd.f32 %v1060, %v1061
    %v1063 = vrot.slane %v1062, 2
    %v1064 = vadd.f32 %v1062, %v1063
    %v1065 = vrot.slane %v1064, 1
    %v1066 = vadd.f32 %v1064, %v1065
    %v1067 = vsel %vm1017, %v900, 0.0
    %v1068 = vrot.slane %v1067, 4
    %v1069 = vadd.f32 %v1067, %v1068
    %v1070 = vrot.slane %v1069, 2
    %v1071 = vadd.f32 %v1069, %v1070
    %v1072 = vrot.slane %v1071, 1
    %v1073 = vadd.f32 %v1071, %v1072
    %v1074 = vsel %vm1017, %v913, 0.0
    %v1075 = vrot.slane %v1074, 4
    %v1076 = vadd.f32 %v1074, %v1075
    %v1077 = vrot.slane %v1076, 2
    %v1078 = vadd.f32 %v1076, %v1077
    %v1079 = vrot.slane %v1078, 1
    %v1080 = vadd.f32 %v1078, %v1079
    %v1081 = vsel %vm1017, %v926, 0.0
    %v1082 = vrot.slane %v1081, 4
    %v1083 = vadd.f32 %v1081, %v1082
    %v1084 = vrot.slane %v1083, 2
    %v1085 = vadd.f32 %v1083, %v1084
    %v1086 = vrot.slane %v1085, 1
    %v1087 = vadd.f32 %v1085, %v1086
    %v1088 = vsel %vm1017, %v939, 0.0
    %v1089 = vrot.slane %v1088, 4
    %v1090 = vadd.f32 %v1088, %v1089
    %v1091 = vrot.slane %v1090, 2
    %v1092 = vadd.f32 %v1090, %v1091
    %v1093 = vrot.slane %v1092, 1
    %v1094 = vadd.f32 %v1092, %v1093
    %v1095 = vsel %vm1017, %v952, 0.0
    %v1096 = vrot.slane %v1095, 4
    %v1097 = vadd.f32 %v1095, %v1096
    %v1098 = vrot.slane %v1097, 2
    %v1099 = vadd.f32 %v1097, %v1098
    %v1100 = vrot.slane %v1099, 1
    %v1101 = vadd.f32 %v1099, %v1100
    %v1102 = vsel %vm1017, %v965, 0.0
    %v1103 = vrot.slane %v1102, 4
    %v1104 = vadd.f32 %v1102, %v1103
    %v1105 = vrot.slane %v1104, 2
    %v1106 = vadd.f32 %v1104, %v1105
    %v1107 = vrot.slane %v1106, 1
    %v1108 = vadd.f32 %v1106, %v1107
    %v1109 = vsel %vm1017, %v978, 0.0
    %v1110 = vrot.slane %v1109, 4
    %v1111 = vadd.f32 %v1109, %v1110
    %v1112 = vrot.slane %v1111, 2
    %v1113 = vadd.f32 %v1111, %v1112
    %v1114 = vrot.slane %v1113, 1
    %v1115 = vadd.f32 %v1113, %v1114
    %v1116 = vsel %vm1017, %v991, 0.0
    %v1117 = vrot.slane %v1116, 4
    %v1118 = vadd.f32 %v1116, %v1117
    %v1119 = vrot.slane %v1118, 2
    %v1120 = vadd.f32 %v1118, %v1119
    %v1121 = vrot.slane %v1120, 1
    %v1122 = vadd.f32 %v1120, %v1121
    %v1123 = vsel %vm1017, %v1004, 0.0
    %v1124 = vrot.slane %v1123, 4
    %v1125 = vadd.f32 %v1123, %v1124
    %v1126 = vrot.slane %v1125, 2
    %v1127 = vadd.f32 %v1125, %v1126
    %v1128 = vrot.slane %v1127, 1
    %v1129 = vadd.f32 %v1127, %v1128
    %v1146 = vrot.slane %v1031, 7
    %v1147 = vrot.slane %v1038, 6
    %v1148 = vrot.slane %v1045, 5
    %v1149 = vrot.slane %v1052, 4
    %v1150 = vrot.slane %v1059, 3
    %v1151 = vrot.slane %v1066, 2
    %v1152 = vrot.slane %v1073, 1
    %v1153 = vrot.slane %v1087, 7
    %v1154 = vrot.slane %v1094, 6
    %v1155 = vrot.slane %v1101, 5
    %v1156 = vrot.slane %v1108, 4
    %v1157 = vrot.slane %v1115, 3
    %v1158 = vrot.slane %v1122, 2
    %v1159 = vrot.slane %v1129, 1
    %vm1160 = vcmask 1040384
    %v1161 = vsel %vm1160, %v1024, %v1146
    %vm1162 = vcmask 1042434
    %v1163 = vsel %vm1162, %v1147, %v1148
    %v1164 = vsel %vm1017, %v1161, %v1163
    %vm1165 = vcmask 1044484
    %v1166 = vsel %vm1165, %v1149, %v1150
    %vm1167 = vcmask 1046534
    %v1168 = vsel %vm1167, %v1151, %v1152
    %vm1169 = vcmask 1045508
    %v1170 = vsel %vm1169, %v1166, %v1168
    %vm1171 = vcmask 1043456
    %v1172 = vsel %vm1171, %v1164, %v1170
    %v1173 = vsel %vm1160, %v1080, %v1153
    %v1174 = vsel %vm1162, %v1154, %v1155
    %v1175 = vsel %vm1017, %v1173, %v1174
    %v1176 = vsel %vm1165, %v1156, %v1157
    %v1177 = vsel %vm1167, %v1158, %v1159
    %v1178 = vsel %vm1169, %v1176, %v1177
    %v1179 = vsel %vm1171, %v1175, %v1178
    %v1182 = vadd.f32 %v1015, %v1172
    %v1183 = vadd.f32 %v1016, %v1179
    %1184 = vst [vmem:[%s3] sm:$0xff] %v1182
    %1185 = vst [vmem:[%s3 + $0x8] sm:$0xff] %v1183
    %v1186 = vld [vmem:[%s4] sm:$0xff]
    %v1187 = vld [vmem:[%s4 + $0x8] sm:$0xff]
    %v1188 = vmul.f32 %v809, %v809
    %v1189 = vmul.f32 %v822, %v822
    %v1190 = vmul.f32 %v835, %v835
    %v1191 = vmul.f32 %v848, %v848
    %v1192 = vmul.f32 %v861, %v861
    %v1193 = vmul.f32 %v874, %v874
    %v1194 = vmul.f32 %v887, %v887
    %v1195 = vmul.f32 %v900, %v900
    %v1196 = vmul.f32 %v913, %v913
    %v1197 = vmul.f32 %v926, %v926
    %v1198 = vmul.f32 %v939, %v939
    %v1199 = vmul.f32 %v952, %v952
    %v1200 = vmul.f32 %v965, %v965
    %v1201 = vmul.f32 %v978, %v978
    %v1202 = vmul.f32 %v991, %v991
    %v1203 = vmul.f32 %v1004, %v1004
    %v1204 = vsel %vm1017, %v1188, 0.0
    %v1205 = vrot.slane %v1204, 4
    %v1206 = vadd.f32 %v1204, %v1205
    %v1207 = vrot.slane %v1206, 2
    %v1208 = vadd.f32 %v1206, %v1207
    %v1209 = vrot.slane %v1208, 1
    %v1210 = vadd.f32 %v1208, %v1209
    %v1211 = vsel %vm1017, %v1189, 0.0
    %v1212 = vrot.slane %v1211, 4
    %v1213 = vadd.f32 %v1211, %v1212
    %v1214 = vrot.slane %v1213, 2
    %v1215 = vadd.f32 %v1213, %v1214
    %v1216 = vrot.slane %v1215, 1
    %v1217 = vadd.f32 %v1215, %v1216
    %v1218 = vsel %vm1017, %v1190, 0.0
    %v1219 = vrot.slane %v1218, 4
    %v1220 = vadd.f32 %v1218, %v1219
    %v1221 = vrot.slane %v1220, 2
    %v1222 = vadd.f32 %v1220, %v1221
    %v1223 = vrot.slane %v1222, 1
    %v1224 = vadd.f32 %v1222, %v1223
    %v1225 = vsel %vm1017, %v1191, 0.0
    %v1226 = vrot.slane %v1225, 4
    %v1227 = vadd.f32 %v1225, %v1226
    %v1228 = vrot.slane %v1227, 2
    %v1229 = vadd.f32 %v1227, %v1228
    %v1230 = vrot.slane %v1229, 1
    %v1231 = vadd.f32 %v1229, %v1230
    %v1232 = vsel %vm1017, %v1192, 0.0
    %v1233 = vrot.slane %v1232, 4
    %v1234 = vadd.f32 %v1232, %v1233
    %v1235 = vrot.slane %v1234, 2
    %v1236 = vadd.f32 %v1234, %v1235
    %v1237 = vrot.slane %v1236, 1
    %v1238 = vadd.f32 %v1236, %v1237
    %v1239 = vsel %vm1017, %v1193, 0.0
    %v1240 = vrot.slane %v1239, 4
    %v1241 = vadd.f32 %v1239, %v1240
    %v1242 = vrot.slane %v1241, 2
    %v1243 = vadd.f32 %v1241, %v1242
    %v1244 = vrot.slane %v1243, 1
    %v1245 = vadd.f32 %v1243, %v1244
    %v1246 = vsel %vm1017, %v1194, 0.0
    %v1247 = vrot.slane %v1246, 4
    %v1248 = vadd.f32 %v1246, %v1247
    %v1249 = vrot.slane %v1248, 2
    %v1250 = vadd.f32 %v1248, %v1249
    %v1251 = vrot.slane %v1250, 1
    %v1252 = vadd.f32 %v1250, %v1251
    %v1253 = vsel %vm1017, %v1195, 0.0
    %v1254 = vrot.slane %v1253, 4
    %v1255 = vadd.f32 %v1253, %v1254
    %v1256 = vrot.slane %v1255, 2
    %v1257 = vadd.f32 %v1255, %v1256
    %v1258 = vrot.slane %v1257, 1
    %v1259 = vadd.f32 %v1257, %v1258
    %v1260 = vsel %vm1017, %v1196, 0.0
    %v1261 = vrot.slane %v1260, 4
    %v1262 = vadd.f32 %v1260, %v1261
    %v1263 = vrot.slane %v1262, 2
    %v1264 = vadd.f32 %v1262, %v1263
    %v1265 = vrot.slane %v1264, 1
    %v1266 = vadd.f32 %v1264, %v1265
    %v1267 = vsel %vm1017, %v1197, 0.0
    %v1268 = vrot.slane %v1267, 4
    %v1269 = vadd.f32 %v1267, %v1268
    %v1270 = vrot.slane %v1269, 2
    %v1271 = vadd.f32 %v1269, %v1270
    %v1272 = vrot.slane %v1271, 1
    %v1273 = vadd.f32 %v1271, %v1272
    %v1274 = vsel %vm1017, %v1198, 0.0
    %v1275 = vrot.slane %v1274, 4
    %v1276 = vadd.f32 %v1274, %v1275
    %v1277 = vrot.slane %v1276, 2
    %v1278 = vadd.f32 %v1276, %v1277
    %v1279 = vrot.slane %v1278, 1
    %v1280 = vadd.f32 %v1278, %v1279
    %v1281 = vsel %vm1017, %v1199, 0.0
    %v1282 = vrot.slane %v1281, 4
    %v1283 = vadd.f32 %v1281, %v1282
    %v1284 = vrot.slane %v1283, 2
    %v1285 = vadd.f32 %v1283, %v1284
    %v1286 = vrot.slane %v1285, 1
    %v1287 = vadd.f32 %v1285, %v1286
    %v1288 = vsel %vm1017, %v1200, 0.0
    %v1289 = vrot.slane %v1288, 4
    %v1290 = vadd.f32 %v1288, %v1289
    %v1291 = vrot.slane %v1290, 2
    %v1292 = vadd.f32 %v1290, %v1291
    %v1293 = vrot.slane %v1292, 1
    %v1294 = vadd.f32 %v1292, %v1293
    %v1295 = vsel %vm1017, %v1201, 0.0
    %v1296 = vrot.slane %v1295, 4
    %v1297 = vadd.f32 %v1295, %v1296
    %v1298 = vrot.slane %v1297, 2
    %v1299 = vadd.f32 %v1297, %v1298
    %v1300 = vrot.slane %v1299, 1
    %v1301 = vadd.f32 %v1299, %v1300
    %v1302 = vsel %vm1017, %v1202, 0.0
    %v1303 = vrot.slane %v1302, 4
    %v1304 = vadd.f32 %v1302, %v1303
    %v1305 = vrot.slane %v1304, 2
    %v1306 = vadd.f32 %v1304, %v1305
    %v1307 = vrot.slane %v1306, 1
    %v1308 = vadd.f32 %v1306, %v1307
    %v1309 = vsel %vm1017, %v1203, 0.0
    %v1310 = vrot.slane %v1309, 4
    %v1311 = vadd.f32 %v1309, %v1310
    %v1312 = vrot.slane %v1311, 2
    %v1313 = vadd.f32 %v1311, %v1312
    %v1314 = vrot.slane %v1313, 1
    %v1315 = vadd.f32 %v1313, %v1314
    %v1332 = vrot.slane %v1217, 7
    %v1333 = vrot.slane %v1224, 6
    %v1334 = vrot.slane %v1231, 5
    %v1335 = vrot.slane %v1238, 4
    %v1336 = vrot.slane %v1245, 3
    %v1337 = vrot.slane %v1252, 2
    %v1338 = vrot.slane %v1259, 1
    %v1339 = vrot.slane %v1273, 7
    %v1340 = vrot.slane %v1280, 6
    %v1341 = vrot.slane %v1287, 5
    %v1342 = vrot.slane %v1294, 4
    %v1343 = vrot.slane %v1301, 3
    %v1344 = vrot.slane %v1308, 2
    %v1345 = vrot.slane %v1315, 1
    %v1346 = vsel %vm1160, %v1210, %v1332
    %v1347 = vsel %vm1162, %v1333, %v1334
    %v1348 = vsel %vm1017, %v1346, %v1347
    %v1349 = vsel %vm1165, %v1335, %v1336
    %v1350 = vsel %vm1167, %v1337, %v1338
    %v1351 = vsel %vm1169, %v1349, %v1350
    %v1352 = vsel %vm1171, %v1348, %v1351
    %v1353 = vsel %vm1160, %v1266, %v1339
    %v1354 = vsel %vm1162, %v1340, %v1341
    %v1355 = vsel %vm1017, %v1353, %v1354
    %v1356 = vsel %vm1165, %v1342, %v1343
    %v1357 = vsel %vm1167, %v1344, %v1345
    %v1358 = vsel %vm1169, %v1356, %v1357
    %v1359 = vsel %vm1171, %v1355, %v1358
    %v1362 = vadd.f32 %v1186, %v1352
    %v1363 = vadd.f32 %v1187, %v1359
    %1364 = vst [vmem:[%s4] sm:$0xff] %v1362
    %1365 = vst [vmem:[%s4 + $0x8] sm:$0xff] %v1363
    %v1366 = vpack.c.bf16 %v822, %v809
    %v1367 = vpack.c.bf16 %v848, %v835
    %v1368 = vpack.c.bf16 %v874, %v861
    %v1369 = vpack.c.bf16 %v900, %v887
    %v1370 = vpack.c.bf16 %v926, %v913
    %v1371 = vpack.c.bf16 %v952, %v939
    %v1372 = vpack.c.bf16 %v978, %v965
    %v1373 = vpack.c.bf16 %v1004, %v991
    %v1382 = vrot.slane %v1366, 3
    %v1383 = vrot.slane %v1367, 6
    %v1384 = vrot.slane %v1367, 1
    %v1385 = vrot.slane %v1368, 4
    %v1386 = vrot.slane %v1368, 7
    %v1387 = vrot.slane %v1369, 2
    %v1388 = vrot.slane %v1369, 5
    %v1389 = vrot.slane %v1370, 3
    %v1390 = vrot.slane %v1371, 6
    %v1391 = vrot.slane %v1371, 1
    %v1392 = vrot.slane %v1372, 4
    %v1393 = vrot.slane %v1372, 7
    %v1394 = vrot.slane %v1373, 2
    %v1395 = vrot.slane %v1373, 5
    %v1398 = vsel %vm1160, %v1366, %v1382
    %v1401 = vsel %vm1162, %v1383, %v1384
    %v1402 = vsel %vm1017, %v1398, %v1401
    %v1405 = vsel %vm1165, %v1385, %v1386
    %v1408 = vsel %vm1167, %v1387, %v1388
    %v1409 = vsel %vm1169, %v1405, %v1408
    %v1410 = vsel %vm1171, %v1402, %v1409
    %v1413 = vsel %vm1160, %v1370, %v1389
    %v1416 = vsel %vm1162, %v1390, %v1391
    %v1417 = vsel %vm1017, %v1413, %v1416
    %v1420 = vsel %vm1165, %v1392, %v1393
    %v1423 = vsel %vm1167, %v1394, %v1395
    %v1424 = vsel %vm1169, %v1420, %v1423
    %v1425 = vsel %vm1171, %v1417, %v1424
    %1428 = vst [vmem:[%s2] sm:$0xff] %v1410
    %1429 = vst [vmem:[%s2 + $0x8] sm:$0xff] %v1425
    // Predicated region
    $region18: #{generator_forward.7} parent=1 // pred_check
      _
    $region19: #{generator_forward.7} parent=1 // pred_check_branch
      %1431 = sbr.rel (0) target = $region21
    $region20: #{generator_forward.7} parent=1 // pred_region
      _
    $region21: #{generator_forward.7} parent=1 // pred_fallthru
      _
    // Predicated region
    $region22: #{generator_forward.7} parent=1 // pred_check
      _
    $region23: #{generator_forward.7} parent=1 // pred_check_branch
      %1433 = sbr.rel (0) target = $region25
    $region24: #{generator_forward.7} parent=1 // pred_region
      _
    $region25: #{generator_forward.7} parent=1 // pred_fallthru
      _
    // Predicated region
    $region26: #{generator_forward.7} parent=1 // pred_check
      _
    $region27: #{generator_forward.7} parent=1 // pred_check_branch
      %1435 = sbr.rel (0) target = $region29
    $region28: #{generator_forward.7} parent=1 // pred_region
      _
    $region29: #{generator_forward.7} parent=1 // pred_fallthru
      _
    // Predicated region
    $region30: #{generator_forward.7} parent=1 // pred_check
      _
    $region31: #{generator_forward.7} parent=1 // pred_check_branch
      %1437 = sbr.rel (0) target = $region33
    $region32: #{generator_forward.7} parent=1 // pred_region
      _
    $region33: #{generator_forward.7} parent=1 // pred_fallthru
      _
    // Predicated region
    $region34: #{generator_forward.7} parent=1 // pred_check
      _
    $region35: #{generator_forward.7} parent=1 // pred_check_branch
      %1439 = sbr.rel (0) target = $region37
    $region36: #{generator_forward.7} parent=1 // pred_region
      _
    $region37: #{generator_forward.7} parent=1 // pred_fallthru
      _
    // Predicated region
    $region38: #{generator_forward.7} parent=1 // pred_check
      _
    $region39: #{generator_forward.7} parent=1 // pred_check_branch
      %1441 = sbr.rel (0) target = $region41
    $region40: #{generator_forward.7} parent=1 // pred_region
      _
    $region41: #{generator_forward.7} parent=1 // pred_fallthru
      _
    %1442 = vsyncpa [#allocation3], 1

// kernel: generator_forward.9
$region0: #{generator_forward.9}
  #allocation0 [shape = 'u32[]', space=smem, size = 0x4, offset = 0x4, fixed_abs, tag = 'smem constant byte address 0x4 - core index']
  #allocation1 [shape = 'u32[72,128]{1,0:T(1,128)}', space=vmem, size = 0x9000, scoped, tag = 'internal scratch']
  %s0 = inlined_call_operand.vmem [shape: bf16[50,512], index: 0, kind: input, shape index: {}]
  %s1 = inlined_call_operand.hbm [shape: bf16[512,256], index: 1, kind: input, shape index: {}]
  %s2 = inlined_call_operand.vmem [shape: bf16[50,256], index: 2, kind: output, shape index: {0}]
  %s3 = inlined_call_operand.vmem [shape: f32[1,256], index: 3, kind: output, shape index: {1}]
  %s4 = inlined_call_operand.vmem [shape: f32[1,256], index: 4, kind: output, shape index: {2}]
  %5 = xla_tuple %s2, %s3, %s4
  %s6 = sld [smem:[#allocation0]]
  $region42: #{generator_forward.9} parent=0
    _
  %s8 = ssub.s32 1, %s6
  %s9 = scalar_select 0, %s8, %s6
  $region1: #{generator_forward.9} parent=0
    #allocation2 [shape = 'u8[262144]{0}', space=vmem, size = 0x40000, scoped, tag = 'input window, operand 1, single buffered']
    #allocation3 [shape = 's32[1]{0}', space=sflag, size = 0x4, scoped, tag = 'scoped memory for generator_forward.9']
    %10 = vsyncpa [#allocation3], 0
    // Predicated region
    $region2: #{generator_forward.9} parent=1 // pred_check
      _
    $region3: #{generator_forward.9} parent=1 // pred_check_branch
      %12 = sbr.rel (0) target = $region5
    $region4: #{generator_forward.9} parent=1 // pred_region
      _
    $region5: #{generator_forward.9} parent=1 // pred_fallthru
      _
    // Predicated region
    $region6: #{generator_forward.9} parent=1 // pred_check
      _
    $region7: #{generator_forward.9} parent=1 // pred_check_branch
      %14 = sbr.rel (0) target = $region9
    $region8: #{generator_forward.9} parent=1 // pred_region
      %16 = vsyncadd [#allocation3], 0
      %s17 = sshll.u32 %s1, 4
      %s18 = int_to_ptr.hbm [resolvable:$true] %s17
      %s19 = sshll.u32 [#allocation2], 4
      %s20 = int_to_ptr.vmem [resolvable:$true] %s19
      %25 = dma.hbm_to_vmem [thread:$0]  %s18, 8192, %s20, [#allocation3], 128, 128, 8
    $region9: #{generator_forward.9} parent=1 // pred_fallthru
      _
    // Predicated region
    $region10: #{generator_forward.9} parent=1 // pred_check
      _
    $region11: #{generator_forward.9} parent=1 // pred_check_branch
      %27 = sbr.rel (0) target = $region13
    $region12: #{generator_forward.9} parent=1 // pred_region
      %29 = dma.done [#allocation3], 8192
    $region13: #{generator_forward.9} parent=1 // pred_fallthru
      _
    %v30 = vld [vmem:[%s0] sm:$0xff]
    %v31 = vld [vmem:[%s0 + $0x8] sm:$0xff]
    %v32 = vld [vmem:[%s0 + $0x10] sm:$0xff]
    %v33 = vld [vmem:[%s0 + $0x18] sm:$0xff]
    %v34 = vld [vmem:[%s0 + $0x20] sm:$0xff]
    %v35 = vld [vmem:[%s0 + $0x28] sm:$0xff]
    %v36 = vld [vmem:[%s0 + $0x30] sm:$0xff]
    %v37 = vld [vmem:[%s0 + $0x38] sm:$0xff]
    %v38 = vld [vmem:[%s0 + $0x40] sm:$0xff]
    %v39 = vld [vmem:[%s0 + $0x48] sm:$0xff]
    %v40 = vld [vmem:[%s0 + $0x50] sm:$0xff]
    %v41 = vld [vmem:[%s0 + $0x58] sm:$0xff]
    %v42 = vld [vmem:[%s0 + $0x60] sm:$0x11]
    %v43 = vld [vmem:[%s0 + $0x68] sm:$0x11]
    %v44 = vld [vmem:[#allocation2] sm:$0xff]
    %v45 = vld [vmem:[#allocation2 + $0x8] sm:$0xff]
    %v46 = vld [vmem:[#allocation2 + $0x10] sm:$0xff]
    %v47 = vld [vmem:[#allocation2 + $0x18] sm:$0xff]
    %v48 = vld [vmem:[#allocation2 + $0x20] sm:$0xff]
    %v49 = vld [vmem:[#allocation2 + $0x28] sm:$0xff]
    %v50 = vld [vmem:[#allocation2 + $0x30] sm:$0xff]
    %v51 = vld [vmem:[#allocation2 + $0x38] sm:$0xff]
    %v52 = vld [vmem:[#allocation2 + $0x40] sm:$0xff]
    %v53 = vld [vmem:[#allocation2 + $0x48] sm:$0xff]
    %v54 = vld [vmem:[#allocation2 + $0x50] sm:$0xff]
    %v55 = vld [vmem:[#allocation2 + $0x58] sm:$0xff]
    %v56 = vld [vmem:[#allocation2 + $0x60] sm:$0xff]
    %v57 = vld [vmem:[#allocation2 + $0x68] sm:$0xff]
    %v58 = vld [vmem:[#allocation2 + $0x70] sm:$0xff]
    %v59 = vld [vmem:[#allocation2 + $0x78] sm:$0xff]
    %v60 = vld [vmem:[#allocation2 + $0x80] sm:$0xff]
    %v61 = vld [vmem:[#allocation2 + $0x88] sm:$0xff]
    %v62 = vld [vmem:[#allocation2 + $0x90] sm:$0xff]
    %v63 = vld [vmem:[#allocation2 + $0x98] sm:$0xff]
    %v64 = vld [vmem:[#allocation2 + $0xa0] sm:$0xff]
    %v65 = vld [vmem:[#allocation2 + $0xa8] sm:$0xff]
    %v66 = vld [vmem:[#allocation2 + $0xb0] sm:$0xff]
    %v67 = vld [vmem:[#allocation2 + $0xb8] sm:$0xff]
    %v68 = vld [vmem:[#allocation2 + $0xc0] sm:$0xff]
    %v69 = vld [vmem:[#allocation2 + $0xc8] sm:$0xff]
    %v70 = vld [vmem:[#allocation2 + $0xd0] sm:$0xff]
    %v71 = vld [vmem:[#allocation2 + $0xd8] sm:$0xff]
    %v72 = vld [vmem:[#allocation2 + $0xe0] sm:$0xff]
    %v73 = vld [vmem:[#allocation2 + $0xe8] sm:$0xff]
    %v74 = vld [vmem:[#allocation2 + $0xf0] sm:$0xff]
    %v75 = vld [vmem:[#allocation2 + $0xf8] sm:$0xff]
    %v76 = vld [vmem:[#allocation2 + $0x100] sm:$0xff]
    %v77 = vld [vmem:[#allocation2 + $0x108] sm:$0xff]
    %v78 = vld [vmem:[#allocation2 + $0x110] sm:$0xff]
    %v79 = vld [vmem:[#allocation2 + $0x118] sm:$0xff]
    %v80 = vld [vmem:[#allocation2 + $0x120] sm:$0xff]
    %v81 = vld [vmem:[#allocation2 + $0x128] sm:$0xff]
    %v82 = vld [vmem:[#allocation2 + $0x130] sm:$0xff]
    %v83 = vld [vmem:[#allocation2 + $0x138] sm:$0xff]
    %v84 = vld [vmem:[#allocation2 + $0x140] sm:$0xff]
    %v85 = vld [vmem:[#allocation2 + $0x148] sm:$0xff]
    %v86 = vld [vmem:[#allocation2 + $0x150] sm:$0xff]
    %v87 = vld [vmem:[#allocation2 + $0x158] sm:$0xff]
    %v88 = vld [vmem:[#allocation2 + $0x160] sm:$0xff]
    %v89 = vld [vmem:[#allocation2 + $0x168] sm:$0xff]
    %v90 = vld [vmem:[#allocation2 + $0x170] sm:$0xff]
    %v91 = vld [vmem:[#allocation2 + $0x178] sm:$0xff]
    %v92 = vld [vmem:[#allocation2 + $0x180] sm:$0xff]
    %v93 = vld [vmem:[#allocation2 + $0x188] sm:$0xff]
    %v94 = vld [vmem:[#allocation2 + $0x190] sm:$0xff]
    %v95 = vld [vmem:[#allocation2 + $0x198] sm:$0xff]
    %v96 = vld [vmem:[#allocation2 + $0x1a0] sm:$0xff]
    %v97 = vld [vmem:[#allocation2 + $0x1a8] sm:$0xff]
    %v98 = vld [vmem:[#allocation2 + $0x1b0] sm:$0xff]
    %v99 = vld [vmem:[#allocation2 + $0x1b8] sm:$0xff]
    %v100 = vld [vmem:[#allocation2 + $0x1c0] sm:$0xff]
    %v101 = vld [vmem:[#allocation2 + $0x1c8] sm:$0xff]
    %v102 = vld [vmem:[#allocation2 + $0x1d0] sm:$0xff]
    %v103 = vld [vmem:[#allocation2 + $0x1d8] sm:$0xff]
    %v104 = vld [vmem:[#allocation2 + $0x1e0] sm:$0xff]
    %v105 = vld [vmem:[#allocation2 + $0x1e8] sm:$0xff]
    %v106 = vld [vmem:[#allocation2 + $0x1f0] sm:$0xff]
    %v107 = vld [vmem:[#allocation2 + $0x1f8] sm:$0xff]
    %v122 = vunpack.c.l.b16 %v30
    %v123 = vunpack.c.h.b16 %v30
    %v124 = vunpack.c.l.b16 %v31
    %v125 = vunpack.c.h.b16 %v31
    %v126 = vunpack.c.l.b16 %v32
    %v127 = vunpack.c.h.b16 %v32
    %v128 = vunpack.c.l.b16 %v33
    %v129 = vunpack.c.h.b16 %v33
    %v130 = vunpack.c.l.b16 %v34
    %v131 = vunpack.c.h.b16 %v34
    %v132 = vunpack.c.l.b16 %v35
    %v133 = vunpack.c.h.b16 %v35
    %v134 = vunpack.c.l.b16 %v36
    %v135 = vunpack.c.h.b16 %v36
    %v136 = vunpack.c.l.b16 %v37
    %v137 = vunpack.c.h.b16 %v37
    %v138 = vunpack.c.l.b16 %v38
    %v139 = vunpack.c.h.b16 %v38
    %v140 = vunpack.c.l.b16 %v39
    %v141 = vunpack.c.h.b16 %v39
    %v142 = vunpack.c.l.b16 %v40
    %v143 = vunpack.c.h.b16 %v40
    %v144 = vunpack.c.l.b16 %v41
    %v145 = vunpack.c.h.b16 %v41
    %v146 = vunpack.c.l.b16 %v42
    %v147 = vunpack.c.h.b16 %v42
    %v148 = vunpack.c.l.b16 %v43
    %v149 = vunpack.c.h.b16 %v43
    %v150 = vpack.c.b16 %v126, %v122
    %v151 = vpack.c.b16 %v127, %v123
    %v152 = vpack.c.b16 %v128, %v124
    %v153 = vpack.c.b16 %v129, %v125
    %v154 = vpack.c.b16 %v134, %v130
    %v155 = vpack.c.b16 %v135, %v131
    %v156 = vpack.c.b16 %v136, %v132
    %v157 = vpack.c.b16 %v137, %v133
    %v158 = vpack.c.b16 %v142, %v138
    %v159 = vpack.c.b16 %v143, %v139
    %v160 = vpack.c.b16 %v144, %v140
    %v161 = vpack.c.b16 %v145, %v141
    %v162 = vpack.c.b16 %v146, %v146
    %v163 = vpack.c.b16 %v147, %v147
    %v164 = vpack.c.b16 %v148, %v148
    %v165 = vpack.c.b16 %v149, %v149
    %v246 = vunpack.c.l.b16 %v44
    %v247 = vunpack.c.h.b16 %v44
    %v248 = vunpack.c.l.b16 %v45
    %v249 = vunpack.c.h.b16 %v45
    %v250 = vunpack.c.l.b16 %v46
    %v251 = vunpack.c.h.b16 %v46
    %v252 = vunpack.c.l.b16 %v47
    %v253 = vunpack.c.h.b16 %v47
    %v254 = vunpack.c.l.b16 %v48
    %v255 = vunpack.c.h.b16 %v48
    %v256 = vunpack.c.l.b16 %v49
    %v257 = vunpack.c.h.b16 %v49
    %v258 = vunpack.c.l.b16 %v50
    %v259 = vunpack.c.h.b16 %v50
    %v260 = vunpack.c.l.b16 %v51
    %v261 = vunpack.c.h.b16 %v51
    %v262 = vunpack.c.l.b16 %v52
    %v263 = vunpack.c.h.b16 %v52
    %v264 = vunpack.c.l.b16 %v53
    %v265 = vunpack.c.h.b16 %v53
    %v266 = vunpack.c.l.b16 %v54
    %v267 = vunpack.c.h.b16 %v54
    %v268 = vunpack.c.l.b16 %v55
    %v269 = vunpack.c.h.b16 %v55
    %v270 = vunpack.c.l.b16 %v56
    %v271 = vunpack.c.h.b16 %v56
    %v272 = vunpack.c.l.b16 %v57
    %v273 = vunpack.c.h.b16 %v57
    %v274 = vunpack.c.l.b16 %v58
    %v275 = vunpack.c.h.b16 %v58
    %v276 = vunpack.c.l.b16 %v59
    %v277 = vunpack.c.h.b16 %v59
    %v278 = vunpack.c.l.b16 %v60
    %v279 = vunpack.c.h.b16 %v60
    %v280 = vunpack.c.l.b16 %v61
    %v281 = vunpack.c.h.b16 %v61
    %v282 = vunpack.c.l.b16 %v62
    %v283 = vunpack.c.h.b16 %v62
    %v284 = vunpack.c.l.b16 %v63
    %v285 = vunpack.c.h.b16 %v63
    %v286 = vunpack.c.l.b16 %v64
    %v287 = vunpack.c.h.b16 %v64
    %v288 = vunpack.c.l.b16 %v65
    %v289 = vunpack.c.h.b16 %v65
    %v290 = vunpack.c.l.b16 %v66
    %v291 = vunpack.c.h.b16 %v66
    %v292 = vunpack.c.l.b16 %v67
    %v293 = vunpack.c.h.b16 %v67
    %v294 = vunpack.c.l.b16 %v68
    %v295 = vunpack.c.h.b16 %v68
    %v296 = vunpack.c.l.b16 %v69
    %v297 = vunpack.c.h.b16 %v69
    %v298 = vunpack.c.l.b16 %v70
    %v299 = vunpack.c.h.b16 %v70
    %v300 = vunpack.c.l.b16 %v71
    %v301 = vunpack.c.h.b16 %v71
    %v302 = vunpack.c.l.b16 %v72
    %v303 = vunpack.c.h.b16 %v72
    %v304 = vunpack.c.l.b16 %v73
    %v305 = vunpack.c.h.b16 %v73
    %v306 = vunpack.c.l.b16 %v74
    %v307 = vunpack.c.h.b16 %v74
    %v308 = vunpack.c.l.b16 %v75
    %v309 = vunpack.c.h.b16 %v75
    %v310 = vunpack.c.l.b16 %v76
    %v311 = vunpack.c.h.b16 %v76
    %v312 = vunpack.c.l.b16 %v77
    %v313 = vunpack.c.h.b16 %v77
    %v314 = vunpack.c.l.b16 %v78
    %v315 = vunpack.c.h.b16 %v78
    %v316 = vunpack.c.l.b16 %v79
    %v317 = vunpack.c.h.b16 %v79
    %v318 = vunpack.c.l.b16 %v80
    %v319 = vunpack.c.h.b16 %v80
    %v320 = vunpack.c.l.b16 %v81
    %v321 = vunpack.c.h.b16 %v81
    %v322 = vunpack.c.l.b16 %v82
    %v323 = vunpack.c.h.b16 %v82
    %v324 = vunpack.c.l.b16 %v83
    %v325 = vunpack.c.h.b16 %v83
    %v326 = vunpack.c.l.b16 %v84
    %v327 = vunpack.c.h.b16 %v84
    %v328 = vunpack.c.l.b16 %v85
    %v329 = vunpack.c.h.b16 %v85
    %v330 = vunpack.c.l.b16 %v86
    %v331 = vunpack.c.h.b16 %v86
    %v332 = vunpack.c.l.b16 %v87
    %v333 = vunpack.c.h.b16 %v87
    %v334 = vunpack.c.l.b16 %v88
    %v335 = vunpack.c.h.b16 %v88
    %v336 = vunpack.c.l.b16 %v89
    %v337 = vunpack.c.h.b16 %v89
    %v338 = vunpack.c.l.b16 %v90
    %v339 = vunpack.c.h.b16 %v90
    %v340 = vunpack.c.l.b16 %v91
    %v341 = vunpack.c.h.b16 %v91
    %v342 = vunpack.c.l.b16 %v92
    %v343 = vunpack.c.h.b16 %v92
    %v344 = vunpack.c.l.b16 %v93
    %v345 = vunpack.c.h.b16 %v93
    %v346 = vunpack.c.l.b16 %v94
    %v347 = vunpack.c.h.b16 %v94
    %v348 = vunpack.c.l.b16 %v95
    %v349 = vunpack.c.h.b16 %v95
    %v350 = vunpack.c.l.b16 %v96
    %v351 = vunpack.c.h.b16 %v96
    %v352 = vunpack.c.l.b16 %v97
    %v353 = vunpack.c.h.b16 %v97
    %v354 = vunpack.c.l.b16 %v98
    %v355 = vunpack.c.h.b16 %v98
    %v356 = vunpack.c.l.b16 %v99
    %v357 = vunpack.c.h.b16 %v99
    %v358 = vunpack.c.l.b16 %v100
    %v359 = vunpack.c.h.b16 %v100
    %v360 = vunpack.c.l.b16 %v101
    %v361 = vunpack.c.h.b16 %v101
    %v362 = vunpack.c.l.b16 %v102
    %v363 = vunpack.c.h.b16 %v102
    %v364 = vunpack.c.l.b16 %v103
    %v365 = vunpack.c.h.b16 %v103
    %v366 = vunpack.c.l.b16 %v104
    %v367 = vunpack.c.h.b16 %v104
    %v368 = vunpack.c.l.b16 %v105
    %v369 = vunpack.c.h.b16 %v105
    %v370 = vunpack.c.l.b16 %v106
    %v371 = vunpack.c.h.b16 %v106
    %v372 = vunpack.c.l.b16 %v107
    %v373 = vunpack.c.h.b16 %v107
    %v374 = vpack.c.b16 %v248, %v246
    %v375 = vpack.c.b16 %v249, %v247
    %v376 = vpack.c.b16 %v252, %v250
    %v377 = vpack.c.b16 %v253, %v251
    %v378 = vpack.c.b16 %v256, %v254
    %v379 = vpack.c.b16 %v257, %v255
    %v380 = vpack.c.b16 %v260, %v258
    %v381 = vpack.c.b16 %v261, %v259
    %v382 = vpack.c.b16 %v264, %v262
    %v383 = vpack.c.b16 %v265, %v263
    %v384 = vpack.c.b16 %v268, %v266
    %v385 = vpack.c.b16 %v269, %v267
    %v386 = vpack.c.b16 %v272, %v270
    %v387 = vpack.c.b16 %v273, %v271
    %v388 = vpack.c.b16 %v276, %v274
    %v389 = vpack.c.b16 %v277, %v275
    %v390 = vpack.c.b16 %v280, %v278
    %v391 = vpack.c.b16 %v281, %v279
    %v392 = vpack.c.b16 %v284, %v282
    %v393 = vpack.c.b16 %v285, %v283
    %v394 = vpack.c.b16 %v288, %v286
    %v395 = vpack.c.b16 %v289, %v287
    %v396 = vpack.c.b16 %v292, %v290
    %v397 = vpack.c.b16 %v293, %v291
    %v398 = vpack.c.b16 %v296, %v294
    %v399 = vpack.c.b16 %v297, %v295
    %v400 = vpack.c.b16 %v300, %v298
    %v401 = vpack.c.b16 %v301, %v299
    %v402 = vpack.c.b16 %v304, %v302
    %v403 = vpack.c.b16 %v305, %v303
    %v404 = vpack.c.b16 %v308, %v306
    %v405 = vpack.c.b16 %v309, %v307
    %v406 = vpack.c.b16 %v312, %v310
    %v407 = vpack.c.b16 %v313, %v311
    %v408 = vpack.c.b16 %v316, %v314
    %v409 = vpack.c.b16 %v317, %v315
    %v410 = vpack.c.b16 %v320, %v318
    %v411 = vpack.c.b16 %v321, %v319
    %v412 = vpack.c.b16 %v324, %v322
    %v413 = vpack.c.b16 %v325, %v323
    %v414 = vpack.c.b16 %v328, %v326
    %v415 = vpack.c.b16 %v329, %v327
    %v416 = vpack.c.b16 %v332, %v330
    %v417 = vpack.c.b16 %v333, %v331
    %v418 = vpack.c.b16 %v336, %v334
    %v419 = vpack.c.b16 %v337, %v335
    %v420 = vpack.c.b16 %v340, %v338
    %v421 = vpack.c.b16 %v341, %v339
    %v422 = vpack.c.b16 %v344, %v342
    %v423 = vpack.c.b16 %v345, %v343
    %v424 = vpack.c.b16 %v348, %v346
    %v425 = vpack.c.b16 %v349, %v347
    %v426 = vpack.c.b16 %v352, %v350
    %v427 = vpack.c.b16 %v353, %v351
    %v428 = vpack.c.b16 %v356, %v354
    %v429 = vpack.c.b16 %v357, %v355
    %v430 = vpack.c.b16 %v360, %v358
    %v431 = vpack.c.b16 %v361, %v359
    %v432 = vpack.c.b16 %v364, %v362
    %v433 = vpack.c.b16 %v365, %v363
    %v434 = vpack.c.b16 %v368, %v366
    %v435 = vpack.c.b16 %v369, %v367
    %v436 = vpack.c.b16 %v372, %v370
    %v437 = vpack.c.b16 %v373, %v371
    %502 = vmatpush.bf16.msra.mxu0 %v388
    %503 = vmatpush.bf16.msra.mxu0 %v386
    %504 = vmatpush.bf16.msra.mxu0 %v384
    %505 = vmatpush.bf16.msra.mxu0 %v382
    %506 = vmatpush.bf16.msra.mxu0 %v380
    %507 = vmatpush.bf16.msra.mxu0 %v378
    %508 = vmatpush.bf16.msra.mxu0 %v376
    %509 = vmatpush.bf16.msra.mxu0 %v374
    %510 = vmatmul.bf16.gmra.mxu0 %v150
    %v511 = vpop.f32.mrf.mxu0
    %v512 = vadd.f32 0.0, %v511
    %v513 = vpop.f32.mrf.mxu0
    %v514 = vadd.f32 0.0, %v513
    %515 = vmatmul.bf16.gmra.mxu0 %v154
    %v516 = vpop.f32.mrf.mxu0
    %v517 = vadd.f32 0.0, %v516
    %v518 = vpop.f32.mrf.mxu0
    %v519 = vadd.f32 0.0, %v518
    %520 = vmatmul.bf16.gmra.mxu0 %v158
    %v521 = vpop.f32.mrf.mxu0
    %v522 = vadd.f32 0.0, %v521
    %v523 = vpop.f32.mrf.mxu0
    %v524 = vadd.f32 0.0, %v523
    %525 = vmatmul.bf16.gmra.mxu0 %v162
    %v526 = vpop.f32.mrf.mxu0
    %v527 = vadd.f32 0.0, %v526
    %v528 = vpop.f32.mrf.mxu0
    %529 = vdwg.mxu0
    %530 = vmatpush.bf16.msra.mxu0 %v404
    %531 = vmatpush.bf16.msra.mxu0 %v402
    %532 = vmatpush.bf16.msra.mxu0 %v400
    %533 = vmatpush.bf16.msra.mxu0 %v398
    %534 = vmatpush.bf16.msra.mxu0 %v396
    %535 = vmatpush.bf16.msra.mxu0 %v394
    %536 = vmatpush.bf16.msra.mxu0 %v392
    %537 = vmatpush.bf16.msra.mxu0 %v390
    %538 = vmatmul.bf16.gmra.mxu0 %v151
    %v539 = vpop.f32.mrf.mxu0
    %v540 = vadd.f32 %v512, %v539
    %v541 = vpop.f32.mrf.mxu0
    %v542 = vadd.f32 %v514, %v541
    %543 = vmatmul.bf16.gmra.mxu0 %v155
    %v544 = vpop.f32.mrf.mxu0
    %v545 = vadd.f32 %v517, %v544
    %v546 = vpop.f32.mrf.mxu0
    %v547 = vadd.f32 %v519, %v546
    %548 = vmatmul.bf16.gmra.mxu0 %v159
    %v549 = vpop.f32.mrf.mxu0
    %v550 = vadd.f32 %v522, %v549
    %v551 = vpop.f32.mrf.mxu0
    %v552 = vadd.f32 %v524, %v551
    %553 = vmatmul.bf16.gmra.mxu0 %v163
    %v554 = vpop.f32.mrf.mxu0
    %v555 = vadd.f32 %v527, %v554
    %v556 = vpop.f32.mrf.mxu0
    %557 = vdwg.mxu0
    %558 = vmatpush.bf16.msra.mxu0 %v420
    %559 = vmatpush.bf16.msra.mxu0 %v418
    %560 = vmatpush.bf16.msra.mxu0 %v416
    %561 = vmatpush.bf16.msra.mxu0 %v414
    %562 = vmatpush.bf16.msra.mxu0 %v412
    %563 = vmatpush.bf16.msra.mxu0 %v410
    %564 = vmatpush.bf16.msra.mxu0 %v408
    %565 = vmatpush.bf16.msra.mxu0 %v406
    %566 = vmatmul.bf16.gmra.mxu0 %v152
    %v567 = vpop.f32.mrf.mxu0
    %v568 = vadd.f32 %v540, %v567
    %v569 = vpop.f32.mrf.mxu0
    %v570 = vadd.f32 %v542, %v569
    %571 = vmatmul.bf16.gmra.mxu0 %v156
    %v572 = vpop.f32.mrf.mxu0
    %v573 = vadd.f32 %v545, %v572
    %v574 = vpop.f32.mrf.mxu0
    %v575 = vadd.f32 %v547, %v574
    %576 = vmatmul.bf16.gmra.mxu0 %v160
    %v577 = vpop.f32.mrf.mxu0
    %v578 = vadd.f32 %v550, %v577
    %v579 = vpop.f32.mrf.mxu0
    %v580 = vadd.f32 %v552, %v579
    %581 = vmatmul.bf16.gmra.mxu0 %v164
    %v582 = vpop.f32.mrf.mxu0
    %v583 = vadd.f32 %v555, %v582
    %v584 = vpop.f32.mrf.mxu0
    %585 = vdwg.mxu0
    %586 = vmatpush.bf16.msra.mxu0 %v436
    %587 = vmatpush.bf16.msra.mxu0 %v434
    %588 = vmatpush.bf16.msra.mxu0 %v432
    %589 = vmatpush.bf16.msra.mxu0 %v430
    %590 = vmatpush.bf16.msra.mxu0 %v428
    %591 = vmatpush.bf16.msra.mxu0 %v426
    %592 = vmatpush.bf16.msra.mxu0 %v424
    %593 = vmatpush.bf16.msra.mxu0 %v422
    %594 = vmatmul.bf16.gmra.mxu0 %v153
    %v595 = vpop.f32.mrf.mxu0
    %v596 = vadd.f32 %v568, %v595
    %v597 = vpop.f32.mrf.mxu0
    %v598 = vadd.f32 %v570, %v597
    %599 = vmatmul.bf16.gmra.mxu0 %v157
    %v600 = vpop.f32.mrf.mxu0
    %v601 = vadd.f32 %v573, %v600
    %v602 = vpop.f32.mrf.mxu0
    %v603 = vadd.f32 %v575, %v602
    %604 = vmatmul.bf16.gmra.mxu0 %v161
    %v605 = vpop.f32.mrf.mxu0
    %v606 = vadd.f32 %v578, %v605
    %v607 = vpop.f32.mrf.mxu0
    %v608 = vadd.f32 %v580, %v607
    %609 = vmatmul.bf16.gmra.mxu0 %v165
    %v610 = vpop.f32.mrf.mxu0
    %v611 = vadd.f32 %v583, %v610
    %v612 = vpop.f32.mrf.mxu0
    %613 = vdwg.mxu0
    %614 = vmatpush.bf16.msra.mxu0 %v389
    %615 = vmatpush.bf16.msra.mxu0 %v387
    %616 = vmatpush.bf16.msra.mxu0 %v385
    %617 = vmatpush.bf16.msra.mxu0 %v383
    %618 = vmatpush.bf16.msra.mxu0 %v381
    %619 = vmatpush.bf16.msra.mxu0 %v379
    %620 = vmatpush.bf16.msra.mxu0 %v377
    %621 = vmatpush.bf16.msra.mxu0 %v375
    %622 = vmatmul.bf16.gmra.mxu0 %v150
    %v623 = vpop.f32.mrf.mxu0
    %v624 = vadd.f32 0.0, %v623
    %v625 = vpop.f32.mrf.mxu0
    %v626 = vadd.f32 0.0, %v625
    %627 = vmatmul.bf16.gmra.mxu0 %v154
    %v628 = vpop.f32.mrf.mxu0
    %v629 = vadd.f32 0.0, %v628
    %v630 = vpop.f32.mrf.mxu0
    %v631 = vadd.f32 0.0, %v630
    %632 = vmatmul.bf16.gmra.mxu0 %v158
    %v633 = vpop.f32.mrf.mxu0
    %v634 = vadd.f32 0.0, %v633
    %v635 = vpop.f32.mrf.mxu0
    %v636 = vadd.f32 0.0, %v635
    %637 = vmatmul.bf16.gmra.mxu0 %v162
    %v638 = vpop.f32.mrf.mxu0
    %v639 = vadd.f32 0.0, %v638
    %v640 = vpop.f32.mrf.mxu0
    %641 = vdwg.mxu0
    %642 = vmatpush.bf16.msra.mxu0 %v405
    %643 = vmatpush.bf16.msra.mxu0 %v403
    %644 = vmatpush.bf16.msra.mxu0 %v401
    %645 = vmatpush.bf16.msra.mxu0 %v399
    %646 = vmatpush.bf16.msra.mxu0 %v397
    %647 = vmatpush.bf16.msra.mxu0 %v395
    %648 = vmatpush.bf16.msra.mxu0 %v393
    %649 = vmatpush.bf16.msra.mxu0 %v391
    %650 = vmatmul.bf16.gmra.mxu0 %v151
    %v651 = vpop.f32.mrf.mxu0
    %v652 = vadd.f32 %v624, %v651
    %v653 = vpop.f32.mrf.mxu0
    %v654 = vadd.f32 %v626, %v653
    %655 = vmatmul.bf16.gmra.mxu0 %v155
    %v656 = vpop.f32.mrf.mxu0
    %v657 = vadd.f32 %v629, %v656
    %v658 = vpop.f32.mrf.mxu0
    %v659 = vadd.f32 %v631, %v658
    %660 = vmatmul.bf16.gmra.mxu0 %v159
    %v661 = vpop.f32.mrf.mxu0
    %v662 = vadd.f32 %v634, %v661
    %v663 = vpop.f32.mrf.mxu0
    %v664 = vadd.f32 %v636, %v663
    %665 = vmatmul.bf16.gmra.mxu0 %v163
    %v666 = vpop.f32.mrf.mxu0
    %v667 = vadd.f32 %v639, %v666
    %v668 = vpop.f32.mrf.mxu0
    %669 = vdwg.mxu0
    %670 = vmatpush.bf16.msra.mxu0 %v421
    %671 = vmatpush.bf16.msra.mxu0 %v419
    %672 = vmatpush.bf16.msra.mxu0 %v417
    %673 = vmatpush.bf16.msra.mxu0 %v415
    %674 = vmatpush.bf16.msra.mxu0 %v413
    %675 = vmatpush.bf16.msra.mxu0 %v411
    %676 = vmatpush.bf16.msra.mxu0 %v409
    %677 = vmatpush.bf16.msra.mxu0 %v407
    %678 = vmatmul.bf16.gmra.mxu0 %v152
    %v679 = vpop.f32.mrf.mxu0
    %v680 = vadd.f32 %v652, %v679
    %v681 = vpop.f32.mrf.mxu0
    %v682 = vadd.f32 %v654, %v681
    %683 = vmatmul.bf16.gmra.mxu0 %v156
    %v684 = vpop.f32.mrf.mxu0
    %v685 = vadd.f32 %v657, %v684
    %v686 = vpop.f32.mrf.mxu0
    %v687 = vadd.f32 %v659, %v686
    %688 = vmatmul.bf16.gmra.mxu0 %v160
    %v689 = vpop.f32.mrf.mxu0
    %v690 = vadd.f32 %v662, %v689
    %v691 = vpop.f32.mrf.mxu0
    %v692 = vadd.f32 %v664, %v691
    %693 = vmatmul.bf16.gmra.mxu0 %v164
    %v694 = vpop.f32.mrf.mxu0
    %v695 = vadd.f32 %v667, %v694
    %v696 = vpop.f32.mrf.mxu0
    %697 = vdwg.mxu0
    %698 = vmatpush.bf16.msra.mxu0 %v437
    %699 = vmatpush.bf16.msra.mxu0 %v435
    %700 = vmatpush.bf16.msra.mxu0 %v433
    %701 = vmatpush.bf16.msra.mxu0 %v431
    %702 = vmatpush.bf16.msra.mxu0 %v429
    %703 = vmatpush.bf16.msra.mxu0 %v427
    %704 = vmatpush.bf16.msra.mxu0 %v425
    %705 = vmatpush.bf16.msra.mxu0 %v423
    %706 = vmatmul.bf16.gmra.mxu0 %v153
    %v707 = vpop.f32.mrf.mxu0
    %v708 = vadd.f32 %v680, %v707
    %v709 = vpop.f32.mrf.mxu0
    %v710 = vadd.f32 %v682, %v709
    %711 = vmatmul.bf16.gmra.mxu0 %v157
    %v712 = vpop.f32.mrf.mxu0
    %v713 = vadd.f32 %v685, %v712
    %v714 = vpop.f32.mrf.mxu0
    %v715 = vadd.f32 %v687, %v714
    %716 = vmatmul.bf16.gmra.mxu0 %v161
    %v717 = vpop.f32.mrf.mxu0
    %v718 = vadd.f32 %v690, %v717
    %v719 = vpop.f32.mrf.mxu0
    %v720 = vadd.f32 %v692, %v719
    %721 = vmatmul.bf16.gmra.mxu0 %v165
    %v722 = vpop.f32.mrf.mxu0
    %v723 = vadd.f32 %v695, %v722
    %v724 = vpop.f32.mrf.mxu0
    %725 = vdwg.mxu0
    %p726 = scmp.eq.s32.totalorder 0, 0
    // Predicated region
    $region14: #{generator_forward.9} parent=1 // pred_check
      %p727 = pneg %p726
    $region15: #{generator_forward.9} parent=1 // pred_check_branch
      %729 = sbr.rel (%p727) target = $region17
    $region16: #{generator_forward.9} parent=1 // pred_region
      %v730 = vlaneseq
      %vm731 = vcmp.ge.s32.totalorder %v730, 0
      %vm732 = vcmp.lt.s32.totalorder %v730, 256
      %vm733 = vmand %vm731, %vm732
      %734 = vst.msk [vmem:[%s3] sm:$0x3] %vm733, 0.0
      %735 = vst.msk [vmem:[%s4] sm:$0x3] %vm733, 0.0
    $region17: #{generator_forward.9} parent=1 // pred_fallthru
      _
    %v736 = vld [vmem:[%s3] sm:$0x3]
    %v737 = vadd.f32 %v596, %v598
    %v738 = vadd.f32 %v737, %v601
    %v739 = vadd.f32 %v738, %v603
    %v740 = vadd.f32 %v739, %v606
    %v741 = vadd.f32 %v740, %v608
    %vm742 = vcmask 1041408
    %v743 = vsel %vm742, %v611, 0.0
    %v744 = vadd.f32 %v741, %v743
    %v745 = vrot.slane %v744, 4
    %v746 = vadd.f32 %v744, %v745
    %v747 = vrot.slane %v746, 2
    %v748 = vadd.f32 %v746, %v747
    %v749 = vrot.slane %v748, 1
    %v750 = vadd.f32 %v748, %v749
    %v751 = vadd.f32 %v708, %v710
    %v752 = vadd.f32 %v751, %v713
    %v753 = vadd.f32 %v752, %v715
    %v754 = vadd.f32 %v753, %v718
    %v755 = vadd.f32 %v754, %v720
    %v756 = vsel %vm742, %v723, 0.0
    %v757 = vadd.f32 %v755, %v756
    %v758 = vrot.slane %v757, 4
    %v759 = vadd.f32 %v757, %v758
    %v760 = vrot.slane %v759, 2
    %v761 = vadd.f32 %v759, %v760
    %v762 = vrot.slane %v761, 1
    %v763 = vadd.f32 %v761, %v762
    %v766 = vrot.slane %v763, 7
    %vm767 = vcmask 1040384
    %v768 = vsel %vm767, %v750, %v766
    %v770 = vadd.f32 %v736, %v768
    %v771 = vlaneseq
    %vm772 = vcmp.ge.s32.totalorder %v771, 0
    %vm773 = vcmp.lt.s32.totalorder %v771, 256
    %vm774 = vmand %vm772, %vm773
    %775 = vst.msk [vmem:[%s3] sm:$0x3] %vm774, %v770
    %v776 = vld [vmem:[%s4] sm:$0x3]
    %v777 = vmul.f32 %v596, %v596
    %v778 = vmul.f32 %v708, %v708
    %v779 = vmul.f32 %v598, %v598
    %v780 = vmul.f32 %v710, %v710
    %v781 = vmul.f32 %v601, %v601
    %v782 = vmul.f32 %v713, %v713
    %v783 = vmul.f32 %v603, %v603
    %v784 = vmul.f32 %v715, %v715
    %v785 = vmul.f32 %v606, %v606
    %v786 = vmul.f32 %v718, %v718
    %v787 = vmul.f32 %v608, %v608
    %v788 = vmul.f32 %v720, %v720
    %v789 = vmul.f32 %v611, %v611
    %v790 = vmul.f32 %v723, %v723
    %v791 = vadd.f32 %v777, %v779
    %v792 = vadd.f32 %v791, %v781
    %v793 = vadd.f32 %v792, %v783
    %v794 = vadd.f32 %v793, %v785
    %v795 = vadd.f32 %v794, %v787
    %v796 = vsel %vm742, %v789, 0.0
    %v797 = vadd.f32 %v795, %v796
    %v798 = vrot.slane %v797, 4
    %v799 = vadd.f32 %v797, %v798
    %v800 = vrot.slane %v799, 2
    %v801 = vadd.f32 %v799, %v800
    %v802 = vrot.slane %v801, 1
    %v803 = vadd.f32 %v801, %v802
    %v804 = vadd.f32 %v778, %v780
    %v805 = vadd.f32 %v804, %v782
    %v806 = vadd.f32 %v805, %v784
    %v807 = vadd.f32 %v806, %v786
    %v808 = vadd.f32 %v807, %v788
    %v809 = vsel %vm742, %v790, 0.0
    %v810 = vadd.f32 %v808, %v809
    %v811 = vrot.slane %v810, 4
    %v812 = vadd.f32 %v810, %v811
    %v813 = vrot.slane %v812, 2
    %v814 = vadd.f32 %v812, %v813
    %v815 = vrot.slane %v814, 1
    %v816 = vadd.f32 %v814, %v815
    %v819 = vrot.slane %v816, 7
    %v820 = vsel %vm767, %v803, %v819
    %v822 = vadd.f32 %v776, %v820
    %823 = vst.msk [vmem:[%s4] sm:$0x3] %vm774, %v822
    %v824 = vpack.c.bf16 %v708, %v596
    %v825 = vpack.c.bf16 %v710, %v598
    %v826 = vpack.c.bf16 %v713, %v601
    %v827 = vpack.c.bf16 %v715, %v603
    %v828 = vpack.c.bf16 %v718, %v606
    %v829 = vpack.c.bf16 %v720, %v608
    %v830 = vpack.c.bf16 %v723, %v611
    %831 = vst [vmem:[%s2] sm:$0xff] %v824
    %832 = vst [vmem:[%s2 + $0x8] sm:$0xff] %v825
    %833 = vst [vmem:[%s2 + $0x10] sm:$0xff] %v826
    %834 = vst [vmem:[%s2 + $0x18] sm:$0xff] %v827
    %835 = vst [vmem:[%s2 + $0x20] sm:$0xff] %v828
    %836 = vst [vmem:[%s2 + $0x28] sm:$0xff] %v829
    %837 = vst [vmem:[%s2 + $0x30] sm:$0x11] %v830
    // Predicated region
    $region18: #{generator_forward.9} parent=1 // pred_check
      _
    $region19: #{generator_forward.9} parent=1 // pred_check_branch
      %839 = sbr.rel (0) target = $region21
    $region20: #{generator_forward.9} parent=1 // pred_region
      _
    $region21: #{generator_forward.9} parent=1 // pred_fallthru
      _
    // Predicated region
    $region22: #{generator_forward.9} parent=1 // pred_check
      _
    $region23: #{generator_forward.9} parent=1 // pred_check_branch
      %841 = sbr.rel (0) target = $region25
    $region24: #{generator_forward.9} parent=1 // pred_region
      _
    $region25: #{generator_forward.9} parent=1 // pred_fallthru
      _
    // Predicated region
    $region26: #{generator_forward.9} parent=1 // pred_check
      _
    $region27: #{generator_forward.9} parent=1 // pred_check_branch
      %843 = sbr.rel (0) target = $region29
    $region28: #{generator_forward.9} parent=1 // pred_region
      _
    $region29: #{generator_forward.9} parent=1 // pred_fallthru
      _
    // Predicated region
    $region30: #{generator_forward.9} parent=1 // pred_check
      _
    $region31: #{generator_forward.9} parent=1 // pred_check_branch
      %845 = sbr.rel (0) target = $region33
    $region32: #{generator_forward.9} parent=1 // pred_region
      _
    $region33: #{generator_forward.9} parent=1 // pred_fallthru
      _
    // Predicated region
    $region34: #{generator_forward.9} parent=1 // pred_check
      _
    $region35: #{generator_forward.9} parent=1 // pred_check_branch
      %847 = sbr.rel (0) target = $region37
    $region36: #{generator_forward.9} parent=1 // pred_region
      _
    $region37: #{generator_forward.9} parent=1 // pred_fallthru
      _
    // Predicated region
    $region38: #{generator_forward.9} parent=1 // pred_check
      _
    $region39: #{generator_forward.9} parent=1 // pred_check_branch
      %849 = sbr.rel (0) target = $region41
    $region40: #{generator_forward.9} parent=1 // pred_region
      _
    $region41: #{generator_forward.9} parent=1 // pred_fallthru
      _
    %850 = vsyncpa [#allocation3], 1

// kernel: tile.47
$region0: #{tile.47}
  #allocation0 [shape = 's32[1]{0}', space=sflag, size = 0x4, scoped, tag = 'scoped memory for tile.47']
  %s0 = inlined_call_operand.vmem [shape: f32[64], index: 0, kind: input, shape index: {}]
  %s1 = inlined_call_operand.vmem [shape: f32[4,64], index: 1, kind: output, shape index: {}]
  // Predicated region
  $region2: #{tile.47} parent=0 // pred_check
    _
  $region3: #{tile.47} parent=0 // pred_check_branch
    %3 = sbr.rel (0) target = $region5
  $region4: #{tile.47} parent=0 // pred_region
    _
  $region5: #{tile.47} parent=0 // pred_fallthru
    _
  %v4 = vld [vmem:[%s0] ss:$0 sm:$0xff]
  %5 = vst [vmem:[%s1] sm:$0xf] %v4

// kernel: tile.49
$region0: #{tile.49}
  %s0 = inlined_call_operand.vmem [shape: f32[4,64], index: 0, kind: input, shape index: {}]
  %s1 = inlined_call_operand.vmem [shape: f32[1,256], index: 1, kind: output, shape index: {}]
  $region1: #{tile.49} parent=0
    #allocation0 [shape = 'u8[8192]{0}', space=vmem, size = 0x2000, scoped, tag = 'scoped mem for output reshape']
    #allocation1 [shape = 'u8[4096]{0}', space=vmem, size = 0x1000, scoped, tag = 'scoped mem for input reshape']
    %s3 = ssub.s32 16, 1
    %v4 = vld [vmem:[%s0] sm:%s3]
    %5 = vst [vmem:[#allocation1] sm:%s3] %v4
    %s6 = smov 3
    %v7 = vld [vmem:[#allocation1] ss:$2 sm:%s6]
    %vm8 = vcmask 523264
    %9 = vst.msk [vmem:[#allocation0] ss:$8 sm:$0x3] %vm8, %v7
    %s10 = scalar_lea.vmem [#allocation1], 1
    %s11 = smov 3
    %v12 = vld [vmem:[%s10] ss:$2 sm:%s11]
    %13 = vrot.lane.b32.xlu0 %v12, 64
    %v14 = vpop.permute.xlu0 %13
    %vm15 = vcmask 1048064
    %16 = vst.msk [vmem:[#allocation0] ss:$8 sm:$0x3] %vm15, %v14
    %s18 = ssub.s32 2, 1
    %v19 = vld [vmem:[#allocation0] sm:%s18]
    %s21 = ssub.s32 2, 1
    %22 = vst [vmem:[%s1] sm:%s21] %v19
    %s23 = scalar_lea.vmem [#allocation0], 8
    %v24 = vld [vmem:[%s23] sm:%s18]
    %s26 = ssub.s32 2, 1
    %s27 = scalar_lea.vmem %s1, 1
    %28 = vst [vmem:[%s27] sm:%s26] %v24

// kernel: generator_forward.10
$region0: #{generator_forward.10}
  #allocation0 [shape = 'u32[]', space=smem, size = 0x4, offset = 0x4, fixed_abs, tag = 'smem constant byte address 0x4 - core index']
  #allocation1 [shape = 'u32[72,128]{1,0:T(1,128)}', space=vmem, size = 0x9000, scoped, tag = 'internal scratch']
  %s0 = inlined_call_operand.vmem [shape: bf16[50,256], index: 0, kind: input, shape index: {}]
  %s1 = inlined_call_operand.vmem [shape: f32[1,256], index: 1, kind: input, shape index: {}]
  %s2 = inlined_call_operand.vmem [shape: f32[1,256], index: 2, kind: input, shape index: {}]
  %s3 = inlined_call_operand.vmem [shape: bf16[50,256], index: 3, kind: output, shape index: {}]
  %s4 = sld [smem:[#allocation0]]
  $region22: #{generator_forward.10} parent=0
    _
  %s6 = ssub.s32 1, %s4
  %s7 = scalar_select 0, %s6, %s4
  // Predicated region
  $region2: #{generator_forward.10} parent=0 // pred_check
    _
  $region3: #{generator_forward.10} parent=0 // pred_check_branch
    %9 = sbr.rel (0) target = $region5
  $region4: #{generator_forward.10} parent=0 // pred_region
    _
  $region5: #{generator_forward.10} parent=0 // pred_fallthru
    _
  // Predicated region
  $region6: #{generator_forward.10} parent=0 // pred_check
    _
  $region7: #{generator_forward.10} parent=0 // pred_check_branch
    %11 = sbr.rel (0) target = $region9
  $region8: #{generator_forward.10} parent=0 // pred_region
    _
  $region9: #{generator_forward.10} parent=0 // pred_fallthru
    _
  // Predicated region
  $region10: #{generator_forward.10} parent=0 // pred_check
    _
  $region11: #{generator_forward.10} parent=0 // pred_check_branch
    %13 = sbr.rel (0) target = $region13
  $region12: #{generator_forward.10} parent=0 // pred_region
    _
  $region13: #{generator_forward.10} parent=0 // pred_fallthru
    _
  %v14 = vld [vmem:[%s0] sm:$0xff]
  %v15 = vld [vmem:[%s0 + $0x8] sm:$0xff]
  %v16 = vld [vmem:[%s0 + $0x10] sm:$0xff]
  %v17 = vld [vmem:[%s0 + $0x18] sm:$0xff]
  %v18 = vld [vmem:[%s0 + $0x20] sm:$0xff]
  %v19 = vld [vmem:[%s0 + $0x28] sm:$0xff]
  %v20 = vld [vmem:[%s0 + $0x30] sm:$0x11]
  %v21 = vunpack.c.l.bf16 %v14
  %v22 = vunpack.c.h.bf16 %v14
  %v23 = vunpack.c.l.bf16 %v15
  %v24 = vunpack.c.h.bf16 %v15
  %v25 = vunpack.c.l.bf16 %v16
  %v26 = vunpack.c.h.bf16 %v16
  %v27 = vunpack.c.l.bf16 %v17
  %v28 = vunpack.c.h.bf16 %v17
  %v29 = vunpack.c.l.bf16 %v18
  %v30 = vunpack.c.h.bf16 %v18
  %v31 = vunpack.c.l.bf16 %v19
  %v32 = vunpack.c.h.bf16 %v19
  %v33 = vunpack.c.l.bf16 %v20
  %v34 = vunpack.c.h.bf16 %v20
  %v35 = vld [vmem:[%s1] sm:$0x3]
  %v37 = vperm.slane %v35, 0
  %v38 = vperm.slane %v35, 1
  %v41 = vmul.f32 %v21, %v37
  %v42 = vmul.f32 %v22, %v38
  %v43 = vmul.f32 %v23, %v37
  %v44 = vmul.f32 %v24, %v38
  %v45 = vmul.f32 %v25, %v37
  %v46 = vmul.f32 %v26, %v38
  %v47 = vmul.f32 %v27, %v37
  %v48 = vmul.f32 %v28, %v38
  %v49 = vmul.f32 %v29, %v37
  %v50 = vmul.f32 %v30, %v38
  %v51 = vmul.f32 %v31, %v37
  %v52 = vmul.f32 %v32, %v38
  %v53 = vmul.f32 %v33, %v37
  %v54 = vmul.f32 %v34, %v38
  %v55 = vld [vmem:[%s2] sm:$0x3]
  %v57 = vperm.slane %v55, 0
  %v58 = vperm.slane %v55, 1
  %v61 = vadd.f32 %v41, %v57
  %v62 = vadd.f32 %v42, %v58
  %v63 = vadd.f32 %v43, %v57
  %v64 = vadd.f32 %v44, %v58
  %v65 = vadd.f32 %v45, %v57
  %v66 = vadd.f32 %v46, %v58
  %v67 = vadd.f32 %v47, %v57
  %v68 = vadd.f32 %v48, %v58
  %v69 = vadd.f32 %v49, %v57
  %v70 = vadd.f32 %v50, %v58
  %v71 = vadd.f32 %v51, %v57
  %v72 = vadd.f32 %v52, %v58
  %v73 = vadd.f32 %v53, %v57
  %v74 = vadd.f32 %v54, %v58
  %v75 = vmax.f32 %v61, 0.0
  %v76 = vmax.f32 %v62, 0.0
  %v77 = vmax.f32 %v63, 0.0
  %v78 = vmax.f32 %v64, 0.0
  %v79 = vmax.f32 %v65, 0.0
  %v80 = vmax.f32 %v66, 0.0
  %v81 = vmax.f32 %v67, 0.0
  %v82 = vmax.f32 %v68, 0.0
  %v83 = vmax.f32 %v69, 0.0
  %v84 = vmax.f32 %v70, 0.0
  %v85 = vmax.f32 %v71, 0.0
  %v86 = vmax.f32 %v72, 0.0
  %v87 = vmax.f32 %v73, 0.0
  %v88 = vmax.f32 %v74, 0.0
  %v89 = vpack.c.bf16 %v76, %v75
  %v90 = vpack.c.bf16 %v78, %v77
  %v91 = vpack.c.bf16 %v80, %v79
  %v92 = vpack.c.bf16 %v82, %v81
  %v93 = vpack.c.bf16 %v84, %v83
  %v94 = vpack.c.bf16 %v86, %v85
  %v95 = vpack.c.bf16 %v88, %v87
  %96 = vst [vmem:[%s3] sm:$0xff] %v89
  %97 = vst [vmem:[%s3 + $0x8] sm:$0xff] %v90
  %98 = vst [vmem:[%s3 + $0x10] sm:$0xff] %v91
  %99 = vst [vmem:[%s3 + $0x18] sm:$0xff] %v92
  %100 = vst [vmem:[%s3 + $0x20] sm:$0xff] %v93
  %101 = vst [vmem:[%s3 + $0x28] sm:$0xff] %v94
  %102 = vst [vmem:[%s3 + $0x30] sm:$0x11] %v95
  // Predicated region
  $region14: #{generator_forward.10} parent=0 // pred_check
    _
  $region15: #{generator_forward.10} parent=0 // pred_check_branch
    %104 = sbr.rel (0) target = $region17
  $region16: #{generator_forward.10} parent=0 // pred_region
    _
  $region17: #{generator_forward.10} parent=0 // pred_fallthru
    _
  // Predicated region
  $region18: #{generator_forward.10} parent=0 // pred_check
    _
  $region19: #{generator_forward.10} parent=0 // pred_check_branch
    %106 = sbr.rel (0) target = $region21
  $region20: #{generator_forward.10} parent=0 // pred_region
    _
  $region21: #{generator_forward.10} parent=0 // pred_fallthru
    _

// kernel: squeeze.58
$region0: #{squeeze.58}
  %s0 = inlined_call_operand.vmem [shape: f32[128], index: 0, kind: input, shape index: {}]
  %s1 = inlined_call_operand.vmem [shape: f32[4,32], index: 1, kind: output, shape index: {}]
  $region1: #{squeeze.58} parent=0
    #allocation0 [shape = 'u8[4096]{0}', space=vmem, size = 0x1000, scoped, tag = 'scoped mem for output reshape']
    #allocation1 [shape = 'u8[4096]{0}', space=vmem, size = 0x1000, scoped, tag = 'scoped mem for input reshape']
    %s3 = ssub.s32 2, 1
    %v4 = vld [vmem:[%s0] sm:%s3]
    %5 = vst [vmem:[#allocation1] sm:%s3] %v4
    %v6 = vld [vmem:[#allocation1] sm:$0x1]
    %vm7 = vcmask 261120
    %8 = vst.msk [vmem:[#allocation0] sm:$0x1] %vm7, %v6
    %v9 = vld [vmem:[#allocation1] sm:$0x1]
    %10 = vrot.lane.b32.xlu0 %v9, 96
    %v11 = vpop.permute.xlu0 %10
    %vm12 = vcmask 261120
    %s13 = scalar_lea.vmem [#allocation0], 1
    %14 = vst.msk [vmem:[%s13] sm:$0x1] %vm12, %v11
    %v15 = vld [vmem:[#allocation1] sm:$0x1]
    %16 = vrot.lane.b32.xlu0 %v15, 64
    %v17 = vpop.permute.xlu0 %16
    %vm18 = vcmask 261120
    %s19 = scalar_lea.vmem [#allocation0], 2
    %20 = vst.msk [vmem:[%s19] sm:$0x1] %vm18, %v17
    %v21 = vld [vmem:[#allocation1] sm:$0x1]
    %22 = vrot.lane.b32.xlu0 %v21, 32
    %v23 = vpop.permute.xlu0 %22
    %vm24 = vcmask 261120
    %s25 = scalar_lea.vmem [#allocation0], 3
    %26 = vst.msk [vmem:[%s25] sm:$0x1] %vm24, %v23
    %s28 = ssub.s32 16, 1
    %v29 = vld [vmem:[#allocation0] sm:%s28]
    %s31 = ssub.s32 16, 1
    %32 = vst [vmem:[%s1] sm:%s31] %v29

// kernel: generator_forward.11
$region0: #{generator_forward.11}
  #allocation0 [shape = 'u32[]', space=smem, size = 0x4, offset = 0x4, fixed_abs, tag = 'smem constant byte address 0x4 - core index']
  #allocation1 [shape = 'u32[72,128]{1,0:T(1,128)}', space=vmem, size = 0x9000, scoped, tag = 'internal scratch']
  %s0 = inlined_call_operand.vmem [shape: bf16[162,256], index: 0, kind: input, shape index: {}]
  %s1 = inlined_call_operand.vmem [shape: bf16[256,128], index: 1, kind: input, shape index: {}]
  %s2 = inlined_call_operand.vmem [shape: bf16[162,128], index: 2, kind: output, shape index: {0}]
  %s3 = inlined_call_operand.vmem [shape: f32[1,128], index: 3, kind: output, shape index: {1}]
  %s4 = inlined_call_operand.vmem [shape: f32[1,128], index: 4, kind: output, shape index: {2}]
  %5 = xla_tuple %s2, %s3, %s4
  %s6 = sld [smem:[#allocation0]]
  $region38: #{generator_forward.11} parent=0
    _
  %s8 = ssub.s32 1, %s6
  %s9 = scalar_select 0, %s8, %s6
  // Predicated region
  $region2: #{generator_forward.11} parent=0 // pred_check
    _
  $region3: #{generator_forward.11} parent=0 // pred_check_branch
    %11 = sbr.rel (0) target = $region5
  $region4: #{generator_forward.11} parent=0 // pred_region
    _
  $region5: #{generator_forward.11} parent=0 // pred_fallthru
    _
  // Predicated region
  $region6: #{generator_forward.11} parent=0 // pred_check
    _
  $region7: #{generator_forward.11} parent=0 // pred_check_branch
    %13 = sbr.rel (0) target = $region9
  $region8: #{generator_forward.11} parent=0 // pred_region
    _
  $region9: #{generator_forward.11} parent=0 // pred_fallthru
    _
  %v14 = vld [vmem:[%s0] sm:$0xff]
  %v15 = vld [vmem:[%s0 + $0x8] sm:$0xff]
  %v16 = vld [vmem:[%s0 + $0x10] sm:$0xff]
  %v17 = vld [vmem:[%s0 + $0x18] sm:$0xff]
  %v18 = vld [vmem:[%s0 + $0x20] sm:$0xff]
  %v19 = vld [vmem:[%s0 + $0x28] sm:$0xff]
  %v20 = vld [vmem:[%s0 + $0x30] sm:$0xff]
  %v21 = vld [vmem:[%s0 + $0x38] sm:$0xff]
  %v22 = vld [vmem:[%s0 + $0x40] sm:$0xff]
  %v23 = vld [vmem:[%s0 + $0x48] sm:$0xff]
  %v24 = vld [vmem:[%s0 + $0x50] sm:$0xff]
  %v25 = vld [vmem:[%s0 + $0x58] sm:$0xff]
  %v26 = vld [vmem:[%s0 + $0x60] sm:$0xff]
  %v27 = vld [vmem:[%s0 + $0x68] sm:$0xff]
  %v28 = vld [vmem:[%s0 + $0x70] sm:$0xff]
  %v29 = vld [vmem:[%s0 + $0x78] sm:$0xff]
  %v30 = vld [vmem:[%s0 + $0x80] sm:$0xff]
  %v31 = vld [vmem:[%s0 + $0x88] sm:$0xff]
  %v32 = vld [vmem:[%s0 + $0x90] sm:$0xff]
  %v33 = vld [vmem:[%s0 + $0x98] sm:$0xff]
  %v34 = vld [vmem:[%s0 + $0xa0] sm:$0x11]
  %v35 = vld [vmem:[%s1] sm:$0xf]
  %v36 = vld [vmem:[%s1 + $0x4] sm:$0xf]
  %v37 = vld [vmem:[%s1 + $0x8] sm:$0xf]
  %v38 = vld [vmem:[%s1 + $0xc] sm:$0xf]
  %v39 = vld [vmem:[%s1 + $0x10] sm:$0xf]
  %v40 = vld [vmem:[%s1 + $0x14] sm:$0xf]
  %v41 = vld [vmem:[%s1 + $0x18] sm:$0xf]
  %v42 = vld [vmem:[%s1 + $0x1c] sm:$0xf]
  %v43 = vld [vmem:[%s1 + $0x20] sm:$0xf]
  %v44 = vld [vmem:[%s1 + $0x24] sm:$0xf]
  %v45 = vld [vmem:[%s1 + $0x28] sm:$0xf]
  %v46 = vld [vmem:[%s1 + $0x2c] sm:$0xf]
  %v47 = vld [vmem:[%s1 + $0x30] sm:$0xf]
  %v48 = vld [vmem:[%s1 + $0x34] sm:$0xf]
  %v49 = vld [vmem:[%s1 + $0x38] sm:$0xf]
  %v50 = vld [vmem:[%s1 + $0x3c] sm:$0xf]
  %v51 = vld [vmem:[%s1 + $0x40] sm:$0xf]
  %v52 = vld [vmem:[%s1 + $0x44] sm:$0xf]
  %v53 = vld [vmem:[%s1 + $0x48] sm:$0xf]
  %v54 = vld [vmem:[%s1 + $0x4c] sm:$0xf]
  %v55 = vld [vmem:[%s1 + $0x50] sm:$0xf]
  %v56 = vld [vmem:[%s1 + $0x54] sm:$0xf]
  %v57 = vld [vmem:[%s1 + $0x58] sm:$0xf]
  %v58 = vld [vmem:[%s1 + $0x5c] sm:$0xf]
  %v59 = vld [vmem:[%s1 + $0x60] sm:$0xf]
  %v60 = vld [vmem:[%s1 + $0x64] sm:$0xf]
  %v61 = vld [vmem:[%s1 + $0x68] sm:$0xf]
  %v62 = vld [vmem:[%s1 + $0x6c] sm:$0xf]
  %v63 = vld [vmem:[%s1 + $0x70] sm:$0xf]
  %v64 = vld [vmem:[%s1 + $0x74] sm:$0xf]
  %v65 = vld [vmem:[%s1 + $0x78] sm:$0xf]
  %v66 = vld [vmem:[%s1 + $0x7c] sm:$0xf]
  %v88 = vunpack.c.l.b16 %v14
  %v89 = vunpack.c.h.b16 %v14
  %v90 = vunpack.c.l.b16 %v15
  %v91 = vunpack.c.h.b16 %v15
  %v92 = vunpack.c.l.b16 %v16
  %v93 = vunpack.c.h.b16 %v16
  %v94 = vunpack.c.l.b16 %v17
  %v95 = vunpack.c.h.b16 %v17
  %v96 = vunpack.c.l.b16 %v18
  %v97 = vunpack.c.h.b16 %v18
  %v98 = vunpack.c.l.b16 %v19
  %v99 = vunpack.c.h.b16 %v19
  %v100 = vunpack.c.l.b16 %v20
  %v101 = vunpack.c.h.b16 %v20
  %v102 = vunpack.c.l.b16 %v21
  %v103 = vunpack.c.h.b16 %v21
  %v104 = vunpack.c.l.b16 %v22
  %v105 = vunpack.c.h.b16 %v22
  %v106 = vunpack.c.l.b16 %v23
  %v107 = vunpack.c.h.b16 %v23
  %v108 = vunpack.c.l.b16 %v24
  %v109 = vunpack.c.h.b16 %v24
  %v110 = vunpack.c.l.b16 %v25
  %v111 = vunpack.c.h.b16 %v25
  %v112 = vunpack.c.l.b16 %v26
  %v113 = vunpack.c.h.b16 %v26
  %v114 = vunpack.c.l.b16 %v27
  %v115 = vunpack.c.h.b16 %v27
  %v116 = vunpack.c.l.b16 %v28
  %v117 = vunpack.c.h.b16 %v28
  %v118 = vunpack.c.l.b16 %v29
  %v119 = vunpack.c.h.b16 %v29
  %v120 = vunpack.c.l.b16 %v30
  %v121 = vunpack.c.h.b16 %v30
  %v122 = vunpack.c.l.b16 %v31
  %v123 = vunpack.c.h.b16 %v31
  %v124 = vunpack.c.l.b16 %v32
  %v125 = vunpack.c.h.b16 %v32
  %v126 = vunpack.c.l.b16 %v33
  %v127 = vunpack.c.h.b16 %v33
  %v128 = vunpack.c.l.b16 %v34
  %v129 = vunpack.c.h.b16 %v34
  %v130 = vpack.c.b16 %v90, %v88
  %v131 = vpack.c.b16 %v91, %v89
  %v132 = vpack.c.b16 %v94, %v92
  %v133 = vpack.c.b16 %v95, %v93
  %v134 = vpack.c.b16 %v98, %v96
  %v135 = vpack.c.b16 %v99, %v97
  %v136 = vpack.c.b16 %v102, %v100
  %v137 = vpack.c.b16 %v103, %v101
  %v138 = vpack.c.b16 %v106, %v104
  %v139 = vpack.c.b16 %v107, %v105
  %v140 = vpack.c.b16 %v110, %v108
  %v141 = vpack.c.b16 %v111, %v109
  %v142 = vpack.c.b16 %v114, %v112
  %v143 = vpack.c.b16 %v115, %v113
  %v144 = vpack.c.b16 %v118, %v116
  %v145 = vpack.c.b16 %v119, %v117
  %v146 = vpack.c.b16 %v122, %v120
  %v147 = vpack.c.b16 %v123, %v121
  %v148 = vpack.c.b16 %v126, %v124
  %v149 = vpack.c.b16 %v127, %v125
  %v150 = vpack.c.b16 %v128, %v128
  %v151 = vpack.c.b16 %v129, %v129
  %v206 = vunpack.c.l.b16 %v35
  %v207 = vunpack.c.l.b16 %v36
  %v208 = vunpack.c.l.b16 %v37
  %v209 = vunpack.c.l.b16 %v38
  %v210 = vunpack.c.l.b16 %v39
  %v211 = vunpack.c.l.b16 %v40
  %v212 = vunpack.c.l.b16 %v41
  %v213 = vunpack.c.l.b16 %v42
  %v214 = vunpack.c.l.b16 %v43
  %v215 = vunpack.c.l.b16 %v44
  %v216 = vunpack.c.l.b16 %v45
  %v217 = vunpack.c.l.b16 %v46
  %v218 = vunpack.c.l.b16 %v47
  %v219 = vunpack.c.l.b16 %v48
  %v220 = vunpack.c.l.b16 %v49
  %v221 = vunpack.c.l.b16 %v50
  %v222 = vunpack.c.l.b16 %v51
  %v223 = vunpack.c.l.b16 %v52
  %v224 = vunpack.c.l.b16 %v53
  %v225 = vunpack.c.l.b16 %v54
  %v226 = vunpack.c.l.b16 %v55
  %v227 = vunpack.c.l.b16 %v56
  %v228 = vunpack.c.l.b16 %v57
  %v229 = vunpack.c.l.b16 %v58
  %v230 = vunpack.c.l.b16 %v59
  %v231 = vunpack.c.l.b16 %v60
  %v232 = vunpack.c.l.b16 %v61
  %v233 = vunpack.c.l.b16 %v62
  %v234 = vunpack.c.l.b16 %v63
  %v235 = vunpack.c.l.b16 %v64
  %v236 = vunpack.c.l.b16 %v65
  %v237 = vunpack.c.l.b16 %v66
  %v238 = vpack.c.b16 %v207, %v206
  %v239 = vpack.c.b16 %v209, %v208
  %v240 = vpack.c.b16 %v211, %v210
  %v241 = vpack.c.b16 %v213, %v212
  %v242 = vpack.c.b16 %v215, %v214
  %v243 = vpack.c.b16 %v217, %v216
  %v244 = vpack.c.b16 %v219, %v218
  %v245 = vpack.c.b16 %v221, %v220
  %v246 = vpack.c.b16 %v223, %v222
  %v247 = vpack.c.b16 %v225, %v224
  %v248 = vpack.c.b16 %v227, %v226
  %v249 = vpack.c.b16 %v229, %v228
  %v250 = vpack.c.b16 %v231, %v230
  %v251 = vpack.c.b16 %v233, %v232
  %v252 = vpack.c.b16 %v235, %v234
  %v253 = vpack.c.b16 %v237, %v236
  %270 = vmatpush.bf16.msra.mxu0 %v245
  %271 = vmatpush.bf16.msra.mxu0 %v244
  %272 = vmatpush.bf16.msra.mxu0 %v243
  %273 = vmatpush.bf16.msra.mxu0 %v242
  %274 = vmatpush.bf16.msra.mxu0 %v241
  %275 = vmatpush.bf16.msra.mxu0 %v240
  %276 = vmatpush.bf16.msra.mxu0 %v239
  %277 = vmatpush.bf16.msra.mxu0 %v238
  %278 = vmatmul.bf16.gmra.mxu0 %v130
  %v279 = vpop.f32.mrf.mxu0
  %v280 = vadd.f32 0.0, %v279
  %v281 = vpop.f32.mrf.mxu0
  %v282 = vadd.f32 0.0, %v281
  %283 = vmatmul.bf16.gmra.mxu0 %v132
  %v284 = vpop.f32.mrf.mxu0
  %v285 = vadd.f32 0.0, %v284
  %v286 = vpop.f32.mrf.mxu0
  %v287 = vadd.f32 0.0, %v286
  %288 = vmatmul.bf16.gmra.mxu0 %v134
  %v289 = vpop.f32.mrf.mxu0
  %v290 = vadd.f32 0.0, %v289
  %v291 = vpop.f32.mrf.mxu0
  %v292 = vadd.f32 0.0, %v291
  %293 = vmatmul.bf16.gmra.mxu0 %v136
  %v294 = vpop.f32.mrf.mxu0
  %v295 = vadd.f32 0.0, %v294
  %v296 = vpop.f32.mrf.mxu0
  %v297 = vadd.f32 0.0, %v296
  %298 = vmatmul.bf16.gmra.mxu0 %v138
  %v299 = vpop.f32.mrf.mxu0
  %v300 = vadd.f32 0.0, %v299
  %v301 = vpop.f32.mrf.mxu0
  %v302 = vadd.f32 0.0, %v301
  %303 = vmatmul.bf16.gmra.mxu0 %v140
  %v304 = vpop.f32.mrf.mxu0
  %v305 = vadd.f32 0.0, %v304
  %v306 = vpop.f32.mrf.mxu0
  %v307 = vadd.f32 0.0, %v306
  %308 = vmatmul.bf16.gmra.mxu0 %v142
  %v309 = vpop.f32.mrf.mxu0
  %v310 = vadd.f32 0.0, %v309
  %v311 = vpop.f32.mrf.mxu0
  %v312 = vadd.f32 0.0, %v311
  %313 = vmatmul.bf16.gmra.mxu0 %v144
  %v314 = vpop.f32.mrf.mxu0
  %v315 = vadd.f32 0.0, %v314
  %v316 = vpop.f32.mrf.mxu0
  %v317 = vadd.f32 0.0, %v316
  %318 = vmatmul.bf16.gmra.mxu0 %v146
  %v319 = vpop.f32.mrf.mxu0
  %v320 = vadd.f32 0.0, %v319
  %v321 = vpop.f32.mrf.mxu0
  %v322 = vadd.f32 0.0, %v321
  %323 = vmatmul.bf16.gmra.mxu0 %v148
  %v324 = vpop.f32.mrf.mxu0
  %v325 = vadd.f32 0.0, %v324
  %v326 = vpop.f32.mrf.mxu0
  %v327 = vadd.f32 0.0, %v326
  %328 = vmatmul.bf16.gmra.mxu0 %v150
  %v329 = vpop.f32.mrf.mxu0
  %v330 = vadd.f32 0.0, %v329
  %v331 = vpop.f32.mrf.mxu0
  %332 = vdwg.mxu0
  %333 = vmatpush.bf16.msra.mxu0 %v253
  %334 = vmatpush.bf16.msra.mxu0 %v252
  %335 = vmatpush.bf16.msra.mxu0 %v251
  %336 = vmatpush.bf16.msra.mxu0 %v250
  %337 = vmatpush.bf16.msra.mxu0 %v249
  %338 = vmatpush.bf16.msra.mxu0 %v248
  %339 = vmatpush.bf16.msra.mxu0 %v247
  %340 = vmatpush.bf16.msra.mxu0 %v246
  %341 = vmatmul.bf16.gmra.mxu0 %v131
  %v342 = vpop.f32.mrf.mxu0
  %v343 = vadd.f32 %v280, %v342
  %v344 = vpop.f32.mrf.mxu0
  %v345 = vadd.f32 %v282, %v344
  %346 = vmatmul.bf16.gmra.mxu0 %v133
  %v347 = vpop.f32.mrf.mxu0
  %v348 = vadd.f32 %v285, %v347
  %v349 = vpop.f32.mrf.mxu0
  %v350 = vadd.f32 %v287, %v349
  %351 = vmatmul.bf16.gmra.mxu0 %v135
  %v352 = vpop.f32.mrf.mxu0
  %v353 = vadd.f32 %v290, %v352
  %v354 = vpop.f32.mrf.mxu0
  %v355 = vadd.f32 %v292, %v354
  %356 = vmatmul.bf16.gmra.mxu0 %v137
  %v357 = vpop.f32.mrf.mxu0
  %v358 = vadd.f32 %v295, %v357
  %v359 = vpop.f32.mrf.mxu0
  %v360 = vadd.f32 %v297, %v359
  %361 = vmatmul.bf16.gmra.mxu0 %v139
  %v362 = vpop.f32.mrf.mxu0
  %v363 = vadd.f32 %v300, %v362
  %v364 = vpop.f32.mrf.mxu0
  %v365 = vadd.f32 %v302, %v364
  %366 = vmatmul.bf16.gmra.mxu0 %v141
  %v367 = vpop.f32.mrf.mxu0
  %v368 = vadd.f32 %v305, %v367
  %v369 = vpop.f32.mrf.mxu0
  %v370 = vadd.f32 %v307, %v369
  %371 = vmatmul.bf16.gmra.mxu0 %v143
  %v372 = vpop.f32.mrf.mxu0
  %v373 = vadd.f32 %v310, %v372
  %v374 = vpop.f32.mrf.mxu0
  %v375 = vadd.f32 %v312, %v374
  %376 = vmatmul.bf16.gmra.mxu0 %v145
  %v377 = vpop.f32.mrf.mxu0
  %v378 = vadd.f32 %v315, %v377
  %v379 = vpop.f32.mrf.mxu0
  %v380 = vadd.f32 %v317, %v379
  %381 = vmatmul.bf16.gmra.mxu0 %v147
  %v382 = vpop.f32.mrf.mxu0
  %v383 = vadd.f32 %v320, %v382
  %v384 = vpop.f32.mrf.mxu0
  %v385 = vadd.f32 %v322, %v384
  %386 = vmatmul.bf16.gmra.mxu0 %v149
  %v387 = vpop.f32.mrf.mxu0
  %v388 = vadd.f32 %v325, %v387
  %v389 = vpop.f32.mrf.mxu0
  %v390 = vadd.f32 %v327, %v389
  %391 = vmatmul.bf16.gmra.mxu0 %v151
  %v392 = vpop.f32.mrf.mxu0
  %v393 = vadd.f32 %v330, %v392
  %v394 = vpop.f32.mrf.mxu0
  %395 = vdwg.mxu0
  %p396 = scmp.eq.s32.totalorder 0, 0
  // Predicated region
  $region10: #{generator_forward.11} parent=0 // pred_check
    %p397 = pneg %p396
  $region11: #{generator_forward.11} parent=0 // pred_check_branch
    %399 = sbr.rel (%p397) target = $region13
  $region12: #{generator_forward.11} parent=0 // pred_region
    %400 = vst [vmem:[%s3] sm:$0x1] 0.0
    %401 = vst [vmem:[%s4] sm:$0x1] 0.0
  $region13: #{generator_forward.11} parent=0 // pred_fallthru
    _
  %v402 = vld [vmem:[%s3] sm:$0x1]
  %v403 = vadd.f32 %v343, %v345
  %v404 = vadd.f32 %v403, %v348
  %v405 = vadd.f32 %v404, %v350
  %v406 = vadd.f32 %v405, %v353
  %v407 = vadd.f32 %v406, %v355
  %v408 = vadd.f32 %v407, %v358
  %v409 = vadd.f32 %v408, %v360
  %v410 = vadd.f32 %v409, %v363
  %v411 = vadd.f32 %v410, %v365
  %v412 = vadd.f32 %v411, %v368
  %v413 = vadd.f32 %v412, %v370
  %v414 = vadd.f32 %v413, %v373
  %v415 = vadd.f32 %v414, %v375
  %v416 = vadd.f32 %v415, %v378
  %v417 = vadd.f32 %v416, %v380
  %v418 = vadd.f32 %v417, %v383
  %v419 = vadd.f32 %v418, %v385
  %v420 = vadd.f32 %v419, %v388
  %v421 = vadd.f32 %v420, %v390
  %vm422 = vcmask 1041408
  %v423 = vsel %vm422, %v393, 0.0
  %v424 = vadd.f32 %v421, %v423
  %v425 = vrot.slane %v424, 4
  %v426 = vadd.f32 %v424, %v425
  %v427 = vrot.slane %v426, 2
  %v428 = vadd.f32 %v426, %v427
  %v429 = vrot.slane %v428, 1
  %v430 = vadd.f32 %v428, %v429
  %v431 = vadd.f32 %v402, %v430
  %432 = vst [vmem:[%s3] sm:$0x1] %v431
  %v433 = vld [vmem:[%s4] sm:$0x1]
  %v434 = vmul.f32 %v343, %v343
  %v435 = vmul.f32 %v345, %v345
  %v436 = vmul.f32 %v348, %v348
  %v437 = vmul.f32 %v350, %v350
  %v438 = vmul.f32 %v353, %v353
  %v439 = vmul.f32 %v355, %v355
  %v440 = vmul.f32 %v358, %v358
  %v441 = vmul.f32 %v360, %v360
  %v442 = vmul.f32 %v363, %v363
  %v443 = vmul.f32 %v365, %v365
  %v444 = vmul.f32 %v368, %v368
  %v445 = vmul.f32 %v370, %v370
  %v446 = vmul.f32 %v373, %v373
  %v447 = vmul.f32 %v375, %v375
  %v448 = vmul.f32 %v378, %v378
  %v449 = vmul.f32 %v380, %v380
  %v450 = vmul.f32 %v383, %v383
  %v451 = vmul.f32 %v385, %v385
  %v452 = vmul.f32 %v388, %v388
  %v453 = vmul.f32 %v390, %v390
  %v454 = vmul.f32 %v393, %v393
  %v455 = vadd.f32 %v434, %v435
  %v456 = vadd.f32 %v455, %v436
  %v457 = vadd.f32 %v456, %v437
  %v458 = vadd.f32 %v457, %v438
  %v459 = vadd.f32 %v458, %v439
  %v460 = vadd.f32 %v459, %v440
  %v461 = vadd.f32 %v460, %v441
  %v462 = vadd.f32 %v461, %v442
  %v463 = vadd.f32 %v462, %v443
  %v464 = vadd.f32 %v463, %v444
  %v465 = vadd.f32 %v464, %v445
  %v466 = vadd.f32 %v465, %v446
  %v467 = vadd.f32 %v466, %v447
  %v468 = vadd.f32 %v467, %v448
  %v469 = vadd.f32 %v468, %v449
  %v470 = vadd.f32 %v469, %v450
  %v471 = vadd.f32 %v470, %v451
  %v472 = vadd.f32 %v471, %v452
  %v473 = vadd.f32 %v472, %v453
  %v474 = vsel %vm422, %v454, 0.0
  %v475 = vadd.f32 %v473, %v474
  %v476 = vrot.slane %v475, 4
  %v477 = vadd.f32 %v475, %v476
  %v478 = vrot.slane %v477, 2
  %v479 = vadd.f32 %v477, %v478
  %v480 = vrot.slane %v479, 1
  %v481 = vadd.f32 %v479, %v480
  %v482 = vadd.f32 %v433, %v481
  %483 = vst [vmem:[%s4] sm:$0x1] %v482
  %v484 = vpack.c.bf16 %v343, %v343
  %v485 = vpack.c.bf16 %v345, %v345
  %v486 = vpack.c.bf16 %v348, %v348
  %v487 = vpack.c.bf16 %v350, %v350
  %v488 = vpack.c.bf16 %v353, %v353
  %v489 = vpack.c.bf16 %v355, %v355
  %v490 = vpack.c.bf16 %v358, %v358
  %v491 = vpack.c.bf16 %v360, %v360
  %v492 = vpack.c.bf16 %v363, %v363
  %v493 = vpack.c.bf16 %v365, %v365
  %v494 = vpack.c.bf16 %v368, %v368
  %v495 = vpack.c.bf16 %v370, %v370
  %v496 = vpack.c.bf16 %v373, %v373
  %v497 = vpack.c.bf16 %v375, %v375
  %v498 = vpack.c.bf16 %v378, %v378
  %v499 = vpack.c.bf16 %v380, %v380
  %v500 = vpack.c.bf16 %v383, %v383
  %v501 = vpack.c.bf16 %v385, %v385
  %v502 = vpack.c.bf16 %v388, %v388
  %v503 = vpack.c.bf16 %v390, %v390
  %v504 = vpack.c.bf16 %v393, %v393
  %505 = vst [vmem:[%s2] sm:$0xf] %v484
  %506 = vst [vmem:[%s2 + $0x4] sm:$0xf] %v485
  %507 = vst [vmem:[%s2 + $0x8] sm:$0xf] %v486
  %508 = vst [vmem:[%s2 + $0xc] sm:$0xf] %v487
  %509 = vst [vmem:[%s2 + $0x10] sm:$0xf] %v488
  %510 = vst [vmem:[%s2 + $0x14] sm:$0xf] %v489
  %511 = vst [vmem:[%s2 + $0x18] sm:$0xf] %v490
  %512 = vst [vmem:[%s2 + $0x1c] sm:$0xf] %v491
  %513 = vst [vmem:[%s2 + $0x20] sm:$0xf] %v492
  %514 = vst [vmem:[%s2 + $0x24] sm:$0xf] %v493
  %515 = vst [vmem:[%s2 + $0x28] sm:$0xf] %v494
  %516 = vst [vmem:[%s2 + $0x2c] sm:$0xf] %v495
  %517 = vst [vmem:[%s2 + $0x30] sm:$0xf] %v496
  %518 = vst [vmem:[%s2 + $0x34] sm:$0xf] %v497
  %519 = vst [vmem:[%s2 + $0x38] sm:$0xf] %v498
  %520 = vst [vmem:[%s2 + $0x3c] sm:$0xf] %v499
  %521 = vst [vmem:[%s2 + $0x40] sm:$0xf] %v500
  %522 = vst [vmem:[%s2 + $0x44] sm:$0xf] %v501
  %523 = vst [vmem:[%s2 + $0x48] sm:$0xf] %v502
  %524 = vst [vmem:[%s2 + $0x4c] sm:$0xf] %v503
  %525 = vst [vmem:[%s2 + $0x50] sm:$0x1] %v504
  // Predicated region
  $region14: #{generator_forward.11} parent=0 // pred_check
    _
  $region15: #{generator_forward.11} parent=0 // pred_check_branch
    %527 = sbr.rel (0) target = $region17
  $region16: #{generator_forward.11} parent=0 // pred_region
    _
  $region17: #{generator_forward.11} parent=0 // pred_fallthru
    _
  // Predicated region
  $region18: #{generator_forward.11} parent=0 // pred_check
    _
  $region19: #{generator_forward.11} parent=0 // pred_check_branch
    %529 = sbr.rel (0) target = $region21
  $region20: #{generator_forward.11} parent=0 // pred_region
    _
  $region21: #{generator_forward.11} parent=0 // pred_fallthru
    _
  // Predicated region
  $region22: #{generator_forward.11} parent=0 // pred_check
    _
  $region23: #{generator_forward.11} parent=0 // pred_check_branch
    %531 = sbr.rel (0) target = $region25
  $region24: #{generator_forward.11} parent=0 // pred_region
    _
  $region25: #{generator_forward.11} parent=0 // pred_fallthru
    _
  // Predicated region
  $region26: #{generator_forward.11} parent=0 // pred_check
    _
  $region27: #{generator_forward.11} parent=0 // pred_check_branch
    %533 = sbr.rel (0) target = $region29
  $region28: #{generator_forward.11} parent=0 // pred_region
    _
  $region29: #{generator_forward.11} parent=0 // pred_fallthru
    _
  // Predicated region
  $region30: #{generator_forward.11} parent=0 // pred_check
    _
  $region31: #{generator_forward.11} parent=0 // pred_check_branch
    %535 = sbr.rel (0) target = $region33
  $region32: #{generator_forward.11} parent=0 // pred_region
    _
  $region33: #{generator_forward.11} parent=0 // pred_fallthru
    _
  // Predicated region
  $region34: #{generator_forward.11} parent=0 // pred_check
    _
  $region35: #{generator_forward.11} parent=0 // pred_check_branch
    %537 = sbr.rel (0) target = $region37
  $region36: #{generator_forward.11} parent=0 // pred_region
    _
  $region37: #{generator_forward.11} parent=0 // pred_fallthru
    _

// kernel: tile.57
$region0: #{tile.57}
  #allocation0 [shape = 's32[1]{0}', space=sflag, size = 0x4, scoped, tag = 'scoped memory for tile.57']
  %s0 = inlined_call_operand.vmem [shape: f32[32], index: 0, kind: input, shape index: {}]
  %s1 = inlined_call_operand.vmem [shape: f32[4,32], index: 1, kind: output, shape index: {}]
  // Predicated region
  $region2: #{tile.57} parent=0 // pred_check
    _
  $region3: #{tile.57} parent=0 // pred_check_branch
    %3 = sbr.rel (0) target = $region5
  $region4: #{tile.57} parent=0 // pred_region
    _
  $region5: #{tile.57} parent=0 // pred_fallthru
    _
  %v4 = vld [vmem:[%s0] ss:$0 sm:$0xff]
  %5 = vst [vmem:[%s1] sm:$0xf] %v4

// kernel: tile.59
$region0: #{tile.59}
  %s0 = inlined_call_operand.vmem [shape: f32[4,32], index: 0, kind: input, shape index: {}]
  %s1 = inlined_call_operand.vmem [shape: f32[1,128], index: 1, kind: output, shape index: {}]
  $region1: #{tile.59} parent=0
    #allocation0 [shape = 'u8[4096]{0}', space=vmem, size = 0x1000, scoped, tag = 'scoped mem for output reshape']
    #allocation1 [shape = 'u8[4096]{0}', space=vmem, size = 0x1000, scoped, tag = 'scoped mem for input reshape']
    %s3 = ssub.s32 16, 1
    %v4 = vld [vmem:[%s0] sm:%s3]
    %5 = vst [vmem:[#allocation1] sm:%s3] %v4
    %v6 = vld [vmem:[#allocation1] sm:$0x1]
    %vm7 = vcmask 261120
    %8 = vst.msk [vmem:[#allocation0] sm:$0x1] %vm7, %v6
    %s9 = scalar_lea.vmem [#allocation1], 3
    %v10 = vld [vmem:[%s9] sm:$0x1]
    %11 = vrot.lane.b32.xlu0 %v10, 96
    %v12 = vpop.permute.xlu0 %11
    %vm13 = vcmask 1048320
    %14 = vst.msk [vmem:[#allocation0] sm:$0x1] %vm13, %v12
    %s15 = scalar_lea.vmem [#allocation1], 2
    %v16 = vld [vmem:[%s15] sm:$0x1]
    %17 = vrot.lane.b32.xlu0 %v16, 64
    %v18 = vpop.permute.xlu0 %17
    %vm19 = vcmask 785920
    %20 = vst.msk [vmem:[#allocation0] sm:$0x1] %vm19, %v18
    %s21 = scalar_lea.vmem [#allocation1], 1
    %v22 = vld [vmem:[%s21] sm:$0x1]
    %23 = vrot.lane.b32.xlu0 %v22, 32
    %v24 = vpop.permute.xlu0 %23
    %vm25 = vcmask 523520
    %26 = vst.msk [vmem:[#allocation0] sm:$0x1] %vm25, %v24
    %s28 = ssub.s32 2, 1
    %v29 = vld [vmem:[#allocation0] sm:%s28]
    %s31 = ssub.s32 2, 1
    %32 = vst [vmem:[%s1] sm:%s31] %v29

// kernel: generator_forward.12
$region0: #{generator_forward.12}
  #allocation0 [shape = 'u32[]', space=smem, size = 0x4, offset = 0x4, fixed_abs, tag = 'smem constant byte address 0x4 - core index']
  #allocation1 [shape = 'u32[72,128]{1,0:T(1,128)}', space=vmem, size = 0x9000, scoped, tag = 'internal scratch']
  %s0 = inlined_call_operand.vmem [shape: bf16[162,128], index: 0, kind: input, shape index: {}]
  %s1 = inlined_call_operand.vmem [shape: f32[1,128], index: 1, kind: input, shape index: {}]
  %s2 = inlined_call_operand.vmem [shape: f32[1,128], index: 2, kind: input, shape index: {}]
  %s3 = inlined_call_operand.vmem [shape: bf16[162,128], index: 3, kind: output, shape index: {}]
  %s4 = sld [smem:[#allocation0]]
  $region22: #{generator_forward.12} parent=0
    _
  %s6 = ssub.s32 1, %s4
  %s7 = scalar_select 0, %s6, %s4
  // Predicated region
  $region2: #{generator_forward.12} parent=0 // pred_check
    _
  $region3: #{generator_forward.12} parent=0 // pred_check_branch
    %9 = sbr.rel (0) target = $region5
  $region4: #{generator_forward.12} parent=0 // pred_region
    _
  $region5: #{generator_forward.12} parent=0 // pred_fallthru
    _
  // Predicated region
  $region6: #{generator_forward.12} parent=0 // pred_check
    _
  $region7: #{generator_forward.12} parent=0 // pred_check_branch
    %11 = sbr.rel (0) target = $region9
  $region8: #{generator_forward.12} parent=0 // pred_region
    _
  $region9: #{generator_forward.12} parent=0 // pred_fallthru
    _
  // Predicated region
  $region10: #{generator_forward.12} parent=0 // pred_check
    _
  $region11: #{generator_forward.12} parent=0 // pred_check_branch
    %13 = sbr.rel (0) target = $region13
  $region12: #{generator_forward.12} parent=0 // pred_region
    _
  $region13: #{generator_forward.12} parent=0 // pred_fallthru
    _
  %v14 = vld [vmem:[%s0] sm:$0xf]
  %v15 = vld [vmem:[%s0 + $0x4] sm:$0xf]
  %v16 = vld [vmem:[%s0 + $0x8] sm:$0xf]
  %v17 = vld [vmem:[%s0 + $0xc] sm:$0xf]
  %v18 = vld [vmem:[%s0 + $0x10] sm:$0xf]
  %v19 = vld [vmem:[%s0 + $0x14] sm:$0xf]
  %v20 = vld [vmem:[%s0 + $0x18] sm:$0xf]
  %v21 = vld [vmem:[%s0 + $0x1c] sm:$0xf]
  %v22 = vld [vmem:[%s0 + $0x20] sm:$0xf]
  %v23 = vld [vmem:[%s0 + $0x24] sm:$0xf]
  %v24 = vld [vmem:[%s0 + $0x28] sm:$0xf]
  %v25 = vld [vmem:[%s0 + $0x2c] sm:$0xf]
  %v26 = vld [vmem:[%s0 + $0x30] sm:$0xf]
  %v27 = vld [vmem:[%s0 + $0x34] sm:$0xf]
  %v28 = vld [vmem:[%s0 + $0x38] sm:$0xf]
  %v29 = vld [vmem:[%s0 + $0x3c] sm:$0xf]
  %v30 = vld [vmem:[%s0 + $0x40] sm:$0xf]
  %v31 = vld [vmem:[%s0 + $0x44] sm:$0xf]
  %v32 = vld [vmem:[%s0 + $0x48] sm:$0xf]
  %v33 = vld [vmem:[%s0 + $0x4c] sm:$0xf]
  %v34 = vld [vmem:[%s0 + $0x50] sm:$0x1]
  %v35 = vunpack.c.l.bf16 %v14
  %v36 = vunpack.c.l.bf16 %v15
  %v37 = vunpack.c.l.bf16 %v16
  %v38 = vunpack.c.l.bf16 %v17
  %v39 = vunpack.c.l.bf16 %v18
  %v40 = vunpack.c.l.bf16 %v19
  %v41 = vunpack.c.l.bf16 %v20
  %v42 = vunpack.c.l.bf16 %v21
  %v43 = vunpack.c.l.bf16 %v22
  %v44 = vunpack.c.l.bf16 %v23
  %v45 = vunpack.c.l.bf16 %v24
  %v46 = vunpack.c.l.bf16 %v25
  %v47 = vunpack.c.l.bf16 %v26
  %v48 = vunpack.c.l.bf16 %v27
  %v49 = vunpack.c.l.bf16 %v28
  %v50 = vunpack.c.l.bf16 %v29
  %v51 = vunpack.c.l.bf16 %v30
  %v52 = vunpack.c.l.bf16 %v31
  %v53 = vunpack.c.l.bf16 %v32
  %v54 = vunpack.c.l.bf16 %v33
  %v55 = vunpack.c.l.bf16 %v34
  %v56 = vld [vmem:[%s1] sm:$0x1]
  %v58 = vperm.slane %v56, 0
  %v60 = vmul.f32 %v35, %v58
  %v61 = vmul.f32 %v36, %v58
  %v62 = vmul.f32 %v37, %v58
  %v63 = vmul.f32 %v38, %v58
  %v64 = vmul.f32 %v39, %v58
  %v65 = vmul.f32 %v40, %v58
  %v66 = vmul.f32 %v41, %v58
  %v67 = vmul.f32 %v42, %v58
  %v68 = vmul.f32 %v43, %v58
  %v69 = vmul.f32 %v44, %v58
  %v70 = vmul.f32 %v45, %v58
  %v71 = vmul.f32 %v46, %v58
  %v72 = vmul.f32 %v47, %v58
  %v73 = vmul.f32 %v48, %v58
  %v74 = vmul.f32 %v49, %v58
  %v75 = vmul.f32 %v50, %v58
  %v76 = vmul.f32 %v51, %v58
  %v77 = vmul.f32 %v52, %v58
  %v78 = vmul.f32 %v53, %v58
  %v79 = vmul.f32 %v54, %v58
  %v80 = vmul.f32 %v55, %v58
  %v81 = vld [vmem:[%s2] sm:$0x1]
  %v83 = vperm.slane %v81, 0
  %v85 = vadd.f32 %v60, %v83
  %v86 = vadd.f32 %v61, %v83
  %v87 = vadd.f32 %v62, %v83
  %v88 = vadd.f32 %v63, %v83
  %v89 = vadd.f32 %v64, %v83
  %v90 = vadd.f32 %v65, %v83
  %v91 = vadd.f32 %v66, %v83
  %v92 = vadd.f32 %v67, %v83
  %v93 = vadd.f32 %v68, %v83
  %v94 = vadd.f32 %v69, %v83
  %v95 = vadd.f32 %v70, %v83
  %v96 = vadd.f32 %v71, %v83
  %v97 = vadd.f32 %v72, %v83
  %v98 = vadd.f32 %v73, %v83
  %v99 = vadd.f32 %v74, %v83
  %v100 = vadd.f32 %v75, %v83
  %v101 = vadd.f32 %v76, %v83
  %v102 = vadd.f32 %v77, %v83
  %v103 = vadd.f32 %v78, %v83
  %v104 = vadd.f32 %v79, %v83
  %v105 = vadd.f32 %v80, %v83
  %v106 = vmax.f32 %v85, 0.0
  %v107 = vmax.f32 %v86, 0.0
  %v108 = vmax.f32 %v87, 0.0
  %v109 = vmax.f32 %v88, 0.0
  %v110 = vmax.f32 %v89, 0.0
  %v111 = vmax.f32 %v90, 0.0
  %v112 = vmax.f32 %v91, 0.0
  %v113 = vmax.f32 %v92, 0.0
  %v114 = vmax.f32 %v93, 0.0
  %v115 = vmax.f32 %v94, 0.0
  %v116 = vmax.f32 %v95, 0.0
  %v117 = vmax.f32 %v96, 0.0
  %v118 = vmax.f32 %v97, 0.0
  %v119 = vmax.f32 %v98, 0.0
  %v120 = vmax.f32 %v99, 0.0
  %v121 = vmax.f32 %v100, 0.0
  %v122 = vmax.f32 %v101, 0.0
  %v123 = vmax.f32 %v102, 0.0
  %v124 = vmax.f32 %v103, 0.0
  %v125 = vmax.f32 %v104, 0.0
  %v126 = vmax.f32 %v105, 0.0
  %v127 = vpack.c.bf16 %v106, %v106
  %v128 = vpack.c.bf16 %v107, %v107
  %v129 = vpack.c.bf16 %v108, %v108
  %v130 = vpack.c.bf16 %v109, %v109
  %v131 = vpack.c.bf16 %v110, %v110
  %v132 = vpack.c.bf16 %v111, %v111
  %v133 = vpack.c.bf16 %v112, %v112
  %v134 = vpack.c.bf16 %v113, %v113
  %v135 = vpack.c.bf16 %v114, %v114
  %v136 = vpack.c.bf16 %v115, %v115
  %v137 = vpack.c.bf16 %v116, %v116
  %v138 = vpack.c.bf16 %v117, %v117
  %v139 = vpack.c.bf16 %v118, %v118
  %v140 = vpack.c.bf16 %v119, %v119
  %v141 = vpack.c.bf16 %v120, %v120
  %v142 = vpack.c.bf16 %v121, %v121
  %v143 = vpack.c.bf16 %v122, %v122
  %v144 = vpack.c.bf16 %v123, %v123
  %v145 = vpack.c.bf16 %v124, %v124
  %v146 = vpack.c.bf16 %v125, %v125
  %v147 = vpack.c.bf16 %v126, %v126
  %148 = vst [vmem:[%s3] sm:$0xf] %v127
  %149 = vst [vmem:[%s3 + $0x4] sm:$0xf] %v128
  %150 = vst [vmem:[%s3 + $0x8] sm:$0xf] %v129
  %151 = vst [vmem:[%s3 + $0xc] sm:$0xf] %v130
  %152 = vst [vmem:[%s3 + $0x10] sm:$0xf] %v131
  %153 = vst [vmem:[%s3 + $0x14] sm:$0xf] %v132
  %154 = vst [vmem:[%s3 + $0x18] sm:$0xf] %v133
  %155 = vst [vmem:[%s3 + $0x1c] sm:$0xf] %v134
  %156 = vst [vmem:[%s3 + $0x20] sm:$0xf] %v135
  %157 = vst [vmem:[%s3 + $0x24] sm:$0xf] %v136
  %158 = vst [vmem:[%s3 + $0x28] sm:$0xf] %v137
  %159 = vst [vmem:[%s3 + $0x2c] sm:$0xf] %v138
  %160 = vst [vmem:[%s3 + $0x30] sm:$0xf] %v139
  %161 = vst [vmem:[%s3 + $0x34] sm:$0xf] %v140
  %162 = vst [vmem:[%s3 + $0x38] sm:$0xf] %v141
  %163 = vst [vmem:[%s3 + $0x3c] sm:$0xf] %v142
  %164 = vst [vmem:[%s3 + $0x40] sm:$0xf] %v143
  %165 = vst [vmem:[%s3 + $0x44] sm:$0xf] %v144
  %166 = vst [vmem:[%s3 + $0x48] sm:$0xf] %v145
  %167 = vst [vmem:[%s3 + $0x4c] sm:$0xf] %v146
  %168 = vst [vmem:[%s3 + $0x50] sm:$0x1] %v147
  // Predicated region
  $region14: #{generator_forward.12} parent=0 // pred_check
    _
  $region15: #{generator_forward.12} parent=0 // pred_check_branch
    %170 = sbr.rel (0) target = $region17
  $region16: #{generator_forward.12} parent=0 // pred_region
    _
  $region17: #{generator_forward.12} parent=0 // pred_fallthru
    _
  // Predicated region
  $region18: #{generator_forward.12} parent=0 // pred_check
    _
  $region19: #{generator_forward.12} parent=0 // pred_check_branch
    %172 = sbr.rel (0) target = $region21
  $region20: #{generator_forward.12} parent=0 // pred_region
    _
  $region21: #{generator_forward.12} parent=0 // pred_fallthru
    _

// kernel: generator_forward.13
$region0: #{generator_forward.13}
  #allocation0 [shape = 'u32[]', space=smem, size = 0x4, offset = 0x4, fixed_abs, tag = 'smem constant byte address 0x4 - core index']
  #allocation1 [shape = 'u32[72,128]{1,0:T(1,128)}', space=vmem, size = 0x9000, scoped, tag = 'internal scratch']
  %s0 = inlined_call_operand.vmem [shape: bf16[578,128], index: 0, kind: input, shape index: {}]
  %s1 = inlined_call_operand.vmem [shape: bf16[128,128], index: 1, kind: input, shape index: {}]
  %s2 = inlined_call_operand.vmem [shape: f32[578,128], index: 2, kind: output, shape index: {}]
  %s3 = sld [smem:[#allocation0]]
  $region18: #{generator_forward.13} parent=0
    _
  %s5 = ssub.s32 1, %s3
  %s6 = scalar_select 0, %s5, %s3
  // Predicated region
  $region2: #{generator_forward.13} parent=0 // pred_check
    _
  $region3: #{generator_forward.13} parent=0 // pred_check_branch
    %8 = sbr.rel (0) target = $region5
  $region4: #{generator_forward.13} parent=0 // pred_region
    _
  $region5: #{generator_forward.13} parent=0 // pred_fallthru
    _
  // Predicated region
  $region6: #{generator_forward.13} parent=0 // pred_check
    _
  $region7: #{generator_forward.13} parent=0 // pred_check_branch
    %10 = sbr.rel (0) target = $region9
  $region8: #{generator_forward.13} parent=0 // pred_region
    _
  $region9: #{generator_forward.13} parent=0 // pred_fallthru
    _
  %v11 = vld [vmem:[%s0] sm:$0xf]
  %v12 = vld [vmem:[%s0 + $0x4] sm:$0xf]
  %v13 = vld [vmem:[%s0 + $0x8] sm:$0xf]
  %v14 = vld [vmem:[%s0 + $0xc] sm:$0xf]
  %v15 = vld [vmem:[%s0 + $0x10] sm:$0xf]
  %v16 = vld [vmem:[%s0 + $0x14] sm:$0xf]
  %v17 = vld [vmem:[%s0 + $0x18] sm:$0xf]
  %v18 = vld [vmem:[%s0 + $0x1c] sm:$0xf]
  %v19 = vld [vmem:[%s0 + $0x20] sm:$0xf]
  %v20 = vld [vmem:[%s0 + $0x24] sm:$0xf]
  %v21 = vld [vmem:[%s0 + $0x28] sm:$0xf]
  %v22 = vld [vmem:[%s0 + $0x2c] sm:$0xf]
  %v23 = vld [vmem:[%s0 + $0x30] sm:$0xf]
  %v24 = vld [vmem:[%s0 + $0x34] sm:$0xf]
  %v25 = vld [vmem:[%s0 + $0x38] sm:$0xf]
  %v26 = vld [vmem:[%s0 + $0x3c] sm:$0xf]
  %v27 = vld [vmem:[%s0 + $0x40] sm:$0xf]
  %v28 = vld [vmem:[%s0 + $0x44] sm:$0xf]
  %v29 = vld [vmem:[%s0 + $0x48] sm:$0xf]
  %v30 = vld [vmem:[%s0 + $0x4c] sm:$0xf]
  %v31 = vld [vmem:[%s0 + $0x50] sm:$0xf]
  %v32 = vld [vmem:[%s0 + $0x54] sm:$0xf]
  %v33 = vld [vmem:[%s0 + $0x58] sm:$0xf]
  %v34 = vld [vmem:[%s0 + $0x5c] sm:$0xf]
  %v35 = vld [vmem:[%s0 + $0x60] sm:$0xf]
  %v36 = vld [vmem:[%s0 + $0x64] sm:$0xf]
  %v37 = vld [vmem:[%s0 + $0x68] sm:$0xf]
  %v38 = vld [vmem:[%s0 + $0x6c] sm:$0xf]
  %v39 = vld [vmem:[%s0 + $0x70] sm:$0xf]
  %v40 = vld [vmem:[%s0 + $0x74] sm:$0xf]
  %v41 = vld [vmem:[%s0 + $0x78] sm:$0xf]
  %v42 = vld [vmem:[%s0 + $0x7c] sm:$0xf]
  %v43 = vld [vmem:[%s0 + $0x80] sm:$0xf]
  %v44 = vld [vmem:[%s0 + $0x84] sm:$0xf]
  %v45 = vld [vmem:[%s0 + $0x88] sm:$0xf]
  %v46 = vld [vmem:[%s0 + $0x8c] sm:$0xf]
  %v47 = vld [vmem:[%s0 + $0x90] sm:$0xf]
  %v48 = vld [vmem:[%s0 + $0x94] sm:$0xf]
  %v49 = vld [vmem:[%s0 + $0x98] sm:$0xf]
  %v50 = vld [vmem:[%s0 + $0x9c] sm:$0xf]
  %v51 = vld [vmem:[%s0 + $0xa0] sm:$0xf]
  %v52 = vld [vmem:[%s0 + $0xa4] sm:$0xf]
  %v53 = vld [vmem:[%s0 + $0xa8] sm:$0xf]
  %v54 = vld [vmem:[%s0 + $0xac] sm:$0xf]
  %v55 = vld [vmem:[%s0 + $0xb0] sm:$0xf]
  %v56 = vld [vmem:[%s0 + $0xb4] sm:$0xf]
  %v57 = vld [vmem:[%s0 + $0xb8] sm:$0xf]
  %v58 = vld [vmem:[%s0 + $0xbc] sm:$0xf]
  %v59 = vld [vmem:[%s0 + $0xc0] sm:$0xf]
  %v60 = vld [vmem:[%s0 + $0xc4] sm:$0xf]
  %v61 = vld [vmem:[%s0 + $0xc8] sm:$0xf]
  %v62 = vld [vmem:[%s0 + $0xcc] sm:$0xf]
  %v63 = vld [vmem:[%s0 + $0xd0] sm:$0xf]
  %v64 = vld [vmem:[%s0 + $0xd4] sm:$0xf]
  %v65 = vld [vmem:[%s0 + $0xd8] sm:$0xf]
  %v66 = vld [vmem:[%s0 + $0xdc] sm:$0xf]
  %v67 = vld [vmem:[%s0 + $0xe0] sm:$0xf]
  %v68 = vld [vmem:[%s0 + $0xe4] sm:$0xf]
  %v69 = vld [vmem:[%s0 + $0xe8] sm:$0xf]
  %v70 = vld [vmem:[%s0 + $0xec] sm:$0xf]
  %v71 = vld [vmem:[%s0 + $0xf0] sm:$0xf]
  %v72 = vld [vmem:[%s0 + $0xf4] sm:$0xf]
  %v73 = vld [vmem:[%s0 + $0xf8] sm:$0xf]
  %v74 = vld [vmem:[%s0 + $0xfc] sm:$0xf]
  %v75 = vld [vmem:[%s0 + $0x100] sm:$0xf]
  %v76 = vld [vmem:[%s0 + $0x104] sm:$0xf]
  %v77 = vld [vmem:[%s0 + $0x108] sm:$0xf]
  %v78 = vld [vmem:[%s0 + $0x10c] sm:$0xf]
  %v79 = vld [vmem:[%s0 + $0x110] sm:$0xf]
  %v80 = vld [vmem:[%s0 + $0x114] sm:$0xf]
  %v81 = vld [vmem:[%s0 + $0x118] sm:$0xf]
  %v82 = vld [vmem:[%s0 + $0x11c] sm:$0xf]
  %v83 = vld [vmem:[%s0 + $0x120] sm:$0x1]
  %v84 = vld [vmem:[%s1] sm:$0xf]
  %v85 = vld [vmem:[%s1 + $0x4] sm:$0xf]
  %v86 = vld [vmem:[%s1 + $0x8] sm:$0xf]
  %v87 = vld [vmem:[%s1 + $0xc] sm:$0xf]
  %v88 = vld [vmem:[%s1 + $0x10] sm:$0xf]
  %v89 = vld [vmem:[%s1 + $0x14] sm:$0xf]
  %v90 = vld [vmem:[%s1 + $0x18] sm:$0xf]
  %v91 = vld [vmem:[%s1 + $0x1c] sm:$0xf]
  %v92 = vld [vmem:[%s1 + $0x20] sm:$0xf]
  %v93 = vld [vmem:[%s1 + $0x24] sm:$0xf]
  %v94 = vld [vmem:[%s1 + $0x28] sm:$0xf]
  %v95 = vld [vmem:[%s1 + $0x2c] sm:$0xf]
  %v96 = vld [vmem:[%s1 + $0x30] sm:$0xf]
  %v97 = vld [vmem:[%s1 + $0x34] sm:$0xf]
  %v98 = vld [vmem:[%s1 + $0x38] sm:$0xf]
  %v99 = vld [vmem:[%s1 + $0x3c] sm:$0xf]
  %v173 = vunpack.c.l.b16 %v11
  %v174 = vunpack.c.l.b16 %v12
  %v175 = vunpack.c.l.b16 %v13
  %v176 = vunpack.c.l.b16 %v14
  %v177 = vunpack.c.l.b16 %v15
  %v178 = vunpack.c.l.b16 %v16
  %v179 = vunpack.c.l.b16 %v17
  %v180 = vunpack.c.l.b16 %v18
  %v181 = vunpack.c.l.b16 %v19
  %v182 = vunpack.c.l.b16 %v20
  %v183 = vunpack.c.l.b16 %v21
  %v184 = vunpack.c.l.b16 %v22
  %v185 = vunpack.c.l.b16 %v23
  %v186 = vunpack.c.l.b16 %v24
  %v187 = vunpack.c.l.b16 %v25
  %v188 = vunpack.c.l.b16 %v26
  %v189 = vunpack.c.l.b16 %v27
  %v190 = vunpack.c.l.b16 %v28
  %v191 = vunpack.c.l.b16 %v29
  %v192 = vunpack.c.l.b16 %v30
  %v193 = vunpack.c.l.b16 %v31
  %v194 = vunpack.c.l.b16 %v32
  %v195 = vunpack.c.l.b16 %v33
  %v196 = vunpack.c.l.b16 %v34
  %v197 = vunpack.c.l.b16 %v35
  %v198 = vunpack.c.l.b16 %v36
  %v199 = vunpack.c.l.b16 %v37
  %v200 = vunpack.c.l.b16 %v38
  %v201 = vunpack.c.l.b16 %v39
  %v202 = vunpack.c.l.b16 %v40
  %v203 = vunpack.c.l.b16 %v41
  %v204 = vunpack.c.l.b16 %v42
  %v205 = vunpack.c.l.b16 %v43
  %v206 = vunpack.c.l.b16 %v44
  %v207 = vunpack.c.l.b16 %v45
  %v208 = vunpack.c.l.b16 %v46
  %v209 = vunpack.c.l.b16 %v47
  %v210 = vunpack.c.l.b16 %v48
  %v211 = vunpack.c.l.b16 %v49
  %v212 = vunpack.c.l.b16 %v50
  %v213 = vunpack.c.l.b16 %v51
  %v214 = vunpack.c.l.b16 %v52
  %v215 = vunpack.c.l.b16 %v53
  %v216 = vunpack.c.l.b16 %v54
  %v217 = vunpack.c.l.b16 %v55
  %v218 = vunpack.c.l.b16 %v56
  %v219 = vunpack.c.l.b16 %v57
  %v220 = vunpack.c.l.b16 %v58
  %v221 = vunpack.c.l.b16 %v59
  %v222 = vunpack.c.l.b16 %v60
  %v223 = vunpack.c.l.b16 %v61
  %v224 = vunpack.c.l.b16 %v62
  %v225 = vunpack.c.l.b16 %v63
  %v226 = vunpack.c.l.b16 %v64
  %v227 = vunpack.c.l.b16 %v65
  %v228 = vunpack.c.l.b16 %v66
  %v229 = vunpack.c.l.b16 %v67
  %v230 = vunpack.c.l.b16 %v68
  %v231 = vunpack.c.l.b16 %v69
  %v232 = vunpack.c.l.b16 %v70
  %v233 = vunpack.c.l.b16 %v71
  %v234 = vunpack.c.l.b16 %v72
  %v235 = vunpack.c.l.b16 %v73
  %v236 = vunpack.c.l.b16 %v74
  %v237 = vunpack.c.l.b16 %v75
  %v238 = vunpack.c.l.b16 %v76
  %v239 = vunpack.c.l.b16 %v77
  %v240 = vunpack.c.l.b16 %v78
  %v241 = vunpack.c.l.b16 %v79
  %v242 = vunpack.c.l.b16 %v80
  %v243 = vunpack.c.l.b16 %v81
  %v244 = vunpack.c.l.b16 %v82
  %v245 = vunpack.c.l.b16 %v83
  %v246 = vpack.c.b16 %v174, %v173
  %v247 = vpack.c.b16 %v176, %v175
  %v248 = vpack.c.b16 %v178, %v177
  %v249 = vpack.c.b16 %v180, %v179
  %v250 = vpack.c.b16 %v182, %v181
  %v251 = vpack.c.b16 %v184, %v183
  %v252 = vpack.c.b16 %v186, %v185
  %v253 = vpack.c.b16 %v188, %v187
  %v254 = vpack.c.b16 %v190, %v189
  %v255 = vpack.c.b16 %v192, %v191
  %v256 = vpack.c.b16 %v194, %v193
  %v257 = vpack.c.b16 %v196, %v195
  %v258 = vpack.c.b16 %v198, %v197
  %v259 = vpack.c.b16 %v200, %v199
  %v260 = vpack.c.b16 %v202, %v201
  %v261 = vpack.c.b16 %v204, %v203
  %v262 = vpack.c.b16 %v206, %v205
  %v263 = vpack.c.b16 %v208, %v207
  %v264 = vpack.c.b16 %v210, %v209
  %v265 = vpack.c.b16 %v212, %v211
  %v266 = vpack.c.b16 %v214, %v213
  %v267 = vpack.c.b16 %v216, %v215
  %v268 = vpack.c.b16 %v218, %v217
  %v269 = vpack.c.b16 %v220, %v219
  %v270 = vpack.c.b16 %v222, %v221
  %v271 = vpack.c.b16 %v224, %v223
  %v272 = vpack.c.b16 %v226, %v225
  %v273 = vpack.c.b16 %v228, %v227
  %v274 = vpack.c.b16 %v230, %v229
  %v275 = vpack.c.b16 %v232, %v231
  %v276 = vpack.c.b16 %v234, %v233
  %v277 = vpack.c.b16 %v236, %v235
  %v278 = vpack.c.b16 %v238, %v237
  %v279 = vpack.c.b16 %v240, %v239
  %v280 = vpack.c.b16 %v242, %v241
  %v281 = vpack.c.b16 %v244, %v243
  %v282 = vpack.c.b16 %v245, %v245
  %v336 = vunpack.c.l.b16 %v84
  %v337 = vunpack.c.l.b16 %v85
  %v338 = vunpack.c.l.b16 %v86
  %v339 = vunpack.c.l.b16 %v87
  %v340 = vunpack.c.l.b16 %v88
  %v341 = vunpack.c.l.b16 %v89
  %v342 = vunpack.c.l.b16 %v90
  %v343 = vunpack.c.l.b16 %v91
  %v344 = vunpack.c.l.b16 %v92
  %v345 = vunpack.c.l.b16 %v93
  %v346 = vunpack.c.l.b16 %v94
  %v347 = vunpack.c.l.b16 %v95
  %v348 = vunpack.c.l.b16 %v96
  %v349 = vunpack.c.l.b16 %v97
  %v350 = vunpack.c.l.b16 %v98
  %v351 = vunpack.c.l.b16 %v99
  %v352 = vpack.c.b16 %v337, %v336
  %v353 = vpack.c.b16 %v339, %v338
  %v354 = vpack.c.b16 %v341, %v340
  %v355 = vpack.c.b16 %v343, %v342
  %v356 = vpack.c.b16 %v345, %v344
  %v357 = vpack.c.b16 %v347, %v346
  %v358 = vpack.c.b16 %v349, %v348
  %v359 = vpack.c.b16 %v351, %v350
  %368 = vmatpush.bf16.msra.mxu0 %v359
  %369 = vmatpush.bf16.msra.mxu0 %v358
  %370 = vmatpush.bf16.msra.mxu0 %v357
  %371 = vmatpush.bf16.msra.mxu0 %v356
  %372 = vmatpush.bf16.msra.mxu0 %v355
  %373 = vmatpush.bf16.msra.mxu0 %v354
  %374 = vmatpush.bf16.msra.mxu0 %v353
  %375 = vmatpush.bf16.msra.mxu0 %v352
  %376 = vmatmul.bf16.gmra.mxu0 %v246
  %v377 = vpop.f32.mrf.mxu0
  %v378 = vadd.f32 0.0, %v377
  %v379 = vpop.f32.mrf.mxu0
  %v380 = vadd.f32 0.0, %v379
  %381 = vmatmul.bf16.gmra.mxu0 %v247
  %v382 = vpop.f32.mrf.mxu0
  %v383 = vadd.f32 0.0, %v382
  %v384 = vpop.f32.mrf.mxu0
  %v385 = vadd.f32 0.0, %v384
  %386 = vmatmul.bf16.gmra.mxu0 %v248
  %v387 = vpop.f32.mrf.mxu0
  %v388 = vadd.f32 0.0, %v387
  %v389 = vpop.f32.mrf.mxu0
  %v390 = vadd.f32 0.0, %v389
  %391 = vmatmul.bf16.gmra.mxu0 %v249
  %v392 = vpop.f32.mrf.mxu0
  %v393 = vadd.f32 0.0, %v392
  %v394 = vpop.f32.mrf.mxu0
  %v395 = vadd.f32 0.0, %v394
  %396 = vmatmul.bf16.gmra.mxu0 %v250
  %v397 = vpop.f32.mrf.mxu0
  %v398 = vadd.f32 0.0, %v397
  %v399 = vpop.f32.mrf.mxu0
  %v400 = vadd.f32 0.0, %v399
  %401 = vmatmul.bf16.gmra.mxu0 %v251
  %v402 = vpop.f32.mrf.mxu0
  %v403 = vadd.f32 0.0, %v402
  %v404 = vpop.f32.mrf.mxu0
  %v405 = vadd.f32 0.0, %v404
  %406 = vmatmul.bf16.gmra.mxu0 %v252
  %v407 = vpop.f32.mrf.mxu0
  %v408 = vadd.f32 0.0, %v407
  %v409 = vpop.f32.mrf.mxu0
  %v410 = vadd.f32 0.0, %v409
  %411 = vmatmul.bf16.gmra.mxu0 %v253
  %v412 = vpop.f32.mrf.mxu0
  %v413 = vadd.f32 0.0, %v412
  %v414 = vpop.f32.mrf.mxu0
  %v415 = vadd.f32 0.0, %v414
  %416 = vmatmul.bf16.gmra.mxu0 %v254
  %v417 = vpop.f32.mrf.mxu0
  %v418 = vadd.f32 0.0, %v417
  %v419 = vpop.f32.mrf.mxu0
  %v420 = vadd.f32 0.0, %v419
  %421 = vmatmul.bf16.gmra.mxu0 %v255
  %v422 = vpop.f32.mrf.mxu0
  %v423 = vadd.f32 0.0, %v422
  %v424 = vpop.f32.mrf.mxu0
  %v425 = vadd.f32 0.0, %v424
  %426 = vmatmul.bf16.gmra.mxu0 %v256
  %v427 = vpop.f32.mrf.mxu0
  %v428 = vadd.f32 0.0, %v427
  %v429 = vpop.f32.mrf.mxu0
  %v430 = vadd.f32 0.0, %v429
  %431 = vmatmul.bf16.gmra.mxu0 %v257
  %v432 = vpop.f32.mrf.mxu0
  %v433 = vadd.f32 0.0, %v432
  %v434 = vpop.f32.mrf.mxu0
  %v435 = vadd.f32 0.0, %v434
  %436 = vmatmul.bf16.gmra.mxu0 %v258
  %v437 = vpop.f32.mrf.mxu0
  %v438 = vadd.f32 0.0, %v437
  %v439 = vpop.f32.mrf.mxu0
  %v440 = vadd.f32 0.0, %v439
  %441 = vmatmul.bf16.gmra.mxu0 %v259
  %v442 = vpop.f32.mrf.mxu0
  %v443 = vadd.f32 0.0, %v442
  %v444 = vpop.f32.mrf.mxu0
  %v445 = vadd.f32 0.0, %v444
  %446 = vmatmul.bf16.gmra.mxu0 %v260
  %v447 = vpop.f32.mrf.mxu0
  %v448 = vadd.f32 0.0, %v447
  %v449 = vpop.f32.mrf.mxu0
  %v450 = vadd.f32 0.0, %v449
  %451 = vmatmul.bf16.gmra.mxu0 %v261
  %v452 = vpop.f32.mrf.mxu0
  %v453 = vadd.f32 0.0, %v452
  %v454 = vpop.f32.mrf.mxu0
  %v455 = vadd.f32 0.0, %v454
  %456 = vmatmul.bf16.gmra.mxu0 %v262
  %v457 = vpop.f32.mrf.mxu0
  %v458 = vadd.f32 0.0, %v457
  %v459 = vpop.f32.mrf.mxu0
  %v460 = vadd.f32 0.0, %v459
  %461 = vmatmul.bf16.gmra.mxu0 %v263
  %v462 = vpop.f32.mrf.mxu0
  %v463 = vadd.f32 0.0, %v462
  %v464 = vpop.f32.mrf.mxu0
  %v465 = vadd.f32 0.0, %v464
  %466 = vmatmul.bf16.gmra.mxu0 %v264
  %v467 = vpop.f32.mrf.mxu0
  %v468 = vadd.f32 0.0, %v467
  %v469 = vpop.f32.mrf.mxu0
  %v470 = vadd.f32 0.0, %v469
  %471 = vmatmul.bf16.gmra.mxu0 %v265
  %v472 = vpop.f32.mrf.mxu0
  %v473 = vadd.f32 0.0, %v472
  %v474 = vpop.f32.mrf.mxu0
  %v475 = vadd.f32 0.0, %v474
  %476 = vmatmul.bf16.gmra.mxu0 %v266
  %v477 = vpop.f32.mrf.mxu0
  %v478 = vadd.f32 0.0, %v477
  %v479 = vpop.f32.mrf.mxu0
  %v480 = vadd.f32 0.0, %v479
  %481 = vmatmul.bf16.gmra.mxu0 %v267
  %v482 = vpop.f32.mrf.mxu0
  %v483 = vadd.f32 0.0, %v482
  %v484 = vpop.f32.mrf.mxu0
  %v485 = vadd.f32 0.0, %v484
  %486 = vmatmul.bf16.gmra.mxu0 %v268
  %v487 = vpop.f32.mrf.mxu0
  %v488 = vadd.f32 0.0, %v487
  %v489 = vpop.f32.mrf.mxu0
  %v490 = vadd.f32 0.0, %v489
  %491 = vmatmul.bf16.gmra.mxu0 %v269
  %v492 = vpop.f32.mrf.mxu0
  %v493 = vadd.f32 0.0, %v492
  %v494 = vpop.f32.mrf.mxu0
  %v495 = vadd.f32 0.0, %v494
  %496 = vmatmul.bf16.gmra.mxu0 %v270
  %v497 = vpop.f32.mrf.mxu0
  %v498 = vadd.f32 0.0, %v497
  %v499 = vpop.f32.mrf.mxu0
  %v500 = vadd.f32 0.0, %v499
  %501 = vmatmul.bf16.gmra.mxu0 %v271
  %v502 = vpop.f32.mrf.mxu0
  %v503 = vadd.f32 0.0, %v502
  %v504 = vpop.f32.mrf.mxu0
  %v505 = vadd.f32 0.0, %v504
  %506 = vmatmul.bf16.gmra.mxu0 %v272
  %v507 = vpop.f32.mrf.mxu0
  %v508 = vadd.f32 0.0, %v507
  %v509 = vpop.f32.mrf.mxu0
  %v510 = vadd.f32 0.0, %v509
  %511 = vmatmul.bf16.gmra.mxu0 %v273
  %v512 = vpop.f32.mrf.mxu0
  %v513 = vadd.f32 0.0, %v512
  %v514 = vpop.f32.mrf.mxu0
  %v515 = vadd.f32 0.0, %v514
  %516 = vmatmul.bf16.gmra.mxu0 %v274
  %v517 = vpop.f32.mrf.mxu0
  %v518 = vadd.f32 0.0, %v517
  %v519 = vpop.f32.mrf.mxu0
  %v520 = vadd.f32 0.0, %v519
  %521 = vmatmul.bf16.gmra.mxu0 %v275
  %v522 = vpop.f32.mrf.mxu0
  %v523 = vadd.f32 0.0, %v522
  %v524 = vpop.f32.mrf.mxu0
  %v525 = vadd.f32 0.0, %v524
  %526 = vmatmul.bf16.gmra.mxu0 %v276
  %v527 = vpop.f32.mrf.mxu0
  %v528 = vadd.f32 0.0, %v527
  %v529 = vpop.f32.mrf.mxu0
  %v530 = vadd.f32 0.0, %v529
  %531 = vmatmul.bf16.gmra.mxu0 %v277
  %v532 = vpop.f32.mrf.mxu0
  %v533 = vadd.f32 0.0, %v532
  %v534 = vpop.f32.mrf.mxu0
  %v535 = vadd.f32 0.0, %v534
  %536 = vmatmul.bf16.gmra.mxu0 %v278
  %v537 = vpop.f32.mrf.mxu0
  %v538 = vadd.f32 0.0, %v537
  %v539 = vpop.f32.mrf.mxu0
  %v540 = vadd.f32 0.0, %v539
  %541 = vmatmul.bf16.gmra.mxu0 %v279
  %v542 = vpop.f32.mrf.mxu0
  %v543 = vadd.f32 0.0, %v542
  %v544 = vpop.f32.mrf.mxu0
  %v545 = vadd.f32 0.0, %v544
  %546 = vmatmul.bf16.gmra.mxu0 %v280
  %v547 = vpop.f32.mrf.mxu0
  %v548 = vadd.f32 0.0, %v547
  %v549 = vpop.f32.mrf.mxu0
  %v550 = vadd.f32 0.0, %v549
  %551 = vmatmul.bf16.gmra.mxu0 %v281
  %v552 = vpop.f32.mrf.mxu0
  %v553 = vadd.f32 0.0, %v552
  %v554 = vpop.f32.mrf.mxu0
  %v555 = vadd.f32 0.0, %v554
  %556 = vmatmul.bf16.gmra.mxu0 %v282
  %v557 = vpop.f32.mrf.mxu0
  %v558 = vadd.f32 0.0, %v557
  %v559 = vpop.f32.mrf.mxu0
  %560 = vdwg.mxu0
  %v561 = vtanh.pop %v378
  %v562 = vtanh.pop %v380
  %v563 = vtanh.pop %v383
  %v564 = vtanh.pop %v385
  %v565 = vtanh.pop %v388
  %v566 = vtanh.pop %v390
  %v567 = vtanh.pop %v393
  %v568 = vtanh.pop %v395
  %v569 = vtanh.pop %v398
  %v570 = vtanh.pop %v400
  %v571 = vtanh.pop %v403
  %v572 = vtanh.pop %v405
  %v573 = vtanh.pop %v408
  %v574 = vtanh.pop %v410
  %v575 = vtanh.pop %v413
  %v576 = vtanh.pop %v415
  %v577 = vtanh.pop %v418
  %v578 = vtanh.pop %v420
  %v579 = vtanh.pop %v423
  %v580 = vtanh.pop %v425
  %v581 = vtanh.pop %v428
  %v582 = vtanh.pop %v430
  %v583 = vtanh.pop %v433
  %v584 = vtanh.pop %v435
  %v585 = vtanh.pop %v438
  %v586 = vtanh.pop %v440
  %v587 = vtanh.pop %v443
  %v588 = vtanh.pop %v445
  %v589 = vtanh.pop %v448
  %v590 = vtanh.pop %v450
  %v591 = vtanh.pop %v453
  %v592 = vtanh.pop %v455
  %v593 = vtanh.pop %v458
  %v594 = vtanh.pop %v460
  %v595 = vtanh.pop %v463
  %v596 = vtanh.pop %v465
  %v597 = vtanh.pop %v468
  %v598 = vtanh.pop %v470
  %v599 = vtanh.pop %v473
  %v600 = vtanh.pop %v475
  %v601 = vtanh.pop %v478
  %v602 = vtanh.pop %v480
  %v603 = vtanh.pop %v483
  %v604 = vtanh.pop %v485
  %v605 = vtanh.pop %v488
  %v606 = vtanh.pop %v490
  %v607 = vtanh.pop %v493
  %v608 = vtanh.pop %v495
  %v609 = vtanh.pop %v498
  %v610 = vtanh.pop %v500
  %v611 = vtanh.pop %v503
  %v612 = vtanh.pop %v505
  %v613 = vtanh.pop %v508
  %v614 = vtanh.pop %v510
  %v615 = vtanh.pop %v513
  %v616 = vtanh.pop %v515
  %v617 = vtanh.pop %v518
  %v618 = vtanh.pop %v520
  %v619 = vtanh.pop %v523
  %v620 = vtanh.pop %v525
  %v621 = vtanh.pop %v528
  %v622 = vtanh.pop %v530
  %v623 = vtanh.pop %v533
  %v624 = vtanh.pop %v535
  %v625 = vtanh.pop %v538
  %v626 = vtanh.pop %v540
  %v627 = vtanh.pop %v543
  %v628 = vtanh.pop %v545
  %v629 = vtanh.pop %v548
  %v630 = vtanh.pop %v550
  %v631 = vtanh.pop %v553
  %v632 = vtanh.pop %v555
  %v633 = vtanh.pop %v558
  %634 = vst [vmem:[%s2] sm:$0xff] %v561
  %635 = vst [vmem:[%s2 + $0x8] sm:$0xff] %v562
  %636 = vst [vmem:[%s2 + $0x10] sm:$0xff] %v563
  %637 = vst [vmem:[%s2 + $0x18] sm:$0xff] %v564
  %638 = vst [vmem:[%s2 + $0x20] sm:$0xff] %v565
  %639 = vst [vmem:[%s2 + $0x28] sm:$0xff] %v566
  %640 = vst [vmem:[%s2 + $0x30] sm:$0xff] %v567
  %641 = vst [vmem:[%s2 + $0x38] sm:$0xff] %v568
  %642 = vst [vmem:[%s2 + $0x40] sm:$0xff] %v569
  %643 = vst [vmem:[%s2 + $0x48] sm:$0xff] %v570
  %644 = vst [vmem:[%s2 + $0x50] sm:$0xff] %v571
  %645 = vst [vmem:[%s2 + $0x58] sm:$0xff] %v572
  %646 = vst [vmem:[%s2 + $0x60] sm:$0xff] %v573
  %647 = vst [vmem:[%s2 + $0x68] sm:$0xff] %v574
  %648 = vst [vmem:[%s2 + $0x70] sm:$0xff] %v575
  %649 = vst [vmem:[%s2 + $0x78] sm:$0xff] %v576
  %650 = vst [vmem:[%s2 + $0x80] sm:$0xff] %v577
  %651 = vst [vmem:[%s2 + $0x88] sm:$0xff] %v578
  %652 = vst [vmem:[%s2 + $0x90] sm:$0xff] %v579
  %653 = vst [vmem:[%s2 + $0x98] sm:$0xff] %v580
  %654 = vst [vmem:[%s2 + $0xa0] sm:$0xff] %v581
  %655 = vst [vmem:[%s2 + $0xa8] sm:$0xff] %v582
  %656 = vst [vmem:[%s2 + $0xb0] sm:$0xff] %v583
  %657 = vst [vmem:[%s2 + $0xb8] sm:$0xff] %v584
  %658 = vst [vmem:[%s2 + $0xc0] sm:$0xff] %v585
  %659 = vst [vmem:[%s2 + $0xc8] sm:$0xff] %v586
  %660 = vst [vmem:[%s2 + $0xd0] sm:$0xff] %v587
  %661 = vst [vmem:[%s2 + $0xd8] sm:$0xff] %v588
  %662 = vst [vmem:[%s2 + $0xe0] sm:$0xff] %v589
  %663 = vst [vmem:[%s2 + $0xe8] sm:$0xff] %v590
  %664 = vst [vmem:[%s2 + $0xf0] sm:$0xff] %v591
  %665 = vst [vmem:[%s2 + $0xf8] sm:$0xff] %v592
  %666 = vst [vmem:[%s2 + $0x100] sm:$0xff] %v593
  %667 = vst [vmem:[%s2 + $0x108] sm:$0xff] %v594
  %668 = vst [vmem:[%s2 + $0x110] sm:$0xff] %v595
  %669 = vst [vmem:[%s2 + $0x118] sm:$0xff] %v596
  %670 = vst [vmem:[%s2 + $0x120] sm:$0xff] %v597
  %671 = vst [vmem:[%s2 + $0x128] sm:$0xff] %v598
  %672 = vst [vmem:[%s2 + $0x130] sm:$0xff] %v599
  %673 = vst [vmem:[%s2 + $0x138] sm:$0xff] %v600
  %674 = vst [vmem:[%s2 + $0x140] sm:$0xff] %v601
  %675 = vst [vmem:[%s2 + $0x148] sm:$0xff] %v602
  %676 = vst [vmem:[%s2 + $0x150] sm:$0xff] %v603
  %677 = vst [vmem:[%s2 + $0x158] sm:$0xff] %v604
  %678 = vst [vmem:[%s2 + $0x160] sm:$0xff] %v605
  %679 = vst [vmem:[%s2 + $0x168] sm:$0xff] %v606
  %680 = vst [vmem:[%s2 + $0x170] sm:$0xff] %v607
  %681 = vst [vmem:[%s2 + $0x178] sm:$0xff] %v608
  %682 = vst [vmem:[%s2 + $0x180] sm:$0xff] %v609
  %683 = vst [vmem:[%s2 + $0x188] sm:$0xff] %v610
  %684 = vst [vmem:[%s2 + $0x190] sm:$0xff] %v611
  %685 = vst [vmem:[%s2 + $0x198] sm:$0xff] %v612
  %686 = vst [vmem:[%s2 + $0x1a0] sm:$0xff] %v613
  %687 = vst [vmem:[%s2 + $0x1a8] sm:$0xff] %v614
  %688 = vst [vmem:[%s2 + $0x1b0] sm:$0xff] %v615
  %689 = vst [vmem:[%s2 + $0x1b8] sm:$0xff] %v616
  %690 = vst [vmem:[%s2 + $0x1c0] sm:$0xff] %v617
  %691 = vst [vmem:[%s2 + $0x1c8] sm:$0xff] %v618
  %692 = vst [vmem:[%s2 + $0x1d0] sm:$0xff] %v619
  %693 = vst [vmem:[%s2 + $0x1d8] sm:$0xff] %v620
  %694 = vst [vmem:[%s2 + $0x1e0] sm:$0xff] %v621
  %695 = vst [vmem:[%s2 + $0x1e8] sm:$0xff] %v622
  %696 = vst [vmem:[%s2 + $0x1f0] sm:$0xff] %v623
  %697 = vst [vmem:[%s2 + $0x1f8] sm:$0xff] %v624
  %698 = vst [vmem:[%s2 + $0x200] sm:$0xff] %v625
  %699 = vst [vmem:[%s2 + $0x208] sm:$0xff] %v626
  %700 = vst [vmem:[%s2 + $0x210] sm:$0xff] %v627
  %701 = vst [vmem:[%s2 + $0x218] sm:$0xff] %v628
  %702 = vst [vmem:[%s2 + $0x220] sm:$0xff] %v629
  %703 = vst [vmem:[%s2 + $0x228] sm:$0xff] %v630
  %704 = vst [vmem:[%s2 + $0x230] sm:$0xff] %v631
  %705 = vst [vmem:[%s2 + $0x238] sm:$0xff] %v632
  %706 = vst [vmem:[%s2 + $0x240] sm:$0x3] %v633
  // Predicated region
  $region10: #{generator_forward.13} parent=0 // pred_check
    _
  $region11: #{generator_forward.13} parent=0 // pred_check_branch
    %708 = sbr.rel (0) target = $region13
  $region12: #{generator_forward.13} parent=0 // pred_region
    _
  $region13: #{generator_forward.13} parent=0 // pred_fallthru
    _
  // Predicated region
  $region14: #{generator_forward.13} parent=0 // pred_check
    _
  $region15: #{generator_forward.13} parent=0 // pred_check_branch
    %710 = sbr.rel (0) target = $region17
  $region16: #{generator_forward.13} parent=0 // pred_region
    _
  $region17: #{generator_forward.13} parent=0 // pred_fallthru
    _

</llo_original>
